<compile_context>
chip_gen: v7x
topology: tpu7x:2x2x1
jax: 0.10.0
libtpu: 0.0.40
codegen_flags: <defaults>
</compile_context>

<pallas_src>
import functools

import jax
import jax.numpy as jnp
from jax.experimental import pallas as pl
from jax.experimental.pallas import tpu as pltpu


# ----------------------------- Pallas kernels ------------------------------ #

def _matmul_bias_kernel(a_ref, b_ref, bias_ref, o_ref, *, apply_relu):
    """Single-K-block matmul: o = relu?(a @ b + bias).  No accumulator needed."""
    r = jnp.dot(a_ref[...], b_ref[...], preferred_element_type=jnp.float32)
    r = r + bias_ref[...]
    if apply_relu:
        r = jnp.maximum(r, 0.0)
    o_ref[...] = r.astype(o_ref.dtype)


def _fc_fused_kernel(x_ref, w1_ref, b1_ref, w2_ref, b2_ref, o_ref, acc_ref):
    """logits = relu(x @ w1 + b1) @ w2 + b2, with fc1's K split over grid axis 0."""
    k = pl.program_id(0)

    @pl.when(k == 0)
    def _():
        acc_ref[...] = jnp.zeros_like(acc_ref)

    acc_ref[...] += jnp.dot(x_ref[...], w1_ref[...],
                            preferred_element_type=jnp.float32)

    @pl.when(k == pl.num_programs(0) - 1)
    def _():
        h = jnp.maximum(acc_ref[...] + b1_ref[...], 0.0)          # fc1 + ReLU
        o_ref[...] = (jnp.dot(h, w2_ref[...],
                              preferred_element_type=jnp.float32)
                      + b2_ref[...]).astype(o_ref.dtype)          # fc2


def _maxpool2_kernel(x_ref, o_ref):
    """Full-resolution 2x2 neighborhood max (pure VPU); host decimates by 2."""
    x = x_ref[0]                                           # (H, W, C)
    mh = jnp.maximum(x[:-1], x[1:])                        # max over row pairs
    o_ref[0] = jnp.maximum(mh[:, :-1, :], mh[:, 1:, :])    # max over col pairs


# ------------------------------ host wrappers ------------------------------ #

def _pad_axis(x, m, axis):
    pad = (-x.shape[axis]) % m
    if pad == 0:
        return x
    cfg = [(0, 0)] * x.ndim
    cfg[axis] = (0, pad)
    return jnp.pad(x, cfg)


def matmul_bias(a, b, bias, *, apply_relu, tm=128, tn=128):
    """relu?(a @ b + bias).  Whole (unpadded) K dim as a single block."""
    M, K = a.shape
    K2, N = b.shape
    assert K == K2
    a_p = _pad_axis(a, tm, 0)
    b_p = _pad_axis(b, tn, 1)
    bias_p = _pad_axis(bias.reshape(1, -1), tn, 1)
    Mp, Np = a_p.shape[0], b_p.shape[1]
    out = pl.pallas_call(
        functools.partial(_matmul_bias_kernel, apply_relu=apply_relu),
        out_shape=jax.ShapeDtypeStruct((Mp, Np), jnp.float32),
        grid_spec=pltpu.PrefetchScalarGridSpec(
            num_scalar_prefetch=0,
            grid=(Mp // tm, Np // tn),
            in_specs=[
                pl.BlockSpec((tm, K), lambda i, j: (i, 0)),
                pl.BlockSpec((K, tn), lambda i, j: (0, j)),
                pl.BlockSpec((1, tn), lambda i, j: (0, j)),
            ],
            out_specs=pl.BlockSpec((tm, tn), lambda i, j: (i, j)),
        ),
        compiler_params=pltpu.CompilerParams(
            dimension_semantics=("parallel", "parallel")),
    )(a_p, b_p, bias_p)
    return out[:M, :N]


def fc1_fc2_fused(x, w1, b1, w2, b2, *, tk=2304, tn=128):
    """relu(x @ w1 + b1) @ w2 + b2 in one pallas_call.

    x: (M, K1), w1: (K1, 128), w2: (128, N2<=128).  M is tiny (batch).
    """
    M, K1 = x.shape
    N1, N2 = w2.shape
    assert K1 % tk == 0 and w1.shape == (K1, tn) and N1 == tn
    tm = ((M + 7) // 8) * 8                    # pad batch only up to a sublane
    x_p = _pad_axis(x, tm, 0)
    w2_p = _pad_axis(w2, tn, 1)                # lane-dense output slab
    b1_p = b1.reshape(1, -1)
    b2_p = _pad_axis(b2.reshape(1, -1), tn, 1)
    nk = K1 // tk
    out = pl.pallas_call(
        _fc_fused_kernel,
        out_shape=jax.ShapeDtypeStruct((tm, tn), jnp.float32),
        grid_spec=pltpu.PrefetchScalarGridSpec(
            num_scalar_prefetch=0,
            grid=(nk,),
            in_specs=[
                pl.BlockSpec((tm, tk), lambda k: (0, k)),
                pl.BlockSpec((tk, tn), lambda k: (k, 0)),
                pl.BlockSpec((1, tn), lambda k: (0, 0)),
                pl.BlockSpec((tn, tn), lambda k: (0, 0)),
                pl.BlockSpec((1, tn), lambda k: (0, 0)),
            ],
            out_specs=pl.BlockSpec((tm, tn), lambda k: (0, 0)),
            scratch_shapes=[pltpu.VMEM((tm, tn), jnp.float32)],
        ),
        compiler_params=pltpu.CompilerParams(
            dimension_semantics=("arbitrary",)),
    )(x_p, w1, b1_p, w2_p, b2_p)
    return out[:M, :N2]


def maxpool2_nhwc(x):
    """2x2 max pool (stride 2) on NHWC float32, whole image per grid step."""
    N, H, W, C = x.shape
    full = pl.pallas_call(
        _maxpool2_kernel,
        out_shape=jax.ShapeDtypeStruct((N, H - 1, W - 1, C), jnp.float32),
        grid_spec=pltpu.PrefetchScalarGridSpec(
            num_scalar_prefetch=0,
            grid=(N,),
            in_specs=[pl.BlockSpec((1, H, W, C), lambda n: (n, 0, 0, 0))],
            out_specs=pl.BlockSpec((1, H - 1, W - 1, C), lambda n: (n, 0, 0, 0)),
        ),
        compiler_params=pltpu.CompilerParams(dimension_semantics=("parallel",)),
    )(x)
    # stride-2 decimation of the full-resolution neighborhood max (free XLA slice)
    return full[:, ::2, ::2, :]


def _im2col(x_nhwc, kh, kw):
    N, H, W, C = x_nhwc.shape
    Ho, Wo = H - kh + 1, W - kw + 1
    cols = []
    for dh in range(kh):
        for dw in range(kw):
            cols.append(x_nhwc[:, dh:dh + Ho, dw:dw + Wo, :])    # (N,Ho,Wo,C)
    patches = jnp.stack(cols, axis=3)                            # (N,Ho,Wo,kh*kw,C)
    return patches.reshape(N * Ho * Wo, kh * kw * C), Ho, Wo


def conv2d_relu(x_nhwc, w_mat, b):
    """VALID 3x3 conv, stride 1, fused bias+ReLU.
    w_mat: (kh*kw*cin, cout), rows in (dh, dw, cin) order (matching im2col)."""
    kh = kw = 3
    cout = w_mat.shape[1]
    cols, Ho, Wo = _im2col(x_nhwc, kh, kw)
    out = matmul_bias(cols, w_mat, b, apply_relu=True)
    return out.reshape(x_nhwc.shape[0], Ho, Wo, cout)
    # TODO(synk): for large batches, replace host-side im2col with an in-kernel
    # shift-accumulate over the 9 taps so each input element is read once.


def prepare_params(p):
    """One-time (load-time) re-layout of the PyTorch parameters."""
    w1 = jnp.transpose(p["w1"], (2, 3, 1, 0)).reshape(-1, p["w1"].shape[0])   # (27, 32)
    w2 = jnp.transpose(p["w2"], (2, 3, 1, 0)).reshape(-1, p["w2"].shape[0])   # (288, 64)
    # fc1 weight: permute columns from PyTorch's (C, H, W) flatten order to the
    # (H, W, C) order produced by the NHWC pool output, then transpose.
    cout2 = p["w2"].shape[0]
    hw = int(round((p["wfc1"].shape[1] // cout2) ** 0.5))
    wfc1 = (p["wfc1"].reshape(-1, cout2, hw, hw)
            .transpose(0, 2, 3, 1)
            .reshape(p["wfc1"].shape[0], -1)
            .T)                                                               # (9216, 128)
    return {
        "w1": w1, "b1": p["b1"],
        "w2": w2, "b2": p["b2"],
        "wfc1": wfc1, "bfc1": p["bfc1"],
        "wfc2": p["wfc2"].T, "bfc2": p["bfc2"],                                # (128, 9)
    }


@jax.jit
def cnn_pathmnist_forward(x_nchw, pp):
    """Equivalent of CNNPATHMNIST.forward(x) with return_features=False."""
    x = jnp.transpose(x_nchw, (0, 2, 3, 1)).astype(jnp.float32)   # NCHW -> NHWC
    x = conv2d_relu(x, pp["w1"], pp["b1"])                        # (N,26,26,32)
    x = conv2d_relu(x, pp["w2"], pp["b2"])                        # (N,24,24,64)
    x = maxpool2_nhwc(x)                                          # (N,12,12,64)
    x = x.reshape(x.shape[0], -1)                                 # (N,9216) HWC order
    return fc1_fc2_fused(x, pp["wfc1"], pp["bfc1"],
                         pp["wfc2"], pp["bfc2"])                  # (N, 9)
    # TODO(synk): return_features=True path (input_flat / first-layer
    # activations) is pure reshape glue and is not implemented here.


# --------------------------- pure-JAX reference ----------------------------- #

def reference_forward(x_nchw, p):
    def conv(x, w, b):
        y = jax.lax.conv_general_dilated(
            x, w, window_strides=(1, 1), padding="VALID",
            dimension_numbers=("NCHW", "OIHW", "NCHW"),
            precision=jax.lax.Precision.HIGHEST)
        return jax.nn.relu(y + b[None, :, None, None])

    x = conv(x_nchw, p["w1"], p["b1"])
    x = conv(x, p["w2"], p["b2"])
    N, C, H, W = x.shape
    x = x.reshape(N, C, H // 2, 2, W // 2, 2).max(axis=(3, 5))
    x = x.reshape(N, -1)
    x = jax.nn.relu(jnp.dot(x, p["wfc1"].T,
                            precision=jax.lax.Precision.HIGHEST) + p["bfc1"])
    return jnp.dot(x, p["wfc2"].T,
                   precision=jax.lax.Precision.HIGHEST) + p["bfc2"]


# ----------------------------------- main ----------------------------------- #

if __name__ == "__main__":
    key = jax.random.PRNGKey(0)
    ks = jax.random.split(key, 9)
    params = {
        "w1": jax.random.normal(ks[0], (32, 3, 3, 3), jnp.float32) / jnp.sqrt(27.0),
        "b1": jax.random.normal(ks[1], (32,), jnp.float32) * 0.1,
        "w2": jax.random.normal(ks[2], (64, 3, 3, 3)[0:1] + (32, 3, 3), jnp.float32) / jnp.sqrt(288.0),
        "b2": jax.random.normal(ks[3], (64,), jnp.float32) * 0.1,
        "wfc1": jax.random.normal(ks[4], (128, 9216), jnp.float32) / jnp.sqrt(9216.0),
        "bfc1": jax.random.normal(ks[5], (128,), jnp.float32) * 0.1,
        "wfc2": jax.random.normal(ks[6], (9, 128), jnp.float32) / jnp.sqrt(128.0),
        "bfc2": jax.random.normal(ks[7], (9,), jnp.float32) * 0.1,
    }
    # fc1 expects 9216 = 64 * 12 * 12 features -> input must be (N, 3, 28, 28).
    x = jax.random.normal(ks[8], (2, 3, 28, 28), jnp.float32)

    pp = prepare_params(params)
    logits = jax.block_until_ready(cnn_pathmnist_forward(x, pp))
    ref = jax.block_until_ready(reference_forward(x, params))

    assert logits.shape == (2, 9), logits.shape
    err = float(jnp.max(jnp.abs(logits - ref)))
    # default (non-HIGHEST) MXU precision is used in the kernels, so allow a
    # slightly looser tolerance than the f32-exact reference.
    assert err < 2e-2, f"max abs err vs reference: {err}"
    print("KERNEL_OK")
</pallas_src>

<mosaic_0001>
module attributes {stable_mosaic.version = 11 : i64} {
  func.func @_matmul_bias_kernel(%arg0: i32, %arg1: i32, %arg2: memref<128x27xf32, #tpu.memory_space<vmem>>, %arg3: memref<27x128xf32, #tpu.memory_space<vmem>>, %arg4: memref<1x128xf32, #tpu.memory_space<vmem>>, %arg5: memref<128x128xf32, #tpu.memory_space<vmem>>) attributes {dimension_semantics = [#tpu.dimension_semantics<parallel>, #tpu.dimension_semantics<parallel>], iteration_bounds = array<i64: 11, 1>, scalar_prefetch = 0 : i64, scratch_operands = 0 : i64, tpu.core_type = #tpu.core_type<tc>, window_params = [{transform_indices = @transform_0, window_bounds = array<i64: 128, 27>}, {transform_indices = @transform_1, window_bounds = array<i64: 27, 128>}, {transform_indices = @transform_2, window_bounds = array<i64: 1, 128>}, {transform_indices = @transform_3, window_bounds = array<i64: 128, 128>}]} {
    %c0 = arith.constant 0 : index
    %c0_0 = arith.constant 0 : index
    %0 = vector.load %arg2[%c0, %c0_0] : memref<128x27xf32, #tpu.memory_space<vmem>>, vector<128x27xf32>
    %c0_1 = arith.constant 0 : index
    %c0_2 = arith.constant 0 : index
    %1 = vector.load %arg3[%c0_1, %c0_2] : memref<27x128xf32, #tpu.memory_space<vmem>>, vector<27x128xf32>
    %cst = arith.constant dense<0.000000e+00> : vector<128x128xf32>
    %2 = tpu.matmul %0, %1, %cst {dimension_numbers = #tpu.dot_dimension_numbers<[1], [0], [0], [1], [0, 0, 1, 1], [], []>} : vector<128x27xf32>, vector<27x128xf32>, vector<128x128xf32> -> vector<128x128xf32>
    %c0_3 = arith.constant 0 : index
    %c0_4 = arith.constant 0 : index
    %3 = vector.load %arg4[%c0_3, %c0_4] : memref<1x128xf32, #tpu.memory_space<vmem>>, vector<1x128xf32>
    %4 = vector.broadcast %3 : vector<1x128xf32> to vector<128x128xf32>
    %5 = arith.addf %2, %4 : vector<128x128xf32>
    %cst_5 = arith.constant 0.000000e+00 : f32
    %6 = vector.broadcast %cst_5 : f32 to vector<128x128xf32>
    %7 = arith.maximumf %5, %6 : vector<128x128xf32>
    %c0_6 = arith.constant 0 : index
    %c0_7 = arith.constant 0 : index
    %8 = vector.load %arg5[%c0_6, %c0_7] : memref<128x128xf32, #tpu.memory_space<vmem>>, vector<128x128xf32>
    tpu.vector_store %arg5[%c0_6, %c0_7], %7 {strides = array<i32>} : memref<128x128xf32, #tpu.memory_space<vmem>>, vector<128x128xf32>,
    return
  }
  func.func @transform_0(%arg0: i32, %arg1: i32) -> (i32, i32) {
    %c0_i32 = arith.constant 0 : i32
    %c0_i32_0 = arith.constant 0 : i32
    return %arg0, %c0_i32 : i32, i32
  }
  func.func @transform_1(%arg0: i32, %arg1: i32) -> (i32, i32) {
    %c0_i32 = arith.constant 0 : i32
    %c0_i32_0 = arith.constant 0 : i32
    return %c0_i32, %arg1 : i32, i32
  }
  func.func @transform_2(%arg0: i32, %arg1: i32) -> (i32, i32) {
    %c0_i32 = arith.constant 0 : i32
    %c0_i32_0 = arith.constant 0 : i32
    return %c0_i32, %arg1 : i32, i32
  }
  func.func @transform_3(%arg0: i32, %arg1: i32) -> (i32, i32) {
    %c0_i32 = arith.constant 0 : i32
    return %arg0, %arg1 : i32, i32
  }
}

module attributes {stable_mosaic.version = 11 : i64} {
  func.func @_maxpool2_kernel(%arg0: i32, %arg1: memref<1x24x24x64xf32, #tpu.memory_space<vmem>>, %arg2: memref<1x23x23x64xf32, #tpu.memory_space<vmem>>) attributes {dimension_semantics = [#tpu.dimension_semantics<parallel>], iteration_bounds = array<i64: 2>, scalar_prefetch = 0 : i64, scratch_operands = 0 : i64, tpu.core_type = #tpu.core_type<tc>, window_params = [{transform_indices = @transform_0, window_bounds = array<i64: 1, 24, 24, 64>}, {transform_indices = @transform_1, window_bounds = array<i64: 1, 23, 23, 64>}]} {
    %c0 = arith.constant 0 : index
    %c0_0 = arith.constant 0 : index
    %c0_1 = arith.constant 0 : index
    %c0_2 = arith.constant 0 : index
    %0 = vector.load %arg1[%c0, %c0_0, %c0_1, %c0_2] : memref<1x24x24x64xf32, #tpu.memory_space<vmem>>, vector<1x24x24x64xf32>
    %1 = vector.shape_cast %0 : vector<1x24x24x64xf32> to vector<24x24x64xf32>
    %2 = vector.extract_strided_slice %1 {offsets = [0, 0, 0], sizes = [23, 24, 64], strides = [1, 1, 1]} : vector<24x24x64xf32> to vector<23x24x64xf32>
    %3 = vector.extract_strided_slice %1 {offsets = [1, 0, 0], sizes = [23, 24, 64], strides = [1, 1, 1]} : vector<24x24x64xf32> to vector<23x24x64xf32>
    %4 = arith.maximumf %2, %3 : vector<23x24x64xf32>
    %5 = vector.extract_strided_slice %4 {offsets = [0, 0, 0], sizes = [23, 23, 64], strides = [1, 1, 1]} : vector<23x24x64xf32> to vector<23x23x64xf32>
    %6 = vector.extract_strided_slice %4 {offsets = [0, 1, 0], sizes = [23, 23, 64], strides = [1, 1, 1]} : vector<23x24x64xf32> to vector<23x23x64xf32>
    %7 = arith.maximumf %5, %6 : vector<23x23x64xf32>
    %c0_3 = arith.constant 0 : index
    %c0_4 = arith.constant 0 : index
    %c0_5 = arith.constant 0 : index
    %c0_6 = arith.constant 0 : index
    %8 = vector.load %arg2[%c0_3, %c0_4, %c0_5, %c0_6] : memref<1x23x23x64xf32, #tpu.memory_space<vmem>>, vector<1x23x23x64xf32>
    %9 = vector.shape_cast %8 : vector<1x23x23x64xf32> to vector<23x23x64xf32>
    %10 = vector.shape_cast %7 : vector<23x23x64xf32> to vector<1x23x23x64xf32>
    tpu.vector_store %arg2[%c0_3, %c0_4, %c0_5, %c0_6], %10 {strides = array<i32>} : memref<1x23x23x64xf32, #tpu.memory_space<vmem>>, vector<1x23x23x64xf32>,
    return
  }
  func.func @transform_0(%arg0: i32) -> (i32, i32, i32, i32) {
    %c0_i32 = arith.constant 0 : i32
    %c0_i32_0 = arith.constant 0 : i32
    %c0_i32_1 = arith.constant 0 : i32
    %c0_i32_2 = arith.constant 0 : i32
    return %arg0, %c0_i32, %c0_i32_0, %c0_i32_1 : i32, i32, i32, i32
  }
  func.func @transform_1(%arg0: i32) -> (i32, i32, i32, i32) {
    %c0_i32 = arith.constant 0 : i32
    %c0_i32_0 = arith.constant 0 : i32
    %c0_i32_1 = arith.constant 0 : i32
    %c0_i32_2 = arith.constant 0 : i32
    return %arg0, %c0_i32, %c0_i32_0, %c0_i32_1 : i32, i32, i32, i32
  }
}

module attributes {stable_mosaic.version = 11 : i64} {
  func.func @_matmul_bias_kernel(%arg0: i32, %arg1: i32, %arg2: memref<128x288xf32, #tpu.memory_space<vmem>>, %arg3: memref<288x128xf32, #tpu.memory_space<vmem>>, %arg4: memref<1x128xf32, #tpu.memory_space<vmem>>, %arg5: memref<128x128xf32, #tpu.memory_space<vmem>>) attributes {dimension_semantics = [#tpu.dimension_semantics<parallel>, #tpu.dimension_semantics<parallel>], iteration_bounds = array<i64: 9, 1>, scalar_prefetch = 0 : i64, scratch_operands = 0 : i64, tpu.core_type = #tpu.core_type<tc>, window_params = [{transform_indices = @transform_0, window_bounds = array<i64: 128, 288>}, {transform_indices = @transform_1, window_bounds = array<i64: 288, 128>}, {transform_indices = @transform_2, window_bounds = array<i64: 1, 128>}, {transform_indices = @transform_3, window_bounds = array<i64: 128, 128>}]} {
    %c0 = arith.constant 0 : index
    %c0_0 = arith.constant 0 : index
    %0 = vector.load %arg2[%c0, %c0_0] : memref<128x288xf32, #tpu.memory_space<vmem>>, vector<128x288xf32>
    %c0_1 = arith.constant 0 : index
    %c0_2 = arith.constant 0 : index
    %1 = vector.load %arg3[%c0_1, %c0_2] : memref<288x128xf32, #tpu.memory_space<vmem>>, vector<288x128xf32>
    %cst = arith.constant dense<0.000000e+00> : vector<128x128xf32>
    %2 = tpu.matmul %0, %1, %cst {dimension_numbers = #tpu.dot_dimension_numbers<[1], [0], [0], [1], [0, 0, 1, 1], [], []>} : vector<128x288xf32>, vector<288x128xf32>, vector<128x128xf32> -> vector<128x128xf32>
    %c0_3 = arith.constant 0 : index
    %c0_4 = arith.constant 0 : index
    %3 = vector.load %arg4[%c0_3, %c0_4] : memref<1x128xf32, #tpu.memory_space<vmem>>, vector<1x128xf32>
    %4 = vector.broadcast %3 : vector<1x128xf32> to vector<128x128xf32>
    %5 = arith.addf %2, %4 : vector<128x128xf32>
    %cst_5 = arith.constant 0.000000e+00 : f32
    %6 = vector.broadcast %cst_5 : f32 to vector<128x128xf32>
    %7 = arith.maximumf %5, %6 : vector<128x128xf32>
    %c0_6 = arith.constant 0 : index
    %c0_7 = arith.constant 0 : index
    %8 = vector.load %arg5[%c0_6, %c0_7] : memref<128x128xf32, #tpu.memory_space<vmem>>, vector<128x128xf32>
    tpu.vector_store %arg5[%c0_6, %c0_7], %7 {strides = array<i32>} : memref<128x128xf32, #tpu.memory_space<vmem>>, vector<128x128xf32>,
    return
  }
  func.func @transform_0(%arg0: i32, %arg1: i32) -> (i32, i32) {
    %c0_i32 = arith.constant 0 : i32
    %c0_i32_0 = arith.constant 0 : i32
    return %arg0, %c0_i32 : i32, i32
  }
  func.func @transform_1(%arg0: i32, %arg1: i32) -> (i32, i32) {
    %c0_i32 = arith.constant 0 : i32
    %c0_i32_0 = arith.constant 0 : i32
    return %c0_i32, %arg1 : i32, i32
  }
  func.func @transform_2(%arg0: i32, %arg1: i32) -> (i32, i32) {
    %c0_i32 = arith.constant 0 : i32
    %c0_i32_0 = arith.constant 0 : i32
    return %c0_i32, %arg1 : i32, i32
  }
  func.func @transform_3(%arg0: i32, %arg1: i32) -> (i32, i32) {
    %c0_i32 = arith.constant 0 : i32
    return %arg0, %arg1 : i32, i32
  }
}

module attributes {stable_mosaic.version = 11 : i64} {
  func.func @_fc_fused_kernel(%arg0: i32, %arg1: memref<8x2304xf32, #tpu.memory_space<vmem>>, %arg2: memref<2304x128xf32, #tpu.memory_space<vmem>>, %arg3: memref<1x128xf32, #tpu.memory_space<vmem>>, %arg4: memref<128x128xf32, #tpu.memory_space<vmem>>, %arg5: memref<1x128xf32, #tpu.memory_space<vmem>>, %arg6: memref<8x128xf32, #tpu.memory_space<vmem>>, %arg7: memref<8x128xf32, #tpu.memory_space<vmem>>) attributes {dimension_semantics = [#tpu.dimension_semantics<arbitrary>], iteration_bounds = array<i64: 4>, scalar_prefetch = 0 : i64, scratch_operands = 1 : i64, tpu.core_type = #tpu.core_type<tc>, window_params = [{transform_indices = @transform_0, window_bounds = array<i64: 8, 2304>}, {transform_indices = @transform_1, window_bounds = array<i64: 2304, 128>}, {pipeline_mode = #tpu.pipeline_mode<synchronous>, transform_indices = @transform_2, window_bounds = array<i64: 1, 128>}, {pipeline_mode = #tpu.pipeline_mode<synchronous>, transform_indices = @transform_3, window_bounds = array<i64: 128, 128>}, {pipeline_mode = #tpu.pipeline_mode<synchronous>, transform_indices = @transform_4, window_bounds = array<i64: 1, 128>}, {pipeline_mode = #tpu.pipeline_mode<synchronous>, transform_indices = @transform_5, window_bounds = array<i64: 8, 128>}]} {
    %c0_i32 = arith.constant 0 : i32
    %0 = arith.cmpi eq, %arg0, %c0_i32 : i32
    %1 = arith.extui %0 : i1 to i32
    %c0_i32_0 = arith.constant 0 : i32
    %2 = arith.cmpi ne, %1, %c0_i32_0 : i32
    scf.if %2 {
      %cst_9 = arith.constant 0.000000e+00 : f32
      %12 = vector.broadcast %cst_9 : f32 to vector<8x128xf32>
      %c0_10 = arith.constant 0 : index
      %c0_11 = arith.constant 0 : index
      %13 = vector.load %arg7[%c0_10, %c0_11] : memref<8x128xf32, #tpu.memory_space<vmem>>, vector<8x128xf32>
      tpu.vector_store %arg7[%c0_10, %c0_11], %12 {strides = array<i32>} : memref<8x128xf32, #tpu.memory_space<vmem>>, vector<8x128xf32>,
    } else {
    }
    %c0 = arith.constant 0 : index
    %c0_1 = arith.constant 0 : index
    %3 = vector.load %arg7[%c0, %c0_1] : memref<8x128xf32, #tpu.memory_space<vmem>>, vector<8x128xf32>
    %c0_2 = arith.constant 0 : index
    %c0_3 = arith.constant 0 : index
    %4 = vector.load %arg1[%c0_2, %c0_3] : memref<8x2304xf32, #tpu.memory_space<vmem>>, vector<8x2304xf32>
    %c0_4 = arith.constant 0 : index
    %c0_5 = arith.constant 0 : index
    %5 = vector.load %arg2[%c0_4, %c0_5] : memref<2304x128xf32, #tpu.memory_space<vmem>>, vector<2304x128xf32>
    %cst = arith.constant dense<0.000000e+00> : vector<8x128xf32>
    %6 = tpu.matmul %4, %5, %cst {dimension_numbers = #tpu.dot_dimension_numbers<[1], [0], [0], [1], [0, 0, 1, 1], [], []>} : vector<8x2304xf32>, vector<2304x128xf32>, vector<8x128xf32> -> vector<8x128xf32>
    %7 = arith.addf %3, %6 : vector<8x128xf32>
    %c0_6 = arith.constant 0 : index
    %c0_7 = arith.constant 0 : index
    %8 = vector.load %arg7[%c0_6, %c0_7] : memref<8x128xf32, #tpu.memory_space<vmem>>, vector<8x128xf32>
    tpu.vector_store %arg7[%c0_6, %c0_7], %7 {strides = array<i32>} : memref<8x128xf32, #tpu.memory_space<vmem>>, vector<8x128xf32>,
    %c3_i32 = arith.constant 3 : i32
    %9 = arith.cmpi eq, %arg0, %c3_i32 : i32
    %10 = arith.extui %9 : i1 to i32
    %c0_i32_8 = arith.constant 0 : i32
    %11 = arith.cmpi ne, %10, %c0_i32_8 : i32
    scf.if %11 {
      %c0_9 = arith.constant 0 : index
      %c0_10 = arith.constant 0 : index
      %12 = vector.load %arg7[%c0_9, %c0_10] : memref<8x128xf32, #tpu.memory_space<vmem>>, vector<8x128xf32>
      %c0_11 = arith.constant 0 : index
      %c0_12 = arith.constant 0 : index
      %13 = vector.load %arg3[%c0_11, %c0_12] : memref<1x128xf32, #tpu.memory_space<vmem>>, vector<1x128xf32>
      %14 = vector.broadcast %13 : vector<1x128xf32> to vector<8x128xf32>
      %15 = arith.addf %12, %14 : vector<8x128xf32>
      %cst_13 = arith.constant 0.000000e+00 : f32
      %16 = vector.broadcast %cst_13 : f32 to vector<8x128xf32>
      %17 = arith.maximumf %15, %16 : vector<8x128xf32>
      %c0_14 = arith.constant 0 : index
      %c0_15 = arith.constant 0 : index
      %18 = vector.load %arg4[%c0_14, %c0_15] : memref<128x128xf32, #tpu.memory_space<vmem>>, vector<128x128xf32>
      %cst_16 = arith.constant dense<0.000000e+00> : vector<8x128xf32>
      %19 = tpu.matmul %17, %18, %cst_16 {dimension_numbers = #tpu.dot_dimension_numbers<[1], [0], [0], [1], [0, 0, 1, 1], [], []>} : vector<8x128xf32>, vector<128x128xf32>, vector<8x128xf32> -> vector<8x128xf32>
      %c0_17 = arith.constant 0 : index
      %c0_18 = arith.constant 0 : index
      %20 = vector.load %arg5[%c0_17, %c0_18] : memref<1x128xf32, #tpu.memory_space<vmem>>, vector<1x128xf32>
      %21 = vector.broadcast %20 : vector<1x128xf32> to vector<8x128xf32>
      %22 = arith.addf %19, %21 : vector<8x128xf32>
      %c0_19 = arith.constant 0 : index
      %c0_20 = arith.constant 0 : index
      %23 = vector.load %arg6[%c0_19, %c0_20] : memref<8x128xf32, #tpu.memory_space<vmem>>, vector<8x128xf32>
      tpu.vector_store %arg6[%c0_19, %c0_20], %22 {strides = array<i32>} : memref<8x128xf32, #tpu.memory_space<vmem>>, vector<8x128xf32>,
    } else {
    }
    return
  }
  func.func @transform_0(%arg0: i32) -> (i32, i32) {
    %c0_i32 = arith.constant 0 : i32
    %c0_i32_0 = arith.constant 0 : i32
    return %c0_i32, %arg0 : i32, i32
  }
  func.func @transform_1(%arg0: i32) -> (i32, i32) {
    %c0_i32 = arith.constant 0 : i32
    %c0_i32_0 = arith.constant 0 : i32
    return %arg0, %c0_i32 : i32, i32
  }
  func.func @transform_2(%arg0: i32) -> (i32, i32) {
    %c0_i32 = arith.constant 0 : i32
    %c0_i32_0 = arith.constant 0 : i32
    %c0_i32_1 = arith.constant 0 : i32
    return %c0_i32, %c0_i32_0 : i32, i32
  }
  func.func @transform_3(%arg0: i32) -> (i32, i32) {
    %c0_i32 = arith.constant 0 : i32
    %c0_i32_0 = arith.constant 0 : i32
    %c0_i32_1 = arith.constant 0 : i32
    return %c0_i32, %c0_i32_0 : i32, i32
  }
  func.func @transform_4(%arg0: i32) -> (i32, i32) {
    %c0_i32 = arith.constant 0 : i32
    %c0_i32_0 = arith.constant 0 : i32
    %c0_i32_1 = arith.constant 0 : i32
    return %c0_i32, %c0_i32_0 : i32, i32
  }
  func.func @transform_5(%arg0: i32) -> (i32, i32) {
    %c0_i32 = arith.constant 0 : i32
    %c0_i32_0 = arith.constant 0 : i32
    %c0_i32_1 = arith.constant 0 : i32
    return %c0_i32, %c0_i32_0 : i32, i32
  }
}

</mosaic_0001>

<llo_original>
// kernel: cnn_pathmnist_forward.4
$region0: #{cnn_pathmnist_forward.4}
  #allocation0 [shape = 'u32[]', space=smem, size = 0x4, offset = 0x4, fixed_abs, tag = 'smem constant byte address 0x4 - core index']
  #allocation1 [shape = 'u32[144,128]{1,0:T(1,128)}', space=vmem, size = 0x12000, scoped, tag = 'internal scratch']
  %s0 = inlined_call_operand.vmem [shape: f32[1408,27], index: 0, kind: input, shape index: {}]
  %s1 = inlined_call_operand.vmem [shape: f32[27,128], index: 1, kind: input, shape index: {}]
  %s2 = inlined_call_operand.vmem [shape: f32[1,128], index: 2, kind: input, shape index: {}]
  %s3 = inlined_call_operand.vmem [shape: f32[1408,128], index: 3, kind: output, shape index: {}]
  %s4 = sld [smem:[#allocation0]]
  $region45: #{cnn_pathmnist_forward.4} parent=0
    _
  %s6 = ssub.s32 1, %s4
  %s7 = scalar_select 0, %s6, %s4
  loop: start=0, step=1, limit=13
  $region2: #{cnn_pathmnist_forward.4} parent=0 // loop_pre_header
    _
  $region3: #{cnn_pathmnist_forward.4} parent=0 // loop_header
    %s9 = sphi 0, %s13
    %p10 = scmp.ge.s32.totalorder %s9, 13
    %s16 = sphi 0, %s28
    %s17 = sphi 0, %s24
    %s18 = sphi 0, %s16
    %s19 = sphi 0, %s17
    %s20 = sphi 0, %s18
    %s21 = sphi 0, %s19
    %s31 = sphi 0, %s33
    %s34 = sphi 0, %s31
    %s35 = sphi 0, %s34
    %s51 = sphi 0, %s35
    %s57 = sphi 0, %s59
    %s60 = sphi 0, %s57
    %s61 = sphi 0, %s60
    %s77 = sphi 0, %s61
    %s83 = sphi 0, %s85
    %s86 = sphi 0, %s83
    %s87 = sphi 0, %s86
    %s103 = sphi 0, %s87
    %s111 = sphi 0, %s113
    %s114 = sphi 0, %s111
    %s115 = sphi 0, %s114
    %s131 = sphi 0, %s115
  $region4: #{cnn_pathmnist_forward.4} parent=0 // loop_header_branch
    %12 = sbr.rel (%p10) target = $region8
  $region5: #{cnn_pathmnist_forward.4} parent=0 // loop_body
    %s14 = ssub.s32 %s9, 1
    %s15 = ssub.s32 %s9, 2
    %s22 = sadd.s32 1, %s17
    %p23 = scmp.ge.s32.totalorder %s22, 1
    %s24 = scalar_select %p23, 0, %s22
    %s25 = sadd.s32 1, %s16
    %s26 = scalar_select %p23, %s25, %s16
    %p27 = scmp.ge.s32.totalorder %s26, 11
    %s28 = scalar_select %p27, 0, %s26
    %s29 = ssub.s32 %s16, %s28
    %p30 = scmp.eq.s32.totalorder %s29, 0
    %s32 = sadd.s32 %s31, 1
    %s33 = scalar_select %p30, %s31, %s32
    %p36 = pneg %p30
    %p37 = scmp.eq.s32.totalorder %s9, 10
    %p38 = por %p36, %p37
    %p39 = scmp.ne.s32.totalorder %s31, %s34
    %p40 = scmp.eq.s32.totalorder %s9, 0
    %p41 = por %p39, %p40
    %p42 = scmp.ne.s32.totalorder %s31, %s34
    %p43 = scmp.eq.s32.totalorder %s14, 10
    %p44 = por %p42, %p43
    %p45 = scmp.ne.s32.totalorder %s34, %s35
    %p46 = scmp.eq.s32.totalorder %s14, 0
    %p47 = por %p45, %p46
    %p48 = scmp.ne.s32.totalorder %s34, %s35
    %p49 = scmp.eq.s32.totalorder %s15, 10
    %p50 = por %p48, %p49
    %p52 = scmp.ne.s32.totalorder %s35, %s51
    %p53 = scmp.eq.s32.totalorder %s15, 0
    %p54 = por %p52, %p53
    %s55 = ssub.s32 %s17, %s24
    %p56 = scmp.eq.s32.totalorder %s55, 0
    %s58 = sadd.s32 %s57, 1
    %s59 = scalar_select %p56, %s57, %s58
    %p62 = pneg %p56
    %p63 = scmp.eq.s32.totalorder %s9, 10
    %p64 = por %p62, %p63
    %p65 = scmp.ne.s32.totalorder %s57, %s60
    %p66 = scmp.eq.s32.totalorder %s9, 0
    %p67 = por %p65, %p66
    %p68 = scmp.ne.s32.totalorder %s57, %s60
    %p69 = scmp.eq.s32.totalorder %s14, 10
    %p70 = por %p68, %p69
    %p71 = scmp.ne.s32.totalorder %s60, %s61
    %p72 = scmp.eq.s32.totalorder %s14, 0
    %p73 = por %p71, %p72
    %p74 = scmp.ne.s32.totalorder %s60, %s61
    %p75 = scmp.eq.s32.totalorder %s15, 10
    %p76 = por %p74, %p75
    %p78 = scmp.ne.s32.totalorder %s61, %s77
    %p79 = scmp.eq.s32.totalorder %s15, 0
    %p80 = por %p78, %p79
    %s81 = ssub.s32 %s17, %s24
    %p82 = scmp.eq.s32.totalorder %s81, 0
    %s84 = sadd.s32 %s83, 1
    %s85 = scalar_select %p82, %s83, %s84
    %p88 = pneg %p82
    %p89 = scmp.eq.s32.totalorder %s9, 10
    %p90 = por %p88, %p89
    %p91 = scmp.ne.s32.totalorder %s83, %s86
    %p92 = scmp.eq.s32.totalorder %s9, 0
    %p93 = por %p91, %p92
    %p94 = scmp.ne.s32.totalorder %s83, %s86
    %p95 = scmp.eq.s32.totalorder %s14, 10
    %p96 = por %p94, %p95
    %p97 = scmp.ne.s32.totalorder %s86, %s87
    %p98 = scmp.eq.s32.totalorder %s14, 0
    %p99 = por %p97, %p98
    %p100 = scmp.ne.s32.totalorder %s86, %s87
    %p101 = scmp.eq.s32.totalorder %s15, 10
    %p102 = por %p100, %p101
    %p104 = scmp.ne.s32.totalorder %s87, %s103
    %p105 = scmp.eq.s32.totalorder %s15, 0
    %p106 = por %p104, %p105
    %s107 = ssub.s32 %s16, %s28
    %s108 = ssub.s32 %s17, %s24
    %s109 = sor.u32 %s107, %s108
    %p110 = scmp.eq.s32.totalorder %s109, 0
    %s112 = sadd.s32 %s111, 1
    %s113 = scalar_select %p110, %s111, %s112
    %p116 = pneg %p110
    %p117 = scmp.eq.s32.totalorder %s9, 10
    %p118 = por %p116, %p117
    %p119 = scmp.ne.s32.totalorder %s111, %s114
    %p120 = scmp.eq.s32.totalorder %s9, 0
    %p121 = por %p119, %p120
    %p122 = scmp.ne.s32.totalorder %s111, %s114
    %p123 = scmp.eq.s32.totalorder %s14, 10
    %p124 = por %p122, %p123
    %p125 = scmp.ne.s32.totalorder %s114, %s115
    %p126 = scmp.eq.s32.totalorder %s14, 0
    %p127 = por %p125, %p126
    %p128 = scmp.ne.s32.totalorder %s114, %s115
    %p129 = scmp.eq.s32.totalorder %s15, 10
    %p130 = por %p128, %p129
    %p132 = scmp.ne.s32.totalorder %s115, %s131
    %p133 = scmp.eq.s32.totalorder %s15, 0
    %p134 = por %p132, %p133
    %p135 = scmp.le.s32.totalorder 1, %s9
    %p136 = scmp.lt.s32.totalorder %s9, 12
    %p137 = pnand %p135, %p136
    %p138 = pneg %p137
    // Predicated region
    $region9: #{cnn_pathmnist_forward.4} parent=5 // pred_check
      _
    $region10: #{cnn_pathmnist_forward.4} parent=5 // pred_check_branch
      %140 = sbr.rel (%p137) target = $region12
    $region11: #{cnn_pathmnist_forward.4} parent=5 // pred_region
      %s141 = ssub.s32 %s9, 1
      // Predicated region
      $region13: #{cnn_pathmnist_forward.4} parent=11 // pred_check
        %p142 = pneg %p73
      $region14: #{cnn_pathmnist_forward.4} parent=11 // pred_check_branch
        %144 = sbr.rel (%p142) target = $region16
      $region15: #{cnn_pathmnist_forward.4} parent=11 // pred_region
        %p145 = scmp.lt.s32.totalorder %s19, 0
        %s146 = scalar_select %p145, %s19, 0
        %s147 = smul.addr %s146, 8
        %s148 = scalar_lea.vmem %s1, %s147
      $region16: #{cnn_pathmnist_forward.4} parent=11 // pred_fallthru
        _
      // Predicated region
      $region17: #{cnn_pathmnist_forward.4} parent=11 // pred_check
        %p149 = pneg %p99
      $region18: #{cnn_pathmnist_forward.4} parent=11 // pred_check_branch
        %151 = sbr.rel (%p149) target = $region20
      $region19: #{cnn_pathmnist_forward.4} parent=11 // pred_region
        %p152 = scmp.lt.s32.totalorder %s19, 0
        %s153 = scalar_select %p152, %s19, 0
        %s154 = scalar_lea.vmem %s2, %s153
      $region20: #{cnn_pathmnist_forward.4} parent=11 // pred_fallthru
        _
    $region12: #{cnn_pathmnist_forward.4} parent=5 // pred_fallthru
      _
    %p155 = scmp.lt.s32.totalorder %s9, 11
    // Predicated region
    $region21: #{cnn_pathmnist_forward.4} parent=5 // pred_check
      %p156 = pneg %p155
    $region22: #{cnn_pathmnist_forward.4} parent=5 // pred_check_branch
      %158 = sbr.rel (%p156) target = $region24
    $region23: #{cnn_pathmnist_forward.4} parent=5 // pred_region
      // Predicated region
      $region25: #{cnn_pathmnist_forward.4} parent=23 // pred_check
        %p159 = pneg %p41
      $region26: #{cnn_pathmnist_forward.4} parent=23 // pred_check_branch
        %161 = sbr.rel (%p159) target = $region28
      $region27: #{cnn_pathmnist_forward.4} parent=23 // pred_region
        %s162 = smul.u32 16, %s16
        %p163 = scmp.lt.s32.totalorder %s162, 175
        %s164 = scalar_select %p163, %s162, 175
        %s165 = smul.addr %s164, 8
        %s166 = scalar_lea.vmem %s0, %s165
        %s167 = smul.u32 16, %s16
      $region28: #{cnn_pathmnist_forward.4} parent=23 // pred_fallthru
        _
    $region24: #{cnn_pathmnist_forward.4} parent=5 // pred_fallthru
      _
    %p168 = scmp.le.s32.totalorder 1, %s9
    %p169 = scmp.lt.s32.totalorder %s9, 12
    %p170 = pnand %p168, %p169
    %p171 = pneg %p170
    // Predicated region
    $region29: #{cnn_pathmnist_forward.4} parent=5 // pred_check
      _
    $region30: #{cnn_pathmnist_forward.4} parent=5 // pred_check_branch
      %173 = sbr.rel (%p170) target = $region32
    $region31: #{cnn_pathmnist_forward.4} parent=5 // pred_region
      %s174 = ssub.s32 %s9, 1
      %s175 = smul.u32 16, %s18
      %p176 = scmp.lt.s32.totalorder %s175, 175
      %s177 = scalar_select %p176, %s175, 175
      %s178 = smul.addr %s177, 8
      %s179 = scalar_lea.vmem %s0, %s178
      %p180 = pneg %p47
      %p181 = pneg %p44
      %p182 = scmp.lt.s32.totalorder %s19, 0
      %s183 = scalar_select %p182, %s19, 0
      %s184 = smul.addr %s183, 8
      %s185 = scalar_lea.vmem %s1, %s184
      %p186 = pneg %p73
      %p187 = pneg %p70
      %p188 = scmp.lt.s32.totalorder %s19, 0
      %s189 = scalar_select %p188, %s19, 0
      %s190 = scalar_lea.vmem %s2, %s189
      %p191 = pneg %p99
      %p192 = pneg %p96
      %p193 = pneg %p127
      %p194 = pneg %p124
      %s195 = smul.u32 16, %s18
      %p196 = scmp.lt.s32.totalorder %s195, 175
      %s197 = scalar_select %p196, %s195, 175
      %p198 = scmp.lt.s32.totalorder %s19, 0
      %s199 = scalar_select %p198, %s19, 0
      %s200 = sadd.s32 %s199, %s197
      %s201 = smul.addr %s200, 8
      %s202 = scalar_lea.vmem %s3, %s201
      %s203 = smul.u32 16, %s18
      %p204 = scmp.lt.s32.totalorder %s203, 175
      %s205 = scalar_select %p204, %s203, 175
      %s206 = smul.addr %s205, 8
      %s207 = scalar_lea.vmem %s0, %s206
      %s208 = smul.u32 16, %s18
      %p209 = scmp.lt.s32.totalorder %s19, 0
      %s210 = scalar_select %p209, %s19, 0
      %s211 = smul.addr %s210, 8
      %s212 = scalar_lea.vmem %s1, %s211
      %p213 = scmp.lt.s32.totalorder %s19, 0
      %s214 = scalar_select %p213, %s19, 0
      %s215 = scalar_lea.vmem %s2, %s214
      %s216 = smul.u32 16, %s18
      %p217 = scmp.lt.s32.totalorder %s216, 175
      %s218 = scalar_select %p217, %s216, 175
      %p219 = scmp.lt.s32.totalorder %s19, 0
      %s220 = scalar_select %p219, %s19, 0
      %s221 = sadd.s32 %s220, %s218
      %s222 = smul.addr %s221, 8
      %s223 = scalar_lea.vmem %s3, %s222
      %s224 = smul.u32 16, %s18
      %v225 = vld [vmem:[%s207] sm:$0xff]
      %v226 = vld [vmem:[%s207 + $0x8] sm:$0xff]
      %v227 = vld [vmem:[%s207 + $0x10] sm:$0xff]
      %v228 = vld [vmem:[%s207 + $0x18] sm:$0xff]
      %v229 = vld [vmem:[%s207 + $0x20] sm:$0xff]
      %v230 = vld [vmem:[%s207 + $0x28] sm:$0xff]
      %v231 = vld [vmem:[%s207 + $0x30] sm:$0xff]
      %v232 = vld [vmem:[%s207 + $0x38] sm:$0xff]
      %v233 = vld [vmem:[%s207 + $0x40] sm:$0xff]
      %v234 = vld [vmem:[%s207 + $0x48] sm:$0xff]
      %v235 = vld [vmem:[%s207 + $0x50] sm:$0xff]
      %v236 = vld [vmem:[%s207 + $0x58] sm:$0xff]
      %v237 = vld [vmem:[%s207 + $0x60] sm:$0xff]
      %v238 = vld [vmem:[%s207 + $0x68] sm:$0xff]
      %v239 = vld [vmem:[%s207 + $0x70] sm:$0xff]
      %v240 = vld [vmem:[%s207 + $0x78] sm:$0xff]
      %v241 = vld [vmem:[%s212] sm:$0xff]
      %v242 = vld [vmem:[%s212 + $0x8] sm:$0xff]
      %v243 = vld [vmem:[%s212 + $0x10] sm:$0xff]
      %v244 = vld [vmem:[%s212 + $0x18] sm:$0x7]
      %v245 = vld [vmem:[%s215] sm:$0x1]
      %v247 = vlaneseq
      %v248 = vshrl.u32 %v247, 7
      %v249 = vsub.s32 0, %v248
      %v250 = vrot.slane %v245, %v249
      %vm252 = vcmask 220160
      %v254 = vsel %vm252, %v225, 0
      %v257 = vsel %vm252, %v226, 0
      %v260 = vsel %vm252, %v227, 0
      %v263 = vsel %vm252, %v228, 0
      %v266 = vsel %vm252, %v229, 0
      %v269 = vsel %vm252, %v230, 0
      %v272 = vsel %vm252, %v231, 0
      %v275 = vsel %vm252, %v232, 0
      %v278 = vsel %vm252, %v233, 0
      %v281 = vsel %vm252, %v234, 0
      %v284 = vsel %vm252, %v235, 0
      %v287 = vsel %vm252, %v236, 0
      %v290 = vsel %vm252, %v237, 0
      %v293 = vsel %vm252, %v238, 0
      %v296 = vsel %vm252, %v239, 0
      %v299 = vsel %vm252, %v240, 0
      %vm301 = vcmask 1042432
      %v303 = vsel %vm301, %v244, 0
      %305 = vmatprep.subr.mxu0 0.0
      %306 = vmatpush1.msra.mxu0 %v241
      %307 = vmatprep.subr.mxu0 0.0
      %308 = vmatpush1.msra.mxu0 %v242
      %309 = vmatprep.subr.mxu0 0.0
      %310 = vmatpush1.msra.mxu0 %v243
      %311 = vmatprep.subr.mxu0 0.0
      %312 = vmatpush1.msra.mxu0 %v303
      %313 = vmatprep.subr.mxu0 0.0
      %314 = vmatpush1.msra.mxu0 0.0
      %315 = vmatprep.subr.mxu0 0.0
      %316 = vmatpush1.msra.mxu0 0.0
      %317 = vmatprep.subr.mxu0 0.0
      %318 = vmatpush1.msra.mxu0 0.0
      %319 = vmatprep.subr.mxu0 0.0
      %320 = vmatpush1.msra.mxu0 0.0
      %321 = vmatprep.subr.mxu0 0.0
      %322 = vmatpush1.msra.mxu0 0.0
      %323 = vmatprep.subr.mxu0 0.0
      %324 = vmatpush1.msra.mxu0 0.0
      %325 = vmatprep.subr.mxu0 0.0
      %326 = vmatpush1.msra.mxu0 0.0
      %327 = vmatprep.subr.mxu0 0.0
      %328 = vmatpush1.msra.mxu0 0.0
      %329 = vmatprep.subr.mxu0 0.0
      %330 = vmatpush1.msra.mxu0 0.0
      %331 = vmatprep.subr.mxu0 0.0
      %332 = vmatpush1.msra.mxu0 0.0
      %333 = vmatprep.subr.mxu0 0.0
      %334 = vmatpush1.msra.mxu0 0.0
      %335 = vmatprep.subr.mxu0 0.0
      %336 = vmatpush1.msra.mxu0 0.0
      %337 = vmatprep.subr.mxu0 0.0
      %338 = vmatpush1.msra.mxu0 0.0
      %339 = vmatprep.subr.mxu0 0.0
      %340 = vmatpush1.msra.mxu0 0.0
      %341 = vmatprep.subr.mxu0 0.0
      %342 = vmatpush1.msra.mxu0 0.0
      %343 = vmatprep.subr.mxu0 0.0
      %344 = vmatpush1.msra.mxu0 0.0
      %345 = vmatprep.subr.mxu0 0.0
      %346 = vmatpush1.msra.mxu0 0.0
      %347 = vmatprep.subr.mxu0 0.0
      %348 = vmatpush1.msra.mxu0 0.0
      %349 = vmatprep.subr.mxu0 0.0
      %350 = vmatpush1.msra.mxu0 0.0
      %351 = vmatprep.subr.mxu0 0.0
      %352 = vmatpush1.msra.mxu0 0.0
      %353 = vmatprep.subr.mxu0 0.0
      %354 = vmatpush1.msra.mxu0 0.0
      %355 = vmatprep.subr.mxu0 0.0
      %356 = vmatpush1.msra.mxu0 0.0
      %357 = vmatprep.subr.mxu0 0.0
      %358 = vmatpush1.msra.mxu0 0.0
      %359 = vmatprep.subr.mxu0 0.0
      %360 = vmatpush1.msra.mxu0 0.0
      %361 = vmatprep.subr.mxu0 0.0
      %362 = vmatpush1.msra.mxu0 0.0
      %363 = vmatprep.subr.mxu0 0.0
      %364 = vmatpush1.msra.mxu0 0.0
      %365 = vmatprep.subr.mxu0 0.0
      %366 = vmatpush1.msra.mxu0 0.0
      %367 = vmatprep.subr.mxu0 0.0
      %368 = vmatpush1.msra.mxu0 0.0
      %369 = vmatprep.mubr.f32.mxu0 0.0
      %370 = vmatmul.mubr.f32.gmra.mrb[0].mxu0 %v254
      %v371 = vpop.f32.mrb[0].mxu0
      %v372 = vadd.f32 %v250, %v371
      %v373 = vpop.f32.mrb[0].mxu0
      %374 = vmatprep.mubr.f32.mxu0 0.0
      %375 = vmatmul.mubr.f32.gmra.mrb[0].mxu0 %v257
      %v376 = vpop.f32.mrb[0].mxu0
      %v377 = vadd.f32 %v250, %v376
      %v378 = vpop.f32.mrb[0].mxu0
      %379 = vmatprep.mubr.f32.mxu0 0.0
      %380 = vmatmul.mubr.f32.gmra.mrb[0].mxu0 %v260
      %v381 = vpop.f32.mrb[0].mxu0
      %v382 = vadd.f32 %v250, %v381
      %v383 = vpop.f32.mrb[0].mxu0
      %384 = vmatprep.mubr.f32.mxu0 0.0
      %385 = vmatmul.mubr.f32.gmra.mrb[0].mxu0 %v263
      %v386 = vpop.f32.mrb[0].mxu0
      %v387 = vadd.f32 %v250, %v386
      %v388 = vpop.f32.mrb[0].mxu0
      %389 = vmatprep.mubr.f32.mxu0 0.0
      %390 = vmatmul.mubr.f32.gmra.mrb[0].mxu0 %v266
      %v391 = vpop.f32.mrb[0].mxu0
      %v392 = vadd.f32 %v250, %v391
      %v393 = vpop.f32.mrb[0].mxu0
      %394 = vmatprep.mubr.f32.mxu0 0.0
      %395 = vmatmul.mubr.f32.gmra.mrb[0].mxu0 %v269
      %v396 = vpop.f32.mrb[0].mxu0
      %v397 = vadd.f32 %v250, %v396
      %v398 = vpop.f32.mrb[0].mxu0
      %399 = vmatprep.mubr.f32.mxu0 0.0
      %400 = vmatmul.mubr.f32.gmra.mrb[0].mxu0 %v272
      %v401 = vpop.f32.mrb[0].mxu0
      %v402 = vadd.f32 %v250, %v401
      %v403 = vpop.f32.mrb[0].mxu0
      %404 = vmatprep.mubr.f32.mxu0 0.0
      %405 = vmatmul.mubr.f32.gmra.mrb[0].mxu0 %v275
      %v406 = vpop.f32.mrb[0].mxu0
      %v407 = vadd.f32 %v250, %v406
      %v408 = vpop.f32.mrb[0].mxu0
      %409 = vmatprep.mubr.f32.mxu0 0.0
      %410 = vmatmul.mubr.f32.gmra.mrb[0].mxu0 %v278
      %v411 = vpop.f32.mrb[0].mxu0
      %v412 = vadd.f32 %v250, %v411
      %v413 = vpop.f32.mrb[0].mxu0
      %414 = vmatprep.mubr.f32.mxu0 0.0
      %415 = vmatmul.mubr.f32.gmra.mrb[0].mxu0 %v281
      %v416 = vpop.f32.mrb[0].mxu0
      %v417 = vadd.f32 %v250, %v416
      %v418 = vpop.f32.mrb[0].mxu0
      %419 = vmatprep.mubr.f32.mxu0 0.0
      %420 = vmatmul.mubr.f32.gmra.mrb[0].mxu0 %v284
      %v421 = vpop.f32.mrb[0].mxu0
      %v422 = vadd.f32 %v250, %v421
      %v423 = vpop.f32.mrb[0].mxu0
      %424 = vmatprep.mubr.f32.mxu0 0.0
      %425 = vmatmul.mubr.f32.gmra.mrb[0].mxu0 %v287
      %v426 = vpop.f32.mrb[0].mxu0
      %v427 = vadd.f32 %v250, %v426
      %v428 = vpop.f32.mrb[0].mxu0
      %429 = vmatprep.mubr.f32.mxu0 0.0
      %430 = vmatmul.mubr.f32.gmra.mrb[0].mxu0 %v290
      %v431 = vpop.f32.mrb[0].mxu0
      %v432 = vadd.f32 %v250, %v431
      %v433 = vpop.f32.mrb[0].mxu0
      %434 = vmatprep.mubr.f32.mxu0 0.0
      %435 = vmatmul.mubr.f32.gmra.mrb[0].mxu0 %v293
      %v436 = vpop.f32.mrb[0].mxu0
      %v437 = vadd.f32 %v250, %v436
      %v438 = vpop.f32.mrb[0].mxu0
      %439 = vmatprep.mubr.f32.mxu0 0.0
      %440 = vmatmul.mubr.f32.gmra.mrb[0].mxu0 %v296
      %v441 = vpop.f32.mrb[0].mxu0
      %v442 = vadd.f32 %v250, %v441
      %v443 = vpop.f32.mrb[0].mxu0
      %444 = vmatprep.mubr.f32.mxu0 0.0
      %445 = vmatmul.mubr.f32.gmra.mrb[0].mxu0 %v299
      %v446 = vpop.f32.mrb[0].mxu0
      %v447 = vadd.f32 %v250, %v446
      %v448 = vpop.f32.mrb[0].mxu0
      %449 = vdwg.mxu0
      %v450 = vmax.f32 %v372, 0.0
      %v451 = vmax.f32 %v377, 0.0
      %v452 = vmax.f32 %v382, 0.0
      %v453 = vmax.f32 %v387, 0.0
      %v454 = vmax.f32 %v392, 0.0
      %v455 = vmax.f32 %v397, 0.0
      %v456 = vmax.f32 %v402, 0.0
      %v457 = vmax.f32 %v407, 0.0
      %v458 = vmax.f32 %v412, 0.0
      %v459 = vmax.f32 %v417, 0.0
      %v460 = vmax.f32 %v422, 0.0
      %v461 = vmax.f32 %v427, 0.0
      %v462 = vmax.f32 %v432, 0.0
      %v463 = vmax.f32 %v437, 0.0
      %v464 = vmax.f32 %v442, 0.0
      %v465 = vmax.f32 %v447, 0.0
      %466 = vst [vmem:[%s223] sm:$0xff] %v450
      %467 = vst [vmem:[%s223 + $0x8] sm:$0xff] %v451
      %468 = vst [vmem:[%s223 + $0x10] sm:$0xff] %v452
      %469 = vst [vmem:[%s223 + $0x18] sm:$0xff] %v453
      %470 = vst [vmem:[%s223 + $0x20] sm:$0xff] %v454
      %471 = vst [vmem:[%s223 + $0x28] sm:$0xff] %v455
      %472 = vst [vmem:[%s223 + $0x30] sm:$0xff] %v456
      %473 = vst [vmem:[%s223 + $0x38] sm:$0xff] %v457
      %474 = vst [vmem:[%s223 + $0x40] sm:$0xff] %v458
      %475 = vst [vmem:[%s223 + $0x48] sm:$0xff] %v459
      %476 = vst [vmem:[%s223 + $0x50] sm:$0xff] %v460
      %477 = vst [vmem:[%s223 + $0x58] sm:$0xff] %v461
      %478 = vst [vmem:[%s223 + $0x60] sm:$0xff] %v462
      %479 = vst [vmem:[%s223 + $0x68] sm:$0xff] %v463
      %480 = vst [vmem:[%s223 + $0x70] sm:$0xff] %v464
      %481 = vst [vmem:[%s223 + $0x78] sm:$0xff] %v465
      %s482 = smul.u32 16, %s18
      %p483 = scmp.lt.s32.totalorder %s482, 175
      %s484 = scalar_select %p483, %s482, 175
      %p485 = scmp.lt.s32.totalorder %s19, 0
      %s486 = scalar_select %p485, %s19, 0
      %s487 = sadd.s32 %s486, %s484
      %s488 = smul.addr %s487, 8
      %s489 = scalar_lea.vmem %s3, %s488
      // Predicated region
      $region33: #{cnn_pathmnist_forward.4} parent=31 // pred_check
        %p490 = pneg %p124
      $region34: #{cnn_pathmnist_forward.4} parent=31 // pred_check_branch
        %492 = sbr.rel (%p490) target = $region36
      $region35: #{cnn_pathmnist_forward.4} parent=31 // pred_region
        %s493 = smul.u32 16, %s18
      $region36: #{cnn_pathmnist_forward.4} parent=31 // pred_fallthru
        _
    $region32: #{cnn_pathmnist_forward.4} parent=5 // pred_fallthru
      _
    %p494 = scmp.le.s32.totalorder 2, %s9
    // Predicated region
    $region37: #{cnn_pathmnist_forward.4} parent=5 // pred_check
      %p495 = pneg %p494
    $region38: #{cnn_pathmnist_forward.4} parent=5 // pred_check_branch
      %497 = sbr.rel (%p495) target = $region40
    $region39: #{cnn_pathmnist_forward.4} parent=5 // pred_region
      %s498 = ssub.s32 %s9, 2
      // Predicated region
      $region41: #{cnn_pathmnist_forward.4} parent=39 // pred_check
        %p499 = pneg %p130
      $region42: #{cnn_pathmnist_forward.4} parent=39 // pred_check_branch
        %501 = sbr.rel (%p499) target = $region44
      $region43: #{cnn_pathmnist_forward.4} parent=39 // pred_region
        %s502 = smul.u32 16, %s20
        %p503 = scmp.lt.s32.totalorder %s502, 175
        %s504 = scalar_select %p503, %s502, 175
        %p505 = scmp.lt.s32.totalorder %s21, 0
        %s506 = scalar_select %p505, %s21, 0
        %s507 = sadd.s32 %s506, %s504
        %s508 = smul.addr %s507, 8
        %s509 = scalar_lea.vmem %s3, %s508
      $region44: #{cnn_pathmnist_forward.4} parent=39 // pred_fallthru
        _
    $region40: #{cnn_pathmnist_forward.4} parent=5 // pred_fallthru
      _
  $region6: #{cnn_pathmnist_forward.4} parent=0 // loop_footer
    %s13 = sadd.s32 1, %s9
  $region7: #{cnn_pathmnist_forward.4} parent=0 // loop_footer_branch
    %8 = sbr.rel target = $region3
  $region8: #{cnn_pathmnist_forward.4} parent=0 // loop_exit
    _

// kernel: cnn_pathmnist_forward.6
$region0: #{cnn_pathmnist_forward.6}
  #allocation0 [shape = 'u32[]', space=smem, size = 0x4, offset = 0x4, fixed_abs, tag = 'smem constant byte address 0x4 - core index']
  #allocation1 [shape = 'u32[144,128]{1,0:T(1,128)}', space=vmem, size = 0x12000, scoped, tag = 'internal scratch']
  %s0 = inlined_call_operand.vmem [shape: f32[2,24,24,64], index: 0, kind: input, shape index: {}]
  %s1 = inlined_call_operand.vmem [shape: f32[2,23,23,64], index: 1, kind: output, shape index: {}]
  %s2 = sld [smem:[#allocation0]]
  $region37: #{cnn_pathmnist_forward.6} parent=0
    _
  %s4 = ssub.s32 1, %s2
  %s5 = scalar_select 0, %s4, %s2
  loop: start=0, step=1, limit=4
  $region2: #{cnn_pathmnist_forward.6} parent=0 // loop_pre_header
    _
  $region3: #{cnn_pathmnist_forward.6} parent=0 // loop_header
    %s7 = sphi 0, %s11
    %p8 = scmp.ge.s32.totalorder %s7, 4
    %s17 = sphi 0, %s19
    %s20 = sphi 0, %s17
    %s21 = sphi 0, %s20
    %s37 = sphi 0, %s21
    %s43 = sphi 0, %s45
    %s46 = sphi 0, %s43
    %s47 = sphi 0, %s46
    %s63 = sphi 0, %s47
  $region4: #{cnn_pathmnist_forward.6} parent=0 // loop_header_branch
    %10 = sbr.rel (%p8) target = $region8
  $region5: #{cnn_pathmnist_forward.6} parent=0 // loop_body
    %s12 = ssub.s32 %s7, 1
    %s13 = ssub.s32 %s7, 2
    %s14 = sadd.s32 %s7, 1
    %s15 = ssub.s32 %s7, %s14
    %p16 = scmp.eq.s32.totalorder %s15, 0
    %s18 = sadd.s32 %s17, 1
    %s19 = scalar_select %p16, %s17, %s18
    %p22 = pneg %p16
    %p23 = scmp.eq.s32.totalorder %s7, 1
    %p24 = por %p22, %p23
    %p25 = scmp.ne.s32.totalorder %s17, %s20
    %p26 = scmp.eq.s32.totalorder %s7, 0
    %p27 = por %p25, %p26
    %p28 = scmp.ne.s32.totalorder %s17, %s20
    %p29 = scmp.eq.s32.totalorder %s12, 1
    %p30 = por %p28, %p29
    %p31 = scmp.ne.s32.totalorder %s20, %s21
    %p32 = scmp.eq.s32.totalorder %s12, 0
    %p33 = por %p31, %p32
    %p34 = scmp.ne.s32.totalorder %s20, %s21
    %p35 = scmp.eq.s32.totalorder %s13, 1
    %p36 = por %p34, %p35
    %p38 = scmp.ne.s32.totalorder %s21, %s37
    %p39 = scmp.eq.s32.totalorder %s13, 0
    %p40 = por %p38, %p39
    %s41 = ssub.s32 %s7, %s14
    %p42 = scmp.eq.s32.totalorder %s41, 0
    %s44 = sadd.s32 %s43, 1
    %s45 = scalar_select %p42, %s43, %s44
    %p48 = pneg %p42
    %p49 = scmp.eq.s32.totalorder %s7, 1
    %p50 = por %p48, %p49
    %p51 = scmp.ne.s32.totalorder %s43, %s46
    %p52 = scmp.eq.s32.totalorder %s7, 0
    %p53 = por %p51, %p52
    %p54 = scmp.ne.s32.totalorder %s43, %s46
    %p55 = scmp.eq.s32.totalorder %s12, 1
    %p56 = por %p54, %p55
    %p57 = scmp.ne.s32.totalorder %s46, %s47
    %p58 = scmp.eq.s32.totalorder %s12, 0
    %p59 = por %p57, %p58
    %p60 = scmp.ne.s32.totalorder %s46, %s47
    %p61 = scmp.eq.s32.totalorder %s13, 1
    %p62 = por %p60, %p61
    %p64 = scmp.ne.s32.totalorder %s47, %s63
    %p65 = scmp.eq.s32.totalorder %s13, 0
    %p66 = por %p64, %p65
    %p67 = scmp.le.s32.totalorder 1, %s7
    %p68 = scmp.lt.s32.totalorder %s7, 3
    %p69 = pnand %p67, %p68
    %p70 = pneg %p69
    // Predicated region
    $region9: #{cnn_pathmnist_forward.6} parent=5 // pred_check
      _
    $region10: #{cnn_pathmnist_forward.6} parent=5 // pred_check_branch
      %72 = sbr.rel (%p69) target = $region12
    $region11: #{cnn_pathmnist_forward.6} parent=5 // pred_region
      %s73 = ssub.s32 %s7, 1
    $region12: #{cnn_pathmnist_forward.6} parent=5 // pred_fallthru
      _
    %p74 = scmp.lt.s32.totalorder %s7, 2
    // Predicated region
    $region13: #{cnn_pathmnist_forward.6} parent=5 // pred_check
      %p75 = pneg %p74
    $region14: #{cnn_pathmnist_forward.6} parent=5 // pred_check_branch
      %77 = sbr.rel (%p75) target = $region16
    $region15: #{cnn_pathmnist_forward.6} parent=5 // pred_region
      // Predicated region
      $region17: #{cnn_pathmnist_forward.6} parent=15 // pred_check
        %p78 = pneg %p27
      $region18: #{cnn_pathmnist_forward.6} parent=15 // pred_check_branch
        %80 = sbr.rel (%p78) target = $region20
      $region19: #{cnn_pathmnist_forward.6} parent=15 // pred_region
        %p81 = scmp.lt.s32.totalorder %s7, 1
        %s82 = scalar_select %p81, %s7, 1
        %s83 = smul.addr %s82, 72
        %s84 = smul.addr %s83, 8
        %s85 = scalar_lea.vmem %s0, %s84
      $region20: #{cnn_pathmnist_forward.6} parent=15 // pred_fallthru
        _
    $region16: #{cnn_pathmnist_forward.6} parent=5 // pred_fallthru
      _
    %p86 = scmp.le.s32.totalorder 1, %s7
    %p87 = scmp.lt.s32.totalorder %s7, 3
    %p88 = pnand %p86, %p87
    %p89 = pneg %p88
    // Predicated region
    $region21: #{cnn_pathmnist_forward.6} parent=5 // pred_check
      _
    $region22: #{cnn_pathmnist_forward.6} parent=5 // pred_check_branch
      %91 = sbr.rel (%p88) target = $region24
    $region23: #{cnn_pathmnist_forward.6} parent=5 // pred_region
      %s92 = ssub.s32 %s7, 1
      %p93 = scmp.lt.s32.totalorder %s12, 1
      %s94 = scalar_select %p93, %s12, 1
      %s95 = smul.addr %s94, 72
      %s96 = smul.addr %s95, 8
      %s97 = scalar_lea.vmem %s0, %s96
      %p98 = pneg %p33
      %p99 = pneg %p30
      %p100 = pneg %p59
      %p101 = pneg %p56
      %p102 = scmp.lt.s32.totalorder %s12, 1
      %s103 = scalar_select %p102, %s12, 1
      %s104 = smul.addr %s103, 69
      %s105 = smul.addr %s104, 8
      %s106 = scalar_lea.vmem %s1, %s105
      %p107 = scmp.lt.s32.totalorder %s12, 1
      %s108 = scalar_select %p107, %s12, 1
      %s109 = smul.addr %s108, 72
      %s110 = smul.addr %s109, 8
      %s111 = scalar_lea.vmem %s0, %s110
      %p112 = scmp.lt.s32.totalorder %s12, 1
      %s113 = scalar_select %p112, %s12, 1
      %s114 = smul.addr %s113, 69
      %s115 = smul.addr %s114, 8
      %s116 = scalar_lea.vmem %s1, %s115
      %v117 = vld [vmem:[%s111] sm:$0xff]
      %v118 = vld [vmem:[%s111 + $0x8] sm:$0xff]
      %v119 = vld [vmem:[%s111 + $0x10] sm:$0xff]
      %v120 = vld [vmem:[%s111 + $0x18] sm:$0xff]
      %v121 = vld [vmem:[%s111 + $0x20] sm:$0xff]
      %v122 = vld [vmem:[%s111 + $0x28] sm:$0xff]
      %v123 = vld [vmem:[%s111 + $0x30] sm:$0xff]
      %v124 = vld [vmem:[%s111 + $0x38] sm:$0xff]
      %v125 = vld [vmem:[%s111 + $0x40] sm:$0xff]
      %v126 = vld [vmem:[%s111 + $0x48] sm:$0xff]
      %v127 = vld [vmem:[%s111 + $0x50] sm:$0xff]
      %v128 = vld [vmem:[%s111 + $0x58] sm:$0xff]
      %v129 = vld [vmem:[%s111 + $0x60] sm:$0xff]
      %v130 = vld [vmem:[%s111 + $0x68] sm:$0xff]
      %v131 = vld [vmem:[%s111 + $0x70] sm:$0xff]
      %v132 = vld [vmem:[%s111 + $0x78] sm:$0xff]
      %v133 = vld [vmem:[%s111 + $0x80] sm:$0xff]
      %v134 = vld [vmem:[%s111 + $0x88] sm:$0xff]
      %v135 = vld [vmem:[%s111 + $0x90] sm:$0xff]
      %v136 = vld [vmem:[%s111 + $0x98] sm:$0xff]
      %v137 = vld [vmem:[%s111 + $0xa0] sm:$0xff]
      %v138 = vld [vmem:[%s111 + $0xa8] sm:$0xff]
      %v139 = vld [vmem:[%s111 + $0xb0] sm:$0xff]
      %v140 = vld [vmem:[%s111 + $0xb8] sm:$0xff]
      %v141 = vld [vmem:[%s111 + $0xc0] sm:$0xff]
      %v142 = vld [vmem:[%s111 + $0xc8] sm:$0xff]
      %v143 = vld [vmem:[%s111 + $0xd0] sm:$0xff]
      %v144 = vld [vmem:[%s111 + $0xd8] sm:$0xff]
      %v145 = vld [vmem:[%s111 + $0xe0] sm:$0xff]
      %v146 = vld [vmem:[%s111 + $0xe8] sm:$0xff]
      %v147 = vld [vmem:[%s111 + $0xf0] sm:$0xff]
      %v148 = vld [vmem:[%s111 + $0xf8] sm:$0xff]
      %v149 = vld [vmem:[%s111 + $0x100] sm:$0xff]
      %v150 = vld [vmem:[%s111 + $0x108] sm:$0xff]
      %v151 = vld [vmem:[%s111 + $0x110] sm:$0xff]
      %v152 = vld [vmem:[%s111 + $0x118] sm:$0xff]
      %v153 = vld [vmem:[%s111 + $0x120] sm:$0xff]
      %v154 = vld [vmem:[%s111 + $0x128] sm:$0xff]
      %v155 = vld [vmem:[%s111 + $0x130] sm:$0xff]
      %v156 = vld [vmem:[%s111 + $0x138] sm:$0xff]
      %v157 = vld [vmem:[%s111 + $0x140] sm:$0xff]
      %v158 = vld [vmem:[%s111 + $0x148] sm:$0xff]
      %v159 = vld [vmem:[%s111 + $0x150] sm:$0xff]
      %v160 = vld [vmem:[%s111 + $0x158] sm:$0xff]
      %v161 = vld [vmem:[%s111 + $0x160] sm:$0xff]
      %v162 = vld [vmem:[%s111 + $0x168] sm:$0xff]
      %v163 = vld [vmem:[%s111 + $0x170] sm:$0xff]
      %v164 = vld [vmem:[%s111 + $0x178] sm:$0xff]
      %v165 = vld [vmem:[%s111 + $0x180] sm:$0xff]
      %v166 = vld [vmem:[%s111 + $0x188] sm:$0xff]
      %v167 = vld [vmem:[%s111 + $0x190] sm:$0xff]
      %v168 = vld [vmem:[%s111 + $0x198] sm:$0xff]
      %v169 = vld [vmem:[%s111 + $0x1a0] sm:$0xff]
      %v170 = vld [vmem:[%s111 + $0x1a8] sm:$0xff]
      %v171 = vld [vmem:[%s111 + $0x1b0] sm:$0xff]
      %v172 = vld [vmem:[%s111 + $0x1b8] sm:$0xff]
      %v173 = vld [vmem:[%s111 + $0x1c0] sm:$0xff]
      %v174 = vld [vmem:[%s111 + $0x1c8] sm:$0xff]
      %v175 = vld [vmem:[%s111 + $0x1d0] sm:$0xff]
      %v176 = vld [vmem:[%s111 + $0x1d8] sm:$0xff]
      %v177 = vld [vmem:[%s111 + $0x1e0] sm:$0xff]
      %v178 = vld [vmem:[%s111 + $0x1e8] sm:$0xff]
      %v179 = vld [vmem:[%s111 + $0x1f0] sm:$0xff]
      %v180 = vld [vmem:[%s111 + $0x1f8] sm:$0xff]
      %v181 = vld [vmem:[%s111 + $0x200] sm:$0xff]
      %v182 = vld [vmem:[%s111 + $0x208] sm:$0xff]
      %v183 = vld [vmem:[%s111 + $0x210] sm:$0xff]
      %v184 = vld [vmem:[%s111 + $0x218] sm:$0xff]
      %v185 = vld [vmem:[%s111 + $0x220] sm:$0xff]
      %v186 = vld [vmem:[%s111 + $0x228] sm:$0xff]
      %v187 = vld [vmem:[%s111 + $0x230] sm:$0xff]
      %v188 = vld [vmem:[%s111 + $0x238] sm:$0xff]
      %v189 = vmax.f32 %v117, %v120
      %v190 = vmax.f32 %v118, %v121
      %v191 = vmax.f32 %v119, %v122
      %v192 = vmax.f32 %v120, %v123
      %v193 = vmax.f32 %v121, %v124
      %v194 = vmax.f32 %v122, %v125
      %v195 = vmax.f32 %v123, %v126
      %v196 = vmax.f32 %v124, %v127
      %v197 = vmax.f32 %v125, %v128
      %v198 = vmax.f32 %v126, %v129
      %v199 = vmax.f32 %v127, %v130
      %v200 = vmax.f32 %v128, %v131
      %v201 = vmax.f32 %v129, %v132
      %v202 = vmax.f32 %v130, %v133
      %v203 = vmax.f32 %v131, %v134
      %v204 = vmax.f32 %v132, %v135
      %v205 = vmax.f32 %v133, %v136
      %v206 = vmax.f32 %v134, %v137
      %v207 = vmax.f32 %v135, %v138
      %v208 = vmax.f32 %v136, %v139
      %v209 = vmax.f32 %v137, %v140
      %v210 = vmax.f32 %v138, %v141
      %v211 = vmax.f32 %v139, %v142
      %v212 = vmax.f32 %v140, %v143
      %v213 = vmax.f32 %v141, %v144
      %v214 = vmax.f32 %v142, %v145
      %v215 = vmax.f32 %v143, %v146
      %v216 = vmax.f32 %v144, %v147
      %v217 = vmax.f32 %v145, %v148
      %v218 = vmax.f32 %v146, %v149
      %v219 = vmax.f32 %v147, %v150
      %v220 = vmax.f32 %v148, %v151
      %v221 = vmax.f32 %v149, %v152
      %v222 = vmax.f32 %v150, %v153
      %v223 = vmax.f32 %v151, %v154
      %v224 = vmax.f32 %v152, %v155
      %v225 = vmax.f32 %v153, %v156
      %v226 = vmax.f32 %v154, %v157
      %v227 = vmax.f32 %v155, %v158
      %v228 = vmax.f32 %v156, %v159
      %v229 = vmax.f32 %v157, %v160
      %v230 = vmax.f32 %v158, %v161
      %v231 = vmax.f32 %v159, %v162
      %v232 = vmax.f32 %v160, %v163
      %v233 = vmax.f32 %v161, %v164
      %v234 = vmax.f32 %v162, %v165
      %v235 = vmax.f32 %v163, %v166
      %v236 = vmax.f32 %v164, %v167
      %v237 = vmax.f32 %v165, %v168
      %v238 = vmax.f32 %v166, %v169
      %v239 = vmax.f32 %v167, %v170
      %v240 = vmax.f32 %v168, %v171
      %v241 = vmax.f32 %v169, %v172
      %v242 = vmax.f32 %v170, %v173
      %v243 = vmax.f32 %v171, %v174
      %v244 = vmax.f32 %v172, %v175
      %v245 = vmax.f32 %v173, %v176
      %v246 = vmax.f32 %v174, %v177
      %v247 = vmax.f32 %v175, %v178
      %v248 = vmax.f32 %v176, %v179
      %v249 = vmax.f32 %v177, %v180
      %v250 = vmax.f32 %v178, %v181
      %v251 = vmax.f32 %v179, %v182
      %v252 = vmax.f32 %v180, %v183
      %v253 = vmax.f32 %v181, %v184
      %v254 = vmax.f32 %v182, %v185
      %v255 = vmax.f32 %v183, %v186
      %v256 = vmax.f32 %v184, %v187
      %v257 = vmax.f32 %v185, %v188
      %vm327 = vcmask 1046528
      %v328 = vrot.slane %v189, 1
      %v329 = vrot.slane %v190, 1
      %v330 = vsel %vm327, %v328, %v329
      %v331 = vrot.slane %v191, 1
      %v332 = vsel %vm327, %v329, %v331
      %v333 = vrot.slane %v192, 1
      %v334 = vrot.slane %v193, 1
      %v335 = vsel %vm327, %v333, %v334
      %v336 = vrot.slane %v194, 1
      %v337 = vsel %vm327, %v334, %v336
      %v338 = vrot.slane %v195, 1
      %v339 = vrot.slane %v196, 1
      %v340 = vsel %vm327, %v338, %v339
      %v341 = vrot.slane %v197, 1
      %v342 = vsel %vm327, %v339, %v341
      %v343 = vrot.slane %v198, 1
      %v344 = vrot.slane %v199, 1
      %v345 = vsel %vm327, %v343, %v344
      %v346 = vrot.slane %v200, 1
      %v347 = vsel %vm327, %v344, %v346
      %v348 = vrot.slane %v201, 1
      %v349 = vrot.slane %v202, 1
      %v350 = vsel %vm327, %v348, %v349
      %v351 = vrot.slane %v203, 1
      %v352 = vsel %vm327, %v349, %v351
      %v353 = vrot.slane %v204, 1
      %v354 = vrot.slane %v205, 1
      %v355 = vsel %vm327, %v353, %v354
      %v356 = vrot.slane %v206, 1
      %v357 = vsel %vm327, %v354, %v356
      %v358 = vrot.slane %v207, 1
      %v359 = vrot.slane %v208, 1
      %v360 = vsel %vm327, %v358, %v359
      %v361 = vrot.slane %v209, 1
      %v362 = vsel %vm327, %v359, %v361
      %v363 = vrot.slane %v210, 1
      %v364 = vrot.slane %v211, 1
      %v365 = vsel %vm327, %v363, %v364
      %v366 = vrot.slane %v212, 1
      %v367 = vsel %vm327, %v364, %v366
      %v368 = vrot.slane %v213, 1
      %v369 = vrot.slane %v214, 1
      %v370 = vsel %vm327, %v368, %v369
      %v371 = vrot.slane %v215, 1
      %v372 = vsel %vm327, %v369, %v371
      %v373 = vrot.slane %v216, 1
      %v374 = vrot.slane %v217, 1
      %v375 = vsel %vm327, %v373, %v374
      %v376 = vrot.slane %v218, 1
      %v377 = vsel %vm327, %v374, %v376
      %v378 = vrot.slane %v219, 1
      %v379 = vrot.slane %v220, 1
      %v380 = vsel %vm327, %v378, %v379
      %v381 = vrot.slane %v221, 1
      %v382 = vsel %vm327, %v379, %v381
      %v383 = vrot.slane %v222, 1
      %v384 = vrot.slane %v223, 1
      %v385 = vsel %vm327, %v383, %v384
      %v386 = vrot.slane %v224, 1
      %v387 = vsel %vm327, %v384, %v386
      %v388 = vrot.slane %v225, 1
      %v389 = vrot.slane %v226, 1
      %v390 = vsel %vm327, %v388, %v389
      %v391 = vrot.slane %v227, 1
      %v392 = vsel %vm327, %v389, %v391
      %v393 = vrot.slane %v228, 1
      %v394 = vrot.slane %v229, 1
      %v395 = vsel %vm327, %v393, %v394
      %v396 = vrot.slane %v230, 1
      %v397 = vsel %vm327, %v394, %v396
      %v398 = vrot.slane %v231, 1
      %v399 = vrot.slane %v232, 1
      %v400 = vsel %vm327, %v398, %v399
      %v401 = vrot.slane %v233, 1
      %v402 = vsel %vm327, %v399, %v401
      %v403 = vrot.slane %v234, 1
      %v404 = vrot.slane %v235, 1
      %v405 = vsel %vm327, %v403, %v404
      %v406 = vrot.slane %v236, 1
      %v407 = vsel %vm327, %v404, %v406
      %v408 = vrot.slane %v237, 1
      %v409 = vrot.slane %v238, 1
      %v410 = vsel %vm327, %v408, %v409
      %v411 = vrot.slane %v239, 1
      %v412 = vsel %vm327, %v409, %v411
      %v413 = vrot.slane %v240, 1
      %v414 = vrot.slane %v241, 1
      %v415 = vsel %vm327, %v413, %v414
      %v416 = vrot.slane %v242, 1
      %v417 = vsel %vm327, %v414, %v416
      %v418 = vrot.slane %v243, 1
      %v419 = vrot.slane %v244, 1
      %v420 = vsel %vm327, %v418, %v419
      %v421 = vrot.slane %v245, 1
      %v422 = vsel %vm327, %v419, %v421
      %v423 = vrot.slane %v246, 1
      %v424 = vrot.slane %v247, 1
      %v425 = vsel %vm327, %v423, %v424
      %v426 = vrot.slane %v248, 1
      %v427 = vsel %vm327, %v424, %v426
      %v428 = vrot.slane %v249, 1
      %v429 = vrot.slane %v250, 1
      %v430 = vsel %vm327, %v428, %v429
      %v431 = vrot.slane %v251, 1
      %v432 = vsel %vm327, %v429, %v431
      %v433 = vrot.slane %v252, 1
      %v434 = vrot.slane %v253, 1
      %v435 = vsel %vm327, %v433, %v434
      %v436 = vrot.slane %v254, 1
      %v437 = vsel %vm327, %v434, %v436
      %v438 = vrot.slane %v255, 1
      %v439 = vrot.slane %v256, 1
      %v440 = vsel %vm327, %v438, %v439
      %v441 = vrot.slane %v257, 1
      %v442 = vsel %vm327, %v439, %v441
      %v512 = vmax.f32 %v189, %v330
      %v513 = vmax.f32 %v190, %v332
      %v514 = vmax.f32 %v191, %v331
      %v515 = vmax.f32 %v192, %v335
      %v516 = vmax.f32 %v193, %v337
      %v517 = vmax.f32 %v194, %v336
      %v518 = vmax.f32 %v195, %v340
      %v519 = vmax.f32 %v196, %v342
      %v520 = vmax.f32 %v197, %v341
      %v521 = vmax.f32 %v198, %v345
      %v522 = vmax.f32 %v199, %v347
      %v523 = vmax.f32 %v200, %v346
      %v524 = vmax.f32 %v201, %v350
      %v525 = vmax.f32 %v202, %v352
      %v526 = vmax.f32 %v203, %v351
      %v527 = vmax.f32 %v204, %v355
      %v528 = vmax.f32 %v205, %v357
      %v529 = vmax.f32 %v206, %v356
      %v530 = vmax.f32 %v207, %v360
      %v531 = vmax.f32 %v208, %v362
      %v532 = vmax.f32 %v209, %v361
      %v533 = vmax.f32 %v210, %v365
      %v534 = vmax.f32 %v211, %v367
      %v535 = vmax.f32 %v212, %v366
      %v536 = vmax.f32 %v213, %v370
      %v537 = vmax.f32 %v214, %v372
      %v538 = vmax.f32 %v215, %v371
      %v539 = vmax.f32 %v216, %v375
      %v540 = vmax.f32 %v217, %v377
      %v541 = vmax.f32 %v218, %v376
      %v542 = vmax.f32 %v219, %v380
      %v543 = vmax.f32 %v220, %v382
      %v544 = vmax.f32 %v221, %v381
      %v545 = vmax.f32 %v222, %v385
      %v546 = vmax.f32 %v223, %v387
      %v547 = vmax.f32 %v224, %v386
      %v548 = vmax.f32 %v225, %v390
      %v549 = vmax.f32 %v226, %v392
      %v550 = vmax.f32 %v227, %v391
      %v551 = vmax.f32 %v228, %v395
      %v552 = vmax.f32 %v229, %v397
      %v553 = vmax.f32 %v230, %v396
      %v554 = vmax.f32 %v231, %v400
      %v555 = vmax.f32 %v232, %v402
      %v556 = vmax.f32 %v233, %v401
      %v557 = vmax.f32 %v234, %v405
      %v558 = vmax.f32 %v235, %v407
      %v559 = vmax.f32 %v236, %v406
      %v560 = vmax.f32 %v237, %v410
      %v561 = vmax.f32 %v238, %v412
      %v562 = vmax.f32 %v239, %v411
      %v563 = vmax.f32 %v240, %v415
      %v564 = vmax.f32 %v241, %v417
      %v565 = vmax.f32 %v242, %v416
      %v566 = vmax.f32 %v243, %v420
      %v567 = vmax.f32 %v244, %v422
      %v568 = vmax.f32 %v245, %v421
      %v569 = vmax.f32 %v246, %v425
      %v570 = vmax.f32 %v247, %v427
      %v571 = vmax.f32 %v248, %v426
      %v572 = vmax.f32 %v249, %v430
      %v573 = vmax.f32 %v250, %v432
      %v574 = vmax.f32 %v251, %v431
      %v575 = vmax.f32 %v252, %v435
      %v576 = vmax.f32 %v253, %v437
      %v577 = vmax.f32 %v254, %v436
      %v578 = vmax.f32 %v255, %v440
      %v579 = vmax.f32 %v256, %v442
      %v580 = vmax.f32 %v257, %v441
      %vm581 = vcmask 523264
      %582 = vst.msk [vmem:[%s116] sm:$0xff] %vm581, %v512
      %583 = vst.msk [vmem:[%s116 + $0x8] sm:$0xff] %vm581, %v513
      %vm584 = vcmask 522240
      %585 = vst.msk [vmem:[%s116 + $0x10] sm:$0x7f] %vm584, %v514
      %586 = vst.msk [vmem:[%s116 + $0x18] sm:$0xff] %vm581, %v515
      %587 = vst.msk [vmem:[%s116 + $0x20] sm:$0xff] %vm581, %v516
      %588 = vst.msk [vmem:[%s116 + $0x28] sm:$0x7f] %vm584, %v517
      %589 = vst.msk [vmem:[%s116 + $0x30] sm:$0xff] %vm581, %v518
      %590 = vst.msk [vmem:[%s116 + $0x38] sm:$0xff] %vm581, %v519
      %591 = vst.msk [vmem:[%s116 + $0x40] sm:$0x7f] %vm584, %v520
      %592 = vst.msk [vmem:[%s116 + $0x48] sm:$0xff] %vm581, %v521
      %593 = vst.msk [vmem:[%s116 + $0x50] sm:$0xff] %vm581, %v522
      %594 = vst.msk [vmem:[%s116 + $0x58] sm:$0x7f] %vm584, %v523
      %595 = vst.msk [vmem:[%s116 + $0x60] sm:$0xff] %vm581, %v524
      %596 = vst.msk [vmem:[%s116 + $0x68] sm:$0xff] %vm581, %v525
      %597 = vst.msk [vmem:[%s116 + $0x70] sm:$0x7f] %vm584, %v526
      %598 = vst.msk [vmem:[%s116 + $0x78] sm:$0xff] %vm581, %v527
      %599 = vst.msk [vmem:[%s116 + $0x80] sm:$0xff] %vm581, %v528
      %600 = vst.msk [vmem:[%s116 + $0x88] sm:$0x7f] %vm584, %v529
      %601 = vst.msk [vmem:[%s116 + $0x90] sm:$0xff] %vm581, %v530
      %602 = vst.msk [vmem:[%s116 + $0x98] sm:$0xff] %vm581, %v531
      %603 = vst.msk [vmem:[%s116 + $0xa0] sm:$0x7f] %vm584, %v532
      %604 = vst.msk [vmem:[%s116 + $0xa8] sm:$0xff] %vm581, %v533
      %605 = vst.msk [vmem:[%s116 + $0xb0] sm:$0xff] %vm581, %v534
      %606 = vst.msk [vmem:[%s116 + $0xb8] sm:$0x7f] %vm584, %v535
      %607 = vst.msk [vmem:[%s116 + $0xc0] sm:$0xff] %vm581, %v536
      %608 = vst.msk [vmem:[%s116 + $0xc8] sm:$0xff] %vm581, %v537
      %609 = vst.msk [vmem:[%s116 + $0xd0] sm:$0x7f] %vm584, %v538
      %610 = vst.msk [vmem:[%s116 + $0xd8] sm:$0xff] %vm581, %v539
      %611 = vst.msk [vmem:[%s116 + $0xe0] sm:$0xff] %vm581, %v540
      %612 = vst.msk [vmem:[%s116 + $0xe8] sm:$0x7f] %vm584, %v541
      %613 = vst.msk [vmem:[%s116 + $0xf0] sm:$0xff] %vm581, %v542
      %614 = vst.msk [vmem:[%s116 + $0xf8] sm:$0xff] %vm581, %v543
      %615 = vst.msk [vmem:[%s116 + $0x100] sm:$0x7f] %vm584, %v544
      %616 = vst.msk [vmem:[%s116 + $0x108] sm:$0xff] %vm581, %v545
      %617 = vst.msk [vmem:[%s116 + $0x110] sm:$0xff] %vm581, %v546
      %618 = vst.msk [vmem:[%s116 + $0x118] sm:$0x7f] %vm584, %v547
      %619 = vst.msk [vmem:[%s116 + $0x120] sm:$0xff] %vm581, %v548
      %620 = vst.msk [vmem:[%s116 + $0x128] sm:$0xff] %vm581, %v549
      %621 = vst.msk [vmem:[%s116 + $0x130] sm:$0x7f] %vm584, %v550
      %622 = vst.msk [vmem:[%s116 + $0x138] sm:$0xff] %vm581, %v551
      %623 = vst.msk [vmem:[%s116 + $0x140] sm:$0xff] %vm581, %v552
      %624 = vst.msk [vmem:[%s116 + $0x148] sm:$0x7f] %vm584, %v553
      %625 = vst.msk [vmem:[%s116 + $0x150] sm:$0xff] %vm581, %v554
      %626 = vst.msk [vmem:[%s116 + $0x158] sm:$0xff] %vm581, %v555
      %627 = vst.msk [vmem:[%s116 + $0x160] sm:$0x7f] %vm584, %v556
      %628 = vst.msk [vmem:[%s116 + $0x168] sm:$0xff] %vm581, %v557
      %629 = vst.msk [vmem:[%s116 + $0x170] sm:$0xff] %vm581, %v558
      %630 = vst.msk [vmem:[%s116 + $0x178] sm:$0x7f] %vm584, %v559
      %631 = vst.msk [vmem:[%s116 + $0x180] sm:$0xff] %vm581, %v560
      %632 = vst.msk [vmem:[%s116 + $0x188] sm:$0xff] %vm581, %v561
      %633 = vst.msk [vmem:[%s116 + $0x190] sm:$0x7f] %vm584, %v562
      %634 = vst.msk [vmem:[%s116 + $0x198] sm:$0xff] %vm581, %v563
      %635 = vst.msk [vmem:[%s116 + $0x1a0] sm:$0xff] %vm581, %v564
      %636 = vst.msk [vmem:[%s116 + $0x1a8] sm:$0x7f] %vm584, %v565
      %637 = vst.msk [vmem:[%s116 + $0x1b0] sm:$0xff] %vm581, %v566
      %638 = vst.msk [vmem:[%s116 + $0x1b8] sm:$0xff] %vm581, %v567
      %639 = vst.msk [vmem:[%s116 + $0x1c0] sm:$0x7f] %vm584, %v568
      %640 = vst.msk [vmem:[%s116 + $0x1c8] sm:$0xff] %vm581, %v569
      %641 = vst.msk [vmem:[%s116 + $0x1d0] sm:$0xff] %vm581, %v570
      %642 = vst.msk [vmem:[%s116 + $0x1d8] sm:$0x7f] %vm584, %v571
      %643 = vst.msk [vmem:[%s116 + $0x1e0] sm:$0xff] %vm581, %v572
      %644 = vst.msk [vmem:[%s116 + $0x1e8] sm:$0xff] %vm581, %v573
      %645 = vst.msk [vmem:[%s116 + $0x1f0] sm:$0x7f] %vm584, %v574
      %646 = vst.msk [vmem:[%s116 + $0x1f8] sm:$0xff] %vm581, %v575
      %647 = vst.msk [vmem:[%s116 + $0x200] sm:$0xff] %vm581, %v576
      %648 = vst.msk [vmem:[%s116 + $0x208] sm:$0x7f] %vm584, %v577
      %649 = vst.msk [vmem:[%s116 + $0x210] sm:$0xff] %vm581, %v578
      %650 = vst.msk [vmem:[%s116 + $0x218] sm:$0xff] %vm581, %v579
      %651 = vst.msk [vmem:[%s116 + $0x220] sm:$0x7f] %vm584, %v580
      %p652 = scmp.lt.s32.totalorder %s12, 1
      %s653 = scalar_select %p652, %s12, 1
      %s654 = smul.addr %s653, 69
      %s655 = smul.addr %s654, 8
      %s656 = scalar_lea.vmem %s1, %s655
      // Predicated region
      $region25: #{cnn_pathmnist_forward.6} parent=23 // pred_check
        %p657 = pneg %p56
      $region26: #{cnn_pathmnist_forward.6} parent=23 // pred_check_branch
        %659 = sbr.rel (%p657) target = $region28
      $region27: #{cnn_pathmnist_forward.6} parent=23 // pred_region
        _
      $region28: #{cnn_pathmnist_forward.6} parent=23 // pred_fallthru
        _
    $region24: #{cnn_pathmnist_forward.6} parent=5 // pred_fallthru
      _
    %p660 = scmp.le.s32.totalorder 2, %s7
    // Predicated region
    $region29: #{cnn_pathmnist_forward.6} parent=5 // pred_check
      %p661 = pneg %p660
    $region30: #{cnn_pathmnist_forward.6} parent=5 // pred_check_branch
      %663 = sbr.rel (%p661) target = $region32
    $region31: #{cnn_pathmnist_forward.6} parent=5 // pred_region
      %s664 = ssub.s32 %s7, 2
      // Predicated region
      $region33: #{cnn_pathmnist_forward.6} parent=31 // pred_check
        %p665 = pneg %p62
      $region34: #{cnn_pathmnist_forward.6} parent=31 // pred_check_branch
        %667 = sbr.rel (%p665) target = $region36
      $region35: #{cnn_pathmnist_forward.6} parent=31 // pred_region
        %p668 = scmp.lt.s32.totalorder %s13, 1
        %s669 = scalar_select %p668, %s13, 1
        %s670 = smul.addr %s669, 69
        %s671 = smul.addr %s670, 8
        %s672 = scalar_lea.vmem %s1, %s671
      $region36: #{cnn_pathmnist_forward.6} parent=31 // pred_fallthru
        _
    $region32: #{cnn_pathmnist_forward.6} parent=5 // pred_fallthru
      _
  $region6: #{cnn_pathmnist_forward.6} parent=0 // loop_footer
    %s11 = sadd.s32 1, %s7
  $region7: #{cnn_pathmnist_forward.6} parent=0 // loop_footer_branch
    %6 = sbr.rel target = $region3
  $region8: #{cnn_pathmnist_forward.6} parent=0 // loop_exit
    _

// kernel: cnn_pathmnist_forward.5
$region0: #{cnn_pathmnist_forward.5}
  #allocation0 [shape = 'u32[]', space=smem, size = 0x4, offset = 0x4, fixed_abs, tag = 'smem constant byte address 0x4 - core index']
  #allocation1 [shape = 'u32[144,128]{1,0:T(1,128)}', space=vmem, size = 0x12000, scoped, tag = 'internal scratch']
  %s0 = inlined_call_operand.vmem [shape: f32[1152,288], index: 0, kind: input, shape index: {}]
  %s1 = inlined_call_operand.vmem [shape: f32[288,128], index: 1, kind: input, shape index: {}]
  %s2 = inlined_call_operand.vmem [shape: f32[1,128], index: 2, kind: input, shape index: {}]
  %s3 = inlined_call_operand.vmem [shape: f32[1152,128], index: 3, kind: output, shape index: {}]
  %s4 = sld [smem:[#allocation0]]
  $region45: #{cnn_pathmnist_forward.5} parent=0
    _
  %s6 = ssub.s32 1, %s4
  %s7 = scalar_select 0, %s6, %s4
  loop: start=0, step=1, limit=11
  $region2: #{cnn_pathmnist_forward.5} parent=0 // loop_pre_header
    _
  $region3: #{cnn_pathmnist_forward.5} parent=0 // loop_header
    %s9 = sphi 0, %s13
    %p10 = scmp.ge.s32.totalorder %s9, 11
    %s16 = sphi 0, %s28
    %s17 = sphi 0, %s24
    %s18 = sphi 0, %s16
    %s19 = sphi 0, %s17
    %s20 = sphi 0, %s18
    %s21 = sphi 0, %s19
    %s31 = sphi 0, %s33
    %s34 = sphi 0, %s31
    %s35 = sphi 0, %s34
    %s51 = sphi 0, %s35
    %s57 = sphi 0, %s59
    %s60 = sphi 0, %s57
    %s61 = sphi 0, %s60
    %s77 = sphi 0, %s61
    %s83 = sphi 0, %s85
    %s86 = sphi 0, %s83
    %s87 = sphi 0, %s86
    %s103 = sphi 0, %s87
    %s111 = sphi 0, %s113
    %s114 = sphi 0, %s111
    %s115 = sphi 0, %s114
    %s131 = sphi 0, %s115
  $region4: #{cnn_pathmnist_forward.5} parent=0 // loop_header_branch
    %12 = sbr.rel (%p10) target = $region8
  $region5: #{cnn_pathmnist_forward.5} parent=0 // loop_body
    %s14 = ssub.s32 %s9, 1
    %s15 = ssub.s32 %s9, 2
    %s22 = sadd.s32 1, %s17
    %p23 = scmp.ge.s32.totalorder %s22, 1
    %s24 = scalar_select %p23, 0, %s22
    %s25 = sadd.s32 1, %s16
    %s26 = scalar_select %p23, %s25, %s16
    %p27 = scmp.ge.s32.totalorder %s26, 9
    %s28 = scalar_select %p27, 0, %s26
    %s29 = ssub.s32 %s16, %s28
    %p30 = scmp.eq.s32.totalorder %s29, 0
    %s32 = sadd.s32 %s31, 1
    %s33 = scalar_select %p30, %s31, %s32
    %p36 = pneg %p30
    %p37 = scmp.eq.s32.totalorder %s9, 8
    %p38 = por %p36, %p37
    %p39 = scmp.ne.s32.totalorder %s31, %s34
    %p40 = scmp.eq.s32.totalorder %s9, 0
    %p41 = por %p39, %p40
    %p42 = scmp.ne.s32.totalorder %s31, %s34
    %p43 = scmp.eq.s32.totalorder %s14, 8
    %p44 = por %p42, %p43
    %p45 = scmp.ne.s32.totalorder %s34, %s35
    %p46 = scmp.eq.s32.totalorder %s14, 0
    %p47 = por %p45, %p46
    %p48 = scmp.ne.s32.totalorder %s34, %s35
    %p49 = scmp.eq.s32.totalorder %s15, 8
    %p50 = por %p48, %p49
    %p52 = scmp.ne.s32.totalorder %s35, %s51
    %p53 = scmp.eq.s32.totalorder %s15, 0
    %p54 = por %p52, %p53
    %s55 = ssub.s32 %s17, %s24
    %p56 = scmp.eq.s32.totalorder %s55, 0
    %s58 = sadd.s32 %s57, 1
    %s59 = scalar_select %p56, %s57, %s58
    %p62 = pneg %p56
    %p63 = scmp.eq.s32.totalorder %s9, 8
    %p64 = por %p62, %p63
    %p65 = scmp.ne.s32.totalorder %s57, %s60
    %p66 = scmp.eq.s32.totalorder %s9, 0
    %p67 = por %p65, %p66
    %p68 = scmp.ne.s32.totalorder %s57, %s60
    %p69 = scmp.eq.s32.totalorder %s14, 8
    %p70 = por %p68, %p69
    %p71 = scmp.ne.s32.totalorder %s60, %s61
    %p72 = scmp.eq.s32.totalorder %s14, 0
    %p73 = por %p71, %p72
    %p74 = scmp.ne.s32.totalorder %s60, %s61
    %p75 = scmp.eq.s32.totalorder %s15, 8
    %p76 = por %p74, %p75
    %p78 = scmp.ne.s32.totalorder %s61, %s77
    %p79 = scmp.eq.s32.totalorder %s15, 0
    %p80 = por %p78, %p79
    %s81 = ssub.s32 %s17, %s24
    %p82 = scmp.eq.s32.totalorder %s81, 0
    %s84 = sadd.s32 %s83, 1
    %s85 = scalar_select %p82, %s83, %s84
    %p88 = pneg %p82
    %p89 = scmp.eq.s32.totalorder %s9, 8
    %p90 = por %p88, %p89
    %p91 = scmp.ne.s32.totalorder %s83, %s86
    %p92 = scmp.eq.s32.totalorder %s9, 0
    %p93 = por %p91, %p92
    %p94 = scmp.ne.s32.totalorder %s83, %s86
    %p95 = scmp.eq.s32.totalorder %s14, 8
    %p96 = por %p94, %p95
    %p97 = scmp.ne.s32.totalorder %s86, %s87
    %p98 = scmp.eq.s32.totalorder %s14, 0
    %p99 = por %p97, %p98
    %p100 = scmp.ne.s32.totalorder %s86, %s87
    %p101 = scmp.eq.s32.totalorder %s15, 8
    %p102 = por %p100, %p101
    %p104 = scmp.ne.s32.totalorder %s87, %s103
    %p105 = scmp.eq.s32.totalorder %s15, 0
    %p106 = por %p104, %p105
    %s107 = ssub.s32 %s16, %s28
    %s108 = ssub.s32 %s17, %s24
    %s109 = sor.u32 %s107, %s108
    %p110 = scmp.eq.s32.totalorder %s109, 0
    %s112 = sadd.s32 %s111, 1
    %s113 = scalar_select %p110, %s111, %s112
    %p116 = pneg %p110
    %p117 = scmp.eq.s32.totalorder %s9, 8
    %p118 = por %p116, %p117
    %p119 = scmp.ne.s32.totalorder %s111, %s114
    %p120 = scmp.eq.s32.totalorder %s9, 0
    %p121 = por %p119, %p120
    %p122 = scmp.ne.s32.totalorder %s111, %s114
    %p123 = scmp.eq.s32.totalorder %s14, 8
    %p124 = por %p122, %p123
    %p125 = scmp.ne.s32.totalorder %s114, %s115
    %p126 = scmp.eq.s32.totalorder %s14, 0
    %p127 = por %p125, %p126
    %p128 = scmp.ne.s32.totalorder %s114, %s115
    %p129 = scmp.eq.s32.totalorder %s15, 8
    %p130 = por %p128, %p129
    %p132 = scmp.ne.s32.totalorder %s115, %s131
    %p133 = scmp.eq.s32.totalorder %s15, 0
    %p134 = por %p132, %p133
    %p135 = scmp.le.s32.totalorder 1, %s9
    %p136 = scmp.lt.s32.totalorder %s9, 10
    %p137 = pnand %p135, %p136
    %p138 = pneg %p137
    // Predicated region
    $region9: #{cnn_pathmnist_forward.5} parent=5 // pred_check
      _
    $region10: #{cnn_pathmnist_forward.5} parent=5 // pred_check_branch
      %140 = sbr.rel (%p137) target = $region12
    $region11: #{cnn_pathmnist_forward.5} parent=5 // pred_region
      %s141 = ssub.s32 %s9, 1
      // Predicated region
      $region13: #{cnn_pathmnist_forward.5} parent=11 // pred_check
        %p142 = pneg %p73
      $region14: #{cnn_pathmnist_forward.5} parent=11 // pred_check_branch
        %144 = sbr.rel (%p142) target = $region16
      $region15: #{cnn_pathmnist_forward.5} parent=11 // pred_region
        %p145 = scmp.lt.s32.totalorder %s19, 0
        %s146 = scalar_select %p145, %s19, 0
        %s147 = smul.addr %s146, 8
        %s148 = scalar_lea.vmem %s1, %s147
      $region16: #{cnn_pathmnist_forward.5} parent=11 // pred_fallthru
        _
      // Predicated region
      $region17: #{cnn_pathmnist_forward.5} parent=11 // pred_check
        %p149 = pneg %p99
      $region18: #{cnn_pathmnist_forward.5} parent=11 // pred_check_branch
        %151 = sbr.rel (%p149) target = $region20
      $region19: #{cnn_pathmnist_forward.5} parent=11 // pred_region
        %p152 = scmp.lt.s32.totalorder %s19, 0
        %s153 = scalar_select %p152, %s19, 0
        %s154 = scalar_lea.vmem %s2, %s153
      $region20: #{cnn_pathmnist_forward.5} parent=11 // pred_fallthru
        _
    $region12: #{cnn_pathmnist_forward.5} parent=5 // pred_fallthru
      _
    %p155 = scmp.lt.s32.totalorder %s9, 9
    // Predicated region
    $region21: #{cnn_pathmnist_forward.5} parent=5 // pred_check
      %p156 = pneg %p155
    $region22: #{cnn_pathmnist_forward.5} parent=5 // pred_check_branch
      %158 = sbr.rel (%p156) target = $region24
    $region23: #{cnn_pathmnist_forward.5} parent=5 // pred_region
      // Predicated region
      $region25: #{cnn_pathmnist_forward.5} parent=23 // pred_check
        %p159 = pneg %p41
      $region26: #{cnn_pathmnist_forward.5} parent=23 // pred_check_branch
        %161 = sbr.rel (%p159) target = $region28
      $region27: #{cnn_pathmnist_forward.5} parent=23 // pred_region
        %s162 = smul.u32 16, %s16
        %p163 = scmp.lt.s32.totalorder %s162, 143
        %s164 = scalar_select %p163, %s162, 143
        %s165 = smul.addr %s164, 3
        %s166 = smul.addr %s165, 8
        %s167 = scalar_lea.vmem %s0, %s166
        %s168 = smul.u32 16, %s16
      $region28: #{cnn_pathmnist_forward.5} parent=23 // pred_fallthru
        _
    $region24: #{cnn_pathmnist_forward.5} parent=5 // pred_fallthru
      _
    %p169 = scmp.le.s32.totalorder 1, %s9
    %p170 = scmp.lt.s32.totalorder %s9, 10
    %p171 = pnand %p169, %p170
    %p172 = pneg %p171
    // Predicated region
    $region29: #{cnn_pathmnist_forward.5} parent=5 // pred_check
      _
    $region30: #{cnn_pathmnist_forward.5} parent=5 // pred_check_branch
      %174 = sbr.rel (%p171) target = $region32
    $region31: #{cnn_pathmnist_forward.5} parent=5 // pred_region
      %s175 = ssub.s32 %s9, 1
      %s176 = smul.u32 16, %s18
      %p177 = scmp.lt.s32.totalorder %s176, 143
      %s178 = scalar_select %p177, %s176, 143
      %s179 = smul.addr %s178, 3
      %s180 = smul.addr %s179, 8
      %s181 = scalar_lea.vmem %s0, %s180
      %p182 = pneg %p47
      %p183 = pneg %p44
      %p184 = scmp.lt.s32.totalorder %s19, 0
      %s185 = scalar_select %p184, %s19, 0
      %s186 = smul.addr %s185, 8
      %s187 = scalar_lea.vmem %s1, %s186
      %p188 = pneg %p73
      %p189 = pneg %p70
      %p190 = scmp.lt.s32.totalorder %s19, 0
      %s191 = scalar_select %p190, %s19, 0
      %s192 = scalar_lea.vmem %s2, %s191
      %p193 = pneg %p99
      %p194 = pneg %p96
      %p195 = pneg %p127
      %p196 = pneg %p124
      %s197 = smul.u32 16, %s18
      %p198 = scmp.lt.s32.totalorder %s197, 143
      %s199 = scalar_select %p198, %s197, 143
      %p200 = scmp.lt.s32.totalorder %s19, 0
      %s201 = scalar_select %p200, %s19, 0
      %s202 = sadd.s32 %s201, %s199
      %s203 = smul.addr %s202, 8
      %s204 = scalar_lea.vmem %s3, %s203
      %s205 = smul.u32 16, %s18
      %p206 = scmp.lt.s32.totalorder %s205, 143
      %s207 = scalar_select %p206, %s205, 143
      %s208 = smul.addr %s207, 3
      %s209 = smul.addr %s208, 8
      %s210 = scalar_lea.vmem %s0, %s209
      %s211 = smul.u32 16, %s18
      %p212 = scmp.lt.s32.totalorder %s19, 0
      %s213 = scalar_select %p212, %s19, 0
      %s214 = smul.addr %s213, 8
      %s215 = scalar_lea.vmem %s1, %s214
      %p216 = scmp.lt.s32.totalorder %s19, 0
      %s217 = scalar_select %p216, %s19, 0
      %s218 = scalar_lea.vmem %s2, %s217
      %s219 = smul.u32 16, %s18
      %p220 = scmp.lt.s32.totalorder %s219, 143
      %s221 = scalar_select %p220, %s219, 143
      %p222 = scmp.lt.s32.totalorder %s19, 0
      %s223 = scalar_select %p222, %s19, 0
      %s224 = sadd.s32 %s223, %s221
      %s225 = smul.addr %s224, 8
      %s226 = scalar_lea.vmem %s3, %s225
      %s227 = smul.u32 16, %s18
      %v228 = vld [vmem:[%s210] sm:$0xff]
      %v229 = vld [vmem:[%s210 + $0x8] sm:$0xff]
      %v230 = vld [vmem:[%s210 + $0x10] sm:$0xff]
      %v231 = vld [vmem:[%s210 + $0x18] sm:$0xff]
      %v232 = vld [vmem:[%s210 + $0x20] sm:$0xff]
      %v233 = vld [vmem:[%s210 + $0x28] sm:$0xff]
      %v234 = vld [vmem:[%s210 + $0x30] sm:$0xff]
      %v235 = vld [vmem:[%s210 + $0x38] sm:$0xff]
      %v236 = vld [vmem:[%s210 + $0x40] sm:$0xff]
      %v237 = vld [vmem:[%s210 + $0x48] sm:$0xff]
      %v238 = vld [vmem:[%s210 + $0x50] sm:$0xff]
      %v239 = vld [vmem:[%s210 + $0x58] sm:$0xff]
      %v240 = vld [vmem:[%s210 + $0x60] sm:$0xff]
      %v241 = vld [vmem:[%s210 + $0x68] sm:$0xff]
      %v242 = vld [vmem:[%s210 + $0x70] sm:$0xff]
      %v243 = vld [vmem:[%s210 + $0x78] sm:$0xff]
      %v244 = vld [vmem:[%s210 + $0x80] sm:$0xff]
      %v245 = vld [vmem:[%s210 + $0x88] sm:$0xff]
      %v246 = vld [vmem:[%s210 + $0x90] sm:$0xff]
      %v247 = vld [vmem:[%s210 + $0x98] sm:$0xff]
      %v248 = vld [vmem:[%s210 + $0xa0] sm:$0xff]
      %v249 = vld [vmem:[%s210 + $0xa8] sm:$0xff]
      %v250 = vld [vmem:[%s210 + $0xb0] sm:$0xff]
      %v251 = vld [vmem:[%s210 + $0xb8] sm:$0xff]
      %v252 = vld [vmem:[%s210 + $0xc0] sm:$0xff]
      %v253 = vld [vmem:[%s210 + $0xc8] sm:$0xff]
      %v254 = vld [vmem:[%s210 + $0xd0] sm:$0xff]
      %v255 = vld [vmem:[%s210 + $0xd8] sm:$0xff]
      %v256 = vld [vmem:[%s210 + $0xe0] sm:$0xff]
      %v257 = vld [vmem:[%s210 + $0xe8] sm:$0xff]
      %v258 = vld [vmem:[%s210 + $0xf0] sm:$0xff]
      %v259 = vld [vmem:[%s210 + $0xf8] sm:$0xff]
      %v260 = vld [vmem:[%s210 + $0x100] sm:$0xff]
      %v261 = vld [vmem:[%s210 + $0x108] sm:$0xff]
      %v262 = vld [vmem:[%s210 + $0x110] sm:$0xff]
      %v263 = vld [vmem:[%s210 + $0x118] sm:$0xff]
      %v264 = vld [vmem:[%s210 + $0x120] sm:$0xff]
      %v265 = vld [vmem:[%s210 + $0x128] sm:$0xff]
      %v266 = vld [vmem:[%s210 + $0x130] sm:$0xff]
      %v267 = vld [vmem:[%s210 + $0x138] sm:$0xff]
      %v268 = vld [vmem:[%s210 + $0x140] sm:$0xff]
      %v269 = vld [vmem:[%s210 + $0x148] sm:$0xff]
      %v270 = vld [vmem:[%s210 + $0x150] sm:$0xff]
      %v271 = vld [vmem:[%s210 + $0x158] sm:$0xff]
      %v272 = vld [vmem:[%s210 + $0x160] sm:$0xff]
      %v273 = vld [vmem:[%s210 + $0x168] sm:$0xff]
      %v274 = vld [vmem:[%s210 + $0x170] sm:$0xff]
      %v275 = vld [vmem:[%s210 + $0x178] sm:$0xff]
      %v276 = vld [vmem:[%s215] sm:$0xff]
      %v277 = vld [vmem:[%s215 + $0x8] sm:$0xff]
      %v278 = vld [vmem:[%s215 + $0x10] sm:$0xff]
      %v279 = vld [vmem:[%s215 + $0x18] sm:$0xff]
      %v280 = vld [vmem:[%s215 + $0x20] sm:$0xff]
      %v281 = vld [vmem:[%s215 + $0x28] sm:$0xff]
      %v282 = vld [vmem:[%s215 + $0x30] sm:$0xff]
      %v283 = vld [vmem:[%s215 + $0x38] sm:$0xff]
      %v284 = vld [vmem:[%s215 + $0x40] sm:$0xff]
      %v285 = vld [vmem:[%s215 + $0x48] sm:$0xff]
      %v286 = vld [vmem:[%s215 + $0x50] sm:$0xff]
      %v287 = vld [vmem:[%s215 + $0x58] sm:$0xff]
      %v288 = vld [vmem:[%s215 + $0x60] sm:$0xff]
      %v289 = vld [vmem:[%s215 + $0x68] sm:$0xff]
      %v290 = vld [vmem:[%s215 + $0x70] sm:$0xff]
      %v291 = vld [vmem:[%s215 + $0x78] sm:$0xff]
      %v292 = vld [vmem:[%s215 + $0x80] sm:$0xff]
      %v293 = vld [vmem:[%s215 + $0x88] sm:$0xff]
      %v294 = vld [vmem:[%s215 + $0x90] sm:$0xff]
      %v295 = vld [vmem:[%s215 + $0x98] sm:$0xff]
      %v296 = vld [vmem:[%s215 + $0xa0] sm:$0xff]
      %v297 = vld [vmem:[%s215 + $0xa8] sm:$0xff]
      %v298 = vld [vmem:[%s215 + $0xb0] sm:$0xff]
      %v299 = vld [vmem:[%s215 + $0xb8] sm:$0xff]
      %v300 = vld [vmem:[%s215 + $0xc0] sm:$0xff]
      %v301 = vld [vmem:[%s215 + $0xc8] sm:$0xff]
      %v302 = vld [vmem:[%s215 + $0xd0] sm:$0xff]
      %v303 = vld [vmem:[%s215 + $0xd8] sm:$0xff]
      %v304 = vld [vmem:[%s215 + $0xe0] sm:$0xff]
      %v305 = vld [vmem:[%s215 + $0xe8] sm:$0xff]
      %v306 = vld [vmem:[%s215 + $0xf0] sm:$0xff]
      %v307 = vld [vmem:[%s215 + $0xf8] sm:$0xff]
      %v308 = vld [vmem:[%s215 + $0x100] sm:$0xff]
      %v309 = vld [vmem:[%s215 + $0x108] sm:$0xff]
      %v310 = vld [vmem:[%s215 + $0x110] sm:$0xff]
      %v311 = vld [vmem:[%s215 + $0x118] sm:$0xff]
      %v312 = vld [vmem:[%s218] sm:$0x1]
      %v314 = vlaneseq
      %v315 = vshrl.u32 %v314, 7
      %v316 = vsub.s32 0, %v315
      %v317 = vrot.slane %v312, %v316
      %vm319 = vcmask 261120
      %v321 = vsel %vm319, %v230, 0
      %v324 = vsel %vm319, %v233, 0
      %v327 = vsel %vm319, %v236, 0
      %v330 = vsel %vm319, %v239, 0
      %v333 = vsel %vm319, %v242, 0
      %v336 = vsel %vm319, %v245, 0
      %v339 = vsel %vm319, %v248, 0
      %v342 = vsel %vm319, %v251, 0
      %v345 = vsel %vm319, %v254, 0
      %v348 = vsel %vm319, %v257, 0
      %v351 = vsel %vm319, %v260, 0
      %v354 = vsel %vm319, %v263, 0
      %v357 = vsel %vm319, %v266, 0
      %v360 = vsel %vm319, %v269, 0
      %v363 = vsel %vm319, %v272, 0
      %v366 = vsel %vm319, %v275, 0
      %368 = vmatprep.subr.mxu0 0.0
      %369 = vmatpush1.msra.mxu0 %v276
      %370 = vmatprep.subr.mxu0 0.0
      %371 = vmatpush1.msra.mxu0 %v277
      %372 = vmatprep.subr.mxu0 0.0
      %373 = vmatpush1.msra.mxu0 %v278
      %374 = vmatprep.subr.mxu0 0.0
      %375 = vmatpush1.msra.mxu0 %v279
      %376 = vmatprep.subr.mxu0 0.0
      %377 = vmatpush1.msra.mxu0 %v280
      %378 = vmatprep.subr.mxu0 0.0
      %379 = vmatpush1.msra.mxu0 %v281
      %380 = vmatprep.subr.mxu0 0.0
      %381 = vmatpush1.msra.mxu0 %v282
      %382 = vmatprep.subr.mxu0 0.0
      %383 = vmatpush1.msra.mxu0 %v283
      %384 = vmatprep.subr.mxu0 0.0
      %385 = vmatpush1.msra.mxu0 %v284
      %386 = vmatprep.subr.mxu0 0.0
      %387 = vmatpush1.msra.mxu0 %v285
      %388 = vmatprep.subr.mxu0 0.0
      %389 = vmatpush1.msra.mxu0 %v286
      %390 = vmatprep.subr.mxu0 0.0
      %391 = vmatpush1.msra.mxu0 %v287
      %392 = vmatprep.subr.mxu0 0.0
      %393 = vmatpush1.msra.mxu0 %v288
      %394 = vmatprep.subr.mxu0 0.0
      %395 = vmatpush1.msra.mxu0 %v289
      %396 = vmatprep.subr.mxu0 0.0
      %397 = vmatpush1.msra.mxu0 %v290
      %398 = vmatprep.subr.mxu0 0.0
      %399 = vmatpush1.msra.mxu0 %v291
      %400 = vmatprep.subr.mxu0 0.0
      %401 = vmatpush1.msra.mxu0 %v292
      %402 = vmatprep.subr.mxu0 0.0
      %403 = vmatpush1.msra.mxu0 %v293
      %404 = vmatprep.subr.mxu0 0.0
      %405 = vmatpush1.msra.mxu0 %v294
      %406 = vmatprep.subr.mxu0 0.0
      %407 = vmatpush1.msra.mxu0 %v295
      %408 = vmatprep.subr.mxu0 0.0
      %409 = vmatpush1.msra.mxu0 %v296
      %410 = vmatprep.subr.mxu0 0.0
      %411 = vmatpush1.msra.mxu0 %v297
      %412 = vmatprep.subr.mxu0 0.0
      %413 = vmatpush1.msra.mxu0 %v298
      %414 = vmatprep.subr.mxu0 0.0
      %415 = vmatpush1.msra.mxu0 %v299
      %416 = vmatprep.subr.mxu0 0.0
      %417 = vmatpush1.msra.mxu0 %v300
      %418 = vmatprep.subr.mxu0 0.0
      %419 = vmatpush1.msra.mxu0 %v301
      %420 = vmatprep.subr.mxu0 0.0
      %421 = vmatpush1.msra.mxu0 %v302
      %422 = vmatprep.subr.mxu0 0.0
      %423 = vmatpush1.msra.mxu0 %v303
      %424 = vmatprep.subr.mxu0 0.0
      %425 = vmatpush1.msra.mxu0 %v304
      %426 = vmatprep.subr.mxu0 0.0
      %427 = vmatpush1.msra.mxu0 %v305
      %428 = vmatprep.subr.mxu0 0.0
      %429 = vmatpush1.msra.mxu0 %v306
      %430 = vmatprep.subr.mxu0 0.0
      %431 = vmatpush1.msra.mxu0 %v307
      %432 = vmatprep.mubr.f32.mxu0 %v229
      %433 = vmatmul.mubr.f32.gmra.mrb[0].mxu0 %v228
      %v434 = vpop.f32.mrb[0].mxu0
      %v435 = vadd.f32 %v317, %v434
      %v436 = vpop.f32.mrb[0].mxu0
      %437 = vmatprep.mubr.f32.mxu0 %v232
      %438 = vmatmul.mubr.f32.gmra.mrb[0].mxu0 %v231
      %v439 = vpop.f32.mrb[0].mxu0
      %v440 = vadd.f32 %v317, %v439
      %v441 = vpop.f32.mrb[0].mxu0
      %442 = vmatprep.mubr.f32.mxu0 %v235
      %443 = vmatmul.mubr.f32.gmra.mrb[0].mxu0 %v234
      %v444 = vpop.f32.mrb[0].mxu0
      %v445 = vadd.f32 %v317, %v444
      %v446 = vpop.f32.mrb[0].mxu0
      %447 = vmatprep.mubr.f32.mxu0 %v238
      %448 = vmatmul.mubr.f32.gmra.mrb[0].mxu0 %v237
      %v449 = vpop.f32.mrb[0].mxu0
      %v450 = vadd.f32 %v317, %v449
      %v451 = vpop.f32.mrb[0].mxu0
      %452 = vmatprep.mubr.f32.mxu0 %v241
      %453 = vmatmul.mubr.f32.gmra.mrb[0].mxu0 %v240
      %v454 = vpop.f32.mrb[0].mxu0
      %v455 = vadd.f32 %v317, %v454
      %v456 = vpop.f32.mrb[0].mxu0
      %457 = vmatprep.mubr.f32.mxu0 %v244
      %458 = vmatmul.mubr.f32.gmra.mrb[0].mxu0 %v243
      %v459 = vpop.f32.mrb[0].mxu0
      %v460 = vadd.f32 %v317, %v459
      %v461 = vpop.f32.mrb[0].mxu0
      %462 = vmatprep.mubr.f32.mxu0 %v247
      %463 = vmatmul.mubr.f32.gmra.mrb[0].mxu0 %v246
      %v464 = vpop.f32.mrb[0].mxu0
      %v465 = vadd.f32 %v317, %v464
      %v466 = vpop.f32.mrb[0].mxu0
      %467 = vmatprep.mubr.f32.mxu0 %v250
      %468 = vmatmul.mubr.f32.gmra.mrb[0].mxu0 %v249
      %v469 = vpop.f32.mrb[0].mxu0
      %v470 = vadd.f32 %v317, %v469
      %v471 = vpop.f32.mrb[0].mxu0
      %472 = vmatprep.mubr.f32.mxu0 %v253
      %473 = vmatmul.mubr.f32.gmra.mrb[0].mxu0 %v252
      %v474 = vpop.f32.mrb[0].mxu0
      %v475 = vadd.f32 %v317, %v474
      %v476 = vpop.f32.mrb[0].mxu0
      %477 = vmatprep.mubr.f32.mxu0 %v256
      %478 = vmatmul.mubr.f32.gmra.mrb[0].mxu0 %v255
      %v479 = vpop.f32.mrb[0].mxu0
      %v480 = vadd.f32 %v317, %v479
      %v481 = vpop.f32.mrb[0].mxu0
      %482 = vmatprep.mubr.f32.mxu0 %v259
      %483 = vmatmul.mubr.f32.gmra.mrb[0].mxu0 %v258
      %v484 = vpop.f32.mrb[0].mxu0
      %v485 = vadd.f32 %v317, %v484
      %v486 = vpop.f32.mrb[0].mxu0
      %487 = vmatprep.mubr.f32.mxu0 %v262
      %488 = vmatmul.mubr.f32.gmra.mrb[0].mxu0 %v261
      %v489 = vpop.f32.mrb[0].mxu0
      %v490 = vadd.f32 %v317, %v489
      %v491 = vpop.f32.mrb[0].mxu0
      %492 = vmatprep.mubr.f32.mxu0 %v265
      %493 = vmatmul.mubr.f32.gmra.mrb[0].mxu0 %v264
      %v494 = vpop.f32.mrb[0].mxu0
      %v495 = vadd.f32 %v317, %v494
      %v496 = vpop.f32.mrb[0].mxu0
      %497 = vmatprep.mubr.f32.mxu0 %v268
      %498 = vmatmul.mubr.f32.gmra.mrb[0].mxu0 %v267
      %v499 = vpop.f32.mrb[0].mxu0
      %v500 = vadd.f32 %v317, %v499
      %v501 = vpop.f32.mrb[0].mxu0
      %502 = vmatprep.mubr.f32.mxu0 %v271
      %503 = vmatmul.mubr.f32.gmra.mrb[0].mxu0 %v270
      %v504 = vpop.f32.mrb[0].mxu0
      %v505 = vadd.f32 %v317, %v504
      %v506 = vpop.f32.mrb[0].mxu0
      %507 = vmatprep.mubr.f32.mxu0 %v274
      %508 = vmatmul.mubr.f32.gmra.mrb[0].mxu0 %v273
      %v509 = vpop.f32.mrb[0].mxu0
      %v510 = vadd.f32 %v317, %v509
      %v511 = vpop.f32.mrb[0].mxu0
      %512 = vdwg.mxu0
      %513 = vmatprep.subr.mxu0 0.0
      %514 = vmatpush1.msra.mxu0 %v308
      %515 = vmatprep.subr.mxu0 0.0
      %516 = vmatpush1.msra.mxu0 %v309
      %517 = vmatprep.subr.mxu0 0.0
      %518 = vmatpush1.msra.mxu0 %v310
      %519 = vmatprep.subr.mxu0 0.0
      %520 = vmatpush1.msra.mxu0 %v311
      %521 = vmatprep.subr.mxu0 0.0
      %522 = vmatpush1.msra.mxu0 0.0
      %523 = vmatprep.subr.mxu0 0.0
      %524 = vmatpush1.msra.mxu0 0.0
      %525 = vmatprep.subr.mxu0 0.0
      %526 = vmatpush1.msra.mxu0 0.0
      %527 = vmatprep.subr.mxu0 0.0
      %528 = vmatpush1.msra.mxu0 0.0
      %529 = vmatprep.subr.mxu0 0.0
      %530 = vmatpush1.msra.mxu0 0.0
      %531 = vmatprep.subr.mxu0 0.0
      %532 = vmatpush1.msra.mxu0 0.0
      %533 = vmatprep.subr.mxu0 0.0
      %534 = vmatpush1.msra.mxu0 0.0
      %535 = vmatprep.subr.mxu0 0.0
      %536 = vmatpush1.msra.mxu0 0.0
      %537 = vmatprep.subr.mxu0 0.0
      %538 = vmatpush1.msra.mxu0 0.0
      %539 = vmatprep.subr.mxu0 0.0
      %540 = vmatpush1.msra.mxu0 0.0
      %541 = vmatprep.subr.mxu0 0.0
      %542 = vmatpush1.msra.mxu0 0.0
      %543 = vmatprep.subr.mxu0 0.0
      %544 = vmatpush1.msra.mxu0 0.0
      %545 = vmatprep.subr.mxu0 0.0
      %546 = vmatpush1.msra.mxu0 0.0
      %547 = vmatprep.subr.mxu0 0.0
      %548 = vmatpush1.msra.mxu0 0.0
      %549 = vmatprep.subr.mxu0 0.0
      %550 = vmatpush1.msra.mxu0 0.0
      %551 = vmatprep.subr.mxu0 0.0
      %552 = vmatpush1.msra.mxu0 0.0
      %553 = vmatprep.subr.mxu0 0.0
      %554 = vmatpush1.msra.mxu0 0.0
      %555 = vmatprep.subr.mxu0 0.0
      %556 = vmatpush1.msra.mxu0 0.0
      %557 = vmatprep.subr.mxu0 0.0
      %558 = vmatpush1.msra.mxu0 0.0
      %559 = vmatprep.subr.mxu0 0.0
      %560 = vmatpush1.msra.mxu0 0.0
      %561 = vmatprep.subr.mxu0 0.0
      %562 = vmatpush1.msra.mxu0 0.0
      %563 = vmatprep.subr.mxu0 0.0
      %564 = vmatpush1.msra.mxu0 0.0
      %565 = vmatprep.subr.mxu0 0.0
      %566 = vmatpush1.msra.mxu0 0.0
      %567 = vmatprep.subr.mxu0 0.0
      %568 = vmatpush1.msra.mxu0 0.0
      %569 = vmatprep.subr.mxu0 0.0
      %570 = vmatpush1.msra.mxu0 0.0
      %571 = vmatprep.subr.mxu0 0.0
      %572 = vmatpush1.msra.mxu0 0.0
      %573 = vmatprep.subr.mxu0 0.0
      %574 = vmatpush1.msra.mxu0 0.0
      %575 = vmatprep.subr.mxu0 0.0
      %576 = vmatpush1.msra.mxu0 0.0
      %577 = vmatprep.mubr.f32.mxu0 0.0
      %578 = vmatmul.mubr.f32.gmra.mrb[0].mxu0 %v321
      %v579 = vpop.f32.mrb[0].mxu0
      %v580 = vadd.f32 %v435, %v579
      %v581 = vpop.f32.mrb[0].mxu0
      %582 = vmatprep.mubr.f32.mxu0 0.0
      %583 = vmatmul.mubr.f32.gmra.mrb[0].mxu0 %v324
      %v584 = vpop.f32.mrb[0].mxu0
      %v585 = vadd.f32 %v440, %v584
      %v586 = vpop.f32.mrb[0].mxu0
      %587 = vmatprep.mubr.f32.mxu0 0.0
      %588 = vmatmul.mubr.f32.gmra.mrb[0].mxu0 %v327
      %v589 = vpop.f32.mrb[0].mxu0
      %v590 = vadd.f32 %v445, %v589
      %v591 = vpop.f32.mrb[0].mxu0
      %592 = vmatprep.mubr.f32.mxu0 0.0
      %593 = vmatmul.mubr.f32.gmra.mrb[0].mxu0 %v330
      %v594 = vpop.f32.mrb[0].mxu0
      %v595 = vadd.f32 %v450, %v594
      %v596 = vpop.f32.mrb[0].mxu0
      %597 = vmatprep.mubr.f32.mxu0 0.0
      %598 = vmatmul.mubr.f32.gmra.mrb[0].mxu0 %v333
      %v599 = vpop.f32.mrb[0].mxu0
      %v600 = vadd.f32 %v455, %v599
      %v601 = vpop.f32.mrb[0].mxu0
      %602 = vmatprep.mubr.f32.mxu0 0.0
      %603 = vmatmul.mubr.f32.gmra.mrb[0].mxu0 %v336
      %v604 = vpop.f32.mrb[0].mxu0
      %v605 = vadd.f32 %v460, %v604
      %v606 = vpop.f32.mrb[0].mxu0
      %607 = vmatprep.mubr.f32.mxu0 0.0
      %608 = vmatmul.mubr.f32.gmra.mrb[0].mxu0 %v339
      %v609 = vpop.f32.mrb[0].mxu0
      %v610 = vadd.f32 %v465, %v609
      %v611 = vpop.f32.mrb[0].mxu0
      %612 = vmatprep.mubr.f32.mxu0 0.0
      %613 = vmatmul.mubr.f32.gmra.mrb[0].mxu0 %v342
      %v614 = vpop.f32.mrb[0].mxu0
      %v615 = vadd.f32 %v470, %v614
      %v616 = vpop.f32.mrb[0].mxu0
      %617 = vmatprep.mubr.f32.mxu0 0.0
      %618 = vmatmul.mubr.f32.gmra.mrb[0].mxu0 %v345
      %v619 = vpop.f32.mrb[0].mxu0
      %v620 = vadd.f32 %v475, %v619
      %v621 = vpop.f32.mrb[0].mxu0
      %622 = vmatprep.mubr.f32.mxu0 0.0
      %623 = vmatmul.mubr.f32.gmra.mrb[0].mxu0 %v348
      %v624 = vpop.f32.mrb[0].mxu0
      %v625 = vadd.f32 %v480, %v624
      %v626 = vpop.f32.mrb[0].mxu0
      %627 = vmatprep.mubr.f32.mxu0 0.0
      %628 = vmatmul.mubr.f32.gmra.mrb[0].mxu0 %v351
      %v629 = vpop.f32.mrb[0].mxu0
      %v630 = vadd.f32 %v485, %v629
      %v631 = vpop.f32.mrb[0].mxu0
      %632 = vmatprep.mubr.f32.mxu0 0.0
      %633 = vmatmul.mubr.f32.gmra.mrb[0].mxu0 %v354
      %v634 = vpop.f32.mrb[0].mxu0
      %v635 = vadd.f32 %v490, %v634
      %v636 = vpop.f32.mrb[0].mxu0
      %637 = vmatprep.mubr.f32.mxu0 0.0
      %638 = vmatmul.mubr.f32.gmra.mrb[0].mxu0 %v357
      %v639 = vpop.f32.mrb[0].mxu0
      %v640 = vadd.f32 %v495, %v639
      %v641 = vpop.f32.mrb[0].mxu0
      %642 = vmatprep.mubr.f32.mxu0 0.0
      %643 = vmatmul.mubr.f32.gmra.mrb[0].mxu0 %v360
      %v644 = vpop.f32.mrb[0].mxu0
      %v645 = vadd.f32 %v500, %v644
      %v646 = vpop.f32.mrb[0].mxu0
      %647 = vmatprep.mubr.f32.mxu0 0.0
      %648 = vmatmul.mubr.f32.gmra.mrb[0].mxu0 %v363
      %v649 = vpop.f32.mrb[0].mxu0
      %v650 = vadd.f32 %v505, %v649
      %v651 = vpop.f32.mrb[0].mxu0
      %652 = vmatprep.mubr.f32.mxu0 0.0
      %653 = vmatmul.mubr.f32.gmra.mrb[0].mxu0 %v366
      %v654 = vpop.f32.mrb[0].mxu0
      %v655 = vadd.f32 %v510, %v654
      %v656 = vpop.f32.mrb[0].mxu0
      %657 = vdwg.mxu0
      %v658 = vmax.f32 %v580, 0.0
      %v659 = vmax.f32 %v585, 0.0
      %v660 = vmax.f32 %v590, 0.0
      %v661 = vmax.f32 %v595, 0.0
      %v662 = vmax.f32 %v600, 0.0
      %v663 = vmax.f32 %v605, 0.0
      %v664 = vmax.f32 %v610, 0.0
      %v665 = vmax.f32 %v615, 0.0
      %v666 = vmax.f32 %v620, 0.0
      %v667 = vmax.f32 %v625, 0.0
      %v668 = vmax.f32 %v630, 0.0
      %v669 = vmax.f32 %v635, 0.0
      %v670 = vmax.f32 %v640, 0.0
      %v671 = vmax.f32 %v645, 0.0
      %v672 = vmax.f32 %v650, 0.0
      %v673 = vmax.f32 %v655, 0.0
      %674 = vst [vmem:[%s226] sm:$0xff] %v658
      %675 = vst [vmem:[%s226 + $0x8] sm:$0xff] %v659
      %676 = vst [vmem:[%s226 + $0x10] sm:$0xff] %v660
      %677 = vst [vmem:[%s226 + $0x18] sm:$0xff] %v661
      %678 = vst [vmem:[%s226 + $0x20] sm:$0xff] %v662
      %679 = vst [vmem:[%s226 + $0x28] sm:$0xff] %v663
      %680 = vst [vmem:[%s226 + $0x30] sm:$0xff] %v664
      %681 = vst [vmem:[%s226 + $0x38] sm:$0xff] %v665
      %682 = vst [vmem:[%s226 + $0x40] sm:$0xff] %v666
      %683 = vst [vmem:[%s226 + $0x48] sm:$0xff] %v667
      %684 = vst [vmem:[%s226 + $0x50] sm:$0xff] %v668
      %685 = vst [vmem:[%s226 + $0x58] sm:$0xff] %v669
      %686 = vst [vmem:[%s226 + $0x60] sm:$0xff] %v670
      %687 = vst [vmem:[%s226 + $0x68] sm:$0xff] %v671
      %688 = vst [vmem:[%s226 + $0x70] sm:$0xff] %v672
      %689 = vst [vmem:[%s226 + $0x78] sm:$0xff] %v673
      %s690 = smul.u32 16, %s18
      %p691 = scmp.lt.s32.totalorder %s690, 143
      %s692 = scalar_select %p691, %s690, 143
      %p693 = scmp.lt.s32.totalorder %s19, 0
      %s694 = scalar_select %p693, %s19, 0
      %s695 = sadd.s32 %s694, %s692
      %s696 = smul.addr %s695, 8
      %s697 = scalar_lea.vmem %s3, %s696
      // Predicated region
      $region33: #{cnn_pathmnist_forward.5} parent=31 // pred_check
        %p698 = pneg %p124
      $region34: #{cnn_pathmnist_forward.5} parent=31 // pred_check_branch
        %700 = sbr.rel (%p698) target = $region36
      $region35: #{cnn_pathmnist_forward.5} parent=31 // pred_region
        %s701 = smul.u32 16, %s18
      $region36: #{cnn_pathmnist_forward.5} parent=31 // pred_fallthru
        _
    $region32: #{cnn_pathmnist_forward.5} parent=5 // pred_fallthru
      _
    %p702 = scmp.le.s32.totalorder 2, %s9
    // Predicated region
    $region37: #{cnn_pathmnist_forward.5} parent=5 // pred_check
      %p703 = pneg %p702
    $region38: #{cnn_pathmnist_forward.5} parent=5 // pred_check_branch
      %705 = sbr.rel (%p703) target = $region40
    $region39: #{cnn_pathmnist_forward.5} parent=5 // pred_region
      %s706 = ssub.s32 %s9, 2
      // Predicated region
      $region41: #{cnn_pathmnist_forward.5} parent=39 // pred_check
        %p707 = pneg %p130
      $region42: #{cnn_pathmnist_forward.5} parent=39 // pred_check_branch
        %709 = sbr.rel (%p707) target = $region44
      $region43: #{cnn_pathmnist_forward.5} parent=39 // pred_region
        %s710 = smul.u32 16, %s20
        %p711 = scmp.lt.s32.totalorder %s710, 143
        %s712 = scalar_select %p711, %s710, 143
        %p713 = scmp.lt.s32.totalorder %s21, 0
        %s714 = scalar_select %p713, %s21, 0
        %s715 = sadd.s32 %s714, %s712
        %s716 = smul.addr %s715, 8
        %s717 = scalar_lea.vmem %s3, %s716
      $region44: #{cnn_pathmnist_forward.5} parent=39 // pred_fallthru
        _
    $region40: #{cnn_pathmnist_forward.5} parent=5 // pred_fallthru
      _
  $region6: #{cnn_pathmnist_forward.5} parent=0 // loop_footer
    %s13 = sadd.s32 1, %s9
  $region7: #{cnn_pathmnist_forward.5} parent=0 // loop_footer_branch
    %8 = sbr.rel target = $region3
  $region8: #{cnn_pathmnist_forward.5} parent=0 // loop_exit
    _

// kernel: cnn_pathmnist_forward.7
$region0: #{cnn_pathmnist_forward.7}
  #allocation0 [shape = 'u32[]', space=smem, size = 0x4, offset = 0x4, fixed_abs, tag = 'smem constant byte address 0x4 - core index']
  #allocation1 [shape = 'u32[144,128]{1,0:T(1,128)}', space=vmem, size = 0x12000, scoped, tag = 'internal scratch']
  #allocation2 [shape = 'f32[8,128]{1,0:T(8,128)}', space=vmem, size = 0x1000, scoped, tag = 'scratch operand']
  %s0 = inlined_call_operand.vmem [shape: f32[8,9216], index: 0, kind: input, shape index: {}]
  %s1 = inlined_call_operand.vmem [shape: f32[9216,128], index: 1, kind: input, shape index: {}]
  %s2 = inlined_call_operand.vmem [shape: f32[1,128], index: 2, kind: input, shape index: {}]
  %s3 = inlined_call_operand.vmem [shape: f32[128,128], index: 3, kind: input, shape index: {}]
  %s4 = inlined_call_operand.vmem [shape: f32[1,128], index: 4, kind: input, shape index: {}]
  %s5 = inlined_call_operand.vmem [shape: f32[8,128], index: 5, kind: output, shape index: {}]
  %s6 = sld [smem:[#allocation0]]
  $region61: #{cnn_pathmnist_forward.7} parent=0
    _
  %s8 = ssub.s32 1, %s6
  %s9 = scalar_select 0, %s8, %s6
  loop: start=0, step=1, limit=6
  $region2: #{cnn_pathmnist_forward.7} parent=0 // loop_pre_header
    _
  $region3: #{cnn_pathmnist_forward.7} parent=0 // loop_header
    %s11 = sphi 0, %s15
    %p12 = scmp.ge.s32.totalorder %s11, 6
    %s21 = sphi 0, %s23
    %s24 = sphi 0, %s21
    %s25 = sphi 0, %s24
    %s41 = sphi 0, %s25
    %s47 = sphi 0, %s49
    %s50 = sphi 0, %s47
    %s51 = sphi 0, %s50
    %s67 = sphi 0, %s51
    %s71 = sphi 0, %s71
    %s73 = sphi 0, %s71
    %s74 = sphi 0, %s73
    %s88 = sphi 0, %s74
    %s92 = sphi 0, %s92
    %s94 = sphi 0, %s92
    %s95 = sphi 0, %s94
    %s109 = sphi 0, %s95
    %s113 = sphi 0, %s113
    %s115 = sphi 0, %s113
    %s116 = sphi 0, %s115
    %s130 = sphi 0, %s116
    %s134 = sphi 0, %s134
    %s136 = sphi 0, %s134
    %s137 = sphi 0, %s136
    %s151 = sphi 0, %s137
  $region4: #{cnn_pathmnist_forward.7} parent=0 // loop_header_branch
    %14 = sbr.rel (%p12) target = $region8
  $region5: #{cnn_pathmnist_forward.7} parent=0 // loop_body
    %s16 = ssub.s32 %s11, 1
    %s17 = ssub.s32 %s11, 2
    %s18 = sadd.s32 %s11, 1
    %s19 = ssub.s32 %s11, %s18
    %p20 = scmp.eq.s32.totalorder %s19, 0
    %s22 = sadd.s32 %s21, 1
    %s23 = scalar_select %p20, %s21, %s22
    %p26 = pneg %p20
    %p27 = scmp.eq.s32.totalorder %s11, 3
    %p28 = por %p26, %p27
    %p29 = scmp.ne.s32.totalorder %s21, %s24
    %p30 = scmp.eq.s32.totalorder %s11, 0
    %p31 = por %p29, %p30
    %p32 = scmp.ne.s32.totalorder %s21, %s24
    %p33 = scmp.eq.s32.totalorder %s16, 3
    %p34 = por %p32, %p33
    %p35 = scmp.ne.s32.totalorder %s24, %s25
    %p36 = scmp.eq.s32.totalorder %s16, 0
    %p37 = por %p35, %p36
    %p38 = scmp.ne.s32.totalorder %s24, %s25
    %p39 = scmp.eq.s32.totalorder %s17, 3
    %p40 = por %p38, %p39
    %p42 = scmp.ne.s32.totalorder %s25, %s41
    %p43 = scmp.eq.s32.totalorder %s17, 0
    %p44 = por %p42, %p43
    %s45 = ssub.s32 %s11, %s18
    %p46 = scmp.eq.s32.totalorder %s45, 0
    %s48 = sadd.s32 %s47, 1
    %s49 = scalar_select %p46, %s47, %s48
    %p52 = pneg %p46
    %p53 = scmp.eq.s32.totalorder %s11, 3
    %p54 = por %p52, %p53
    %p55 = scmp.ne.s32.totalorder %s47, %s50
    %p56 = scmp.eq.s32.totalorder %s11, 0
    %p57 = por %p55, %p56
    %p58 = scmp.ne.s32.totalorder %s47, %s50
    %p59 = scmp.eq.s32.totalorder %s16, 3
    %p60 = por %p58, %p59
    %p61 = scmp.ne.s32.totalorder %s50, %s51
    %p62 = scmp.eq.s32.totalorder %s16, 0
    %p63 = por %p61, %p62
    %p64 = scmp.ne.s32.totalorder %s50, %s51
    %p65 = scmp.eq.s32.totalorder %s17, 3
    %p66 = por %p64, %p65
    %p68 = scmp.ne.s32.totalorder %s51, %s67
    %p69 = scmp.eq.s32.totalorder %s17, 0
    %p70 = por %p68, %p69
    %s72 = sadd.s32 %s71, 1
    %p75 = scmp.eq.s32.totalorder %s11, 3
    %p76 = scmp.ne.s32.totalorder %s71, %s73
    %p77 = scmp.eq.s32.totalorder %s11, 0
    %p78 = por %p76, %p77
    %p79 = scmp.ne.s32.totalorder %s71, %s73
    %p80 = scmp.eq.s32.totalorder %s16, 3
    %p81 = por %p79, %p80
    %p82 = scmp.ne.s32.totalorder %s73, %s74
    %p83 = scmp.eq.s32.totalorder %s16, 0
    %p84 = por %p82, %p83
    %p85 = scmp.ne.s32.totalorder %s73, %s74
    %p86 = scmp.eq.s32.totalorder %s17, 3
    %p87 = por %p85, %p86
    %p89 = scmp.ne.s32.totalorder %s74, %s88
    %p90 = scmp.eq.s32.totalorder %s17, 0
    %p91 = por %p89, %p90
    %s93 = sadd.s32 %s92, 1
    %p96 = scmp.eq.s32.totalorder %s11, 3
    %p97 = scmp.ne.s32.totalorder %s92, %s94
    %p98 = scmp.eq.s32.totalorder %s11, 0
    %p99 = por %p97, %p98
    %p100 = scmp.ne.s32.totalorder %s92, %s94
    %p101 = scmp.eq.s32.totalorder %s16, 3
    %p102 = por %p100, %p101
    %p103 = scmp.ne.s32.totalorder %s94, %s95
    %p104 = scmp.eq.s32.totalorder %s16, 0
    %p105 = por %p103, %p104
    %p106 = scmp.ne.s32.totalorder %s94, %s95
    %p107 = scmp.eq.s32.totalorder %s17, 3
    %p108 = por %p106, %p107
    %p110 = scmp.ne.s32.totalorder %s95, %s109
    %p111 = scmp.eq.s32.totalorder %s17, 0
    %p112 = por %p110, %p111
    %s114 = sadd.s32 %s113, 1
    %p117 = scmp.eq.s32.totalorder %s11, 3
    %p118 = scmp.ne.s32.totalorder %s113, %s115
    %p119 = scmp.eq.s32.totalorder %s11, 0
    %p120 = por %p118, %p119
    %p121 = scmp.ne.s32.totalorder %s113, %s115
    %p122 = scmp.eq.s32.totalorder %s16, 3
    %p123 = por %p121, %p122
    %p124 = scmp.ne.s32.totalorder %s115, %s116
    %p125 = scmp.eq.s32.totalorder %s16, 0
    %p126 = por %p124, %p125
    %p127 = scmp.ne.s32.totalorder %s115, %s116
    %p128 = scmp.eq.s32.totalorder %s17, 3
    %p129 = por %p127, %p128
    %p131 = scmp.ne.s32.totalorder %s116, %s130
    %p132 = scmp.eq.s32.totalorder %s17, 0
    %p133 = por %p131, %p132
    %s135 = sadd.s32 %s134, 1
    %p138 = scmp.eq.s32.totalorder %s11, 3
    %p139 = scmp.ne.s32.totalorder %s134, %s136
    %p140 = scmp.eq.s32.totalorder %s11, 0
    %p141 = por %p139, %p140
    %p142 = scmp.ne.s32.totalorder %s134, %s136
    %p143 = scmp.eq.s32.totalorder %s16, 3
    %p144 = por %p142, %p143
    %p145 = scmp.ne.s32.totalorder %s136, %s137
    %p146 = scmp.eq.s32.totalorder %s16, 0
    %p147 = por %p145, %p146
    %p148 = scmp.ne.s32.totalorder %s136, %s137
    %p149 = scmp.eq.s32.totalorder %s17, 3
    %p150 = por %p148, %p149
    %p152 = scmp.ne.s32.totalorder %s137, %s151
    %p153 = scmp.eq.s32.totalorder %s17, 0
    %p154 = por %p152, %p153
    %p155 = scmp.le.s32.totalorder 1, %s11
    %p156 = scmp.lt.s32.totalorder %s11, 5
    %p157 = pnand %p155, %p156
    %p158 = pneg %p157
    // Predicated region
    $region9: #{cnn_pathmnist_forward.7} parent=5 // pred_check
      _
    $region10: #{cnn_pathmnist_forward.7} parent=5 // pred_check_branch
      %160 = sbr.rel (%p157) target = $region12
    $region11: #{cnn_pathmnist_forward.7} parent=5 // pred_region
      %s161 = ssub.s32 %s11, 1
      // Predicated region
      $region13: #{cnn_pathmnist_forward.7} parent=11 // pred_check
        %p162 = pneg %p84
      $region14: #{cnn_pathmnist_forward.7} parent=11 // pred_check_branch
        %164 = sbr.rel (%p162) target = $region16
      $region15: #{cnn_pathmnist_forward.7} parent=11 // pred_region
        _
      $region16: #{cnn_pathmnist_forward.7} parent=11 // pred_fallthru
        _
      // Predicated region
      $region17: #{cnn_pathmnist_forward.7} parent=11 // pred_check
        %p165 = pneg %p105
      $region18: #{cnn_pathmnist_forward.7} parent=11 // pred_check_branch
        %167 = sbr.rel (%p165) target = $region20
      $region19: #{cnn_pathmnist_forward.7} parent=11 // pred_region
        _
      $region20: #{cnn_pathmnist_forward.7} parent=11 // pred_fallthru
        _
      // Predicated region
      $region21: #{cnn_pathmnist_forward.7} parent=11 // pred_check
        %p168 = pneg %p126
      $region22: #{cnn_pathmnist_forward.7} parent=11 // pred_check_branch
        %170 = sbr.rel (%p168) target = $region24
      $region23: #{cnn_pathmnist_forward.7} parent=11 // pred_region
        _
      $region24: #{cnn_pathmnist_forward.7} parent=11 // pred_fallthru
        _
    $region12: #{cnn_pathmnist_forward.7} parent=5 // pred_fallthru
      _
    %p171 = scmp.lt.s32.totalorder %s11, 4
    // Predicated region
    $region25: #{cnn_pathmnist_forward.7} parent=5 // pred_check
      %p172 = pneg %p171
    $region26: #{cnn_pathmnist_forward.7} parent=5 // pred_check_branch
      %174 = sbr.rel (%p172) target = $region28
    $region27: #{cnn_pathmnist_forward.7} parent=5 // pred_region
      // Predicated region
      $region29: #{cnn_pathmnist_forward.7} parent=27 // pred_check
        %p175 = pneg %p31
      $region30: #{cnn_pathmnist_forward.7} parent=27 // pred_check_branch
        %177 = sbr.rel (%p175) target = $region32
      $region31: #{cnn_pathmnist_forward.7} parent=27 // pred_region
        %s178 = smul.u32 18, %s11
        %p179 = scmp.lt.s32.totalorder %s178, 71
        %s180 = scalar_select %p179, %s178, 71
        %s181 = smul.addr %s180, 8
        %s182 = scalar_lea.vmem %s0, %s181
        %s183 = smul.u32 18, %s11
      $region32: #{cnn_pathmnist_forward.7} parent=27 // pred_fallthru
        _
      // Predicated region
      $region33: #{cnn_pathmnist_forward.7} parent=27 // pred_check
        %p184 = pneg %p57
      $region34: #{cnn_pathmnist_forward.7} parent=27 // pred_check_branch
        %186 = sbr.rel (%p184) target = $region36
      $region35: #{cnn_pathmnist_forward.7} parent=27 // pred_region
        %s187 = smul.u32 288, %s11
        %p188 = scmp.lt.s32.totalorder %s187, 1151
        %s189 = scalar_select %p188, %s187, 1151
        %s190 = smul.addr %s189, 8
        %s191 = scalar_lea.vmem %s1, %s190
        %s192 = smul.u32 288, %s11
      $region36: #{cnn_pathmnist_forward.7} parent=27 // pred_fallthru
        _
    $region28: #{cnn_pathmnist_forward.7} parent=5 // pred_fallthru
      _
    %p193 = scmp.le.s32.totalorder 1, %s11
    %p194 = scmp.lt.s32.totalorder %s11, 5
    %p195 = pnand %p193, %p194
    %p196 = pneg %p195
    // Predicated region
    $region37: #{cnn_pathmnist_forward.7} parent=5 // pred_check
      _
    $region38: #{cnn_pathmnist_forward.7} parent=5 // pred_check_branch
      %198 = sbr.rel (%p195) target = $region40
    $region39: #{cnn_pathmnist_forward.7} parent=5 // pred_region
      %s199 = ssub.s32 %s11, 1
      %s200 = smul.u32 18, %s16
      %p201 = scmp.lt.s32.totalorder %s200, 71
      %s202 = scalar_select %p201, %s200, 71
      %s203 = smul.addr %s202, 8
      %s204 = scalar_lea.vmem %s0, %s203
      %p205 = pneg %p37
      %p206 = pneg %p34
      %s207 = smul.u32 288, %s16
      %p208 = scmp.lt.s32.totalorder %s207, 1151
      %s209 = scalar_select %p208, %s207, 1151
      %s210 = smul.addr %s209, 8
      %s211 = scalar_lea.vmem %s1, %s210
      %p212 = pneg %p63
      %p213 = pneg %p60
      %p214 = pneg %p84
      %p215 = pneg %p81
      %p216 = pneg %p105
      %p217 = pneg %p102
      %p218 = pneg %p126
      %p219 = pneg %p123
      %p220 = pneg %p147
      %p221 = pneg %p144
      %s222 = smul.u32 18, %s16
      %p223 = scmp.lt.s32.totalorder %s222, 71
      %s224 = scalar_select %p223, %s222, 71
      %s225 = smul.addr %s224, 8
      %s226 = scalar_lea.vmem %s0, %s225
      %s227 = smul.u32 18, %s16
      %s228 = smul.u32 288, %s16
      %p229 = scmp.lt.s32.totalorder %s228, 1151
      %s230 = scalar_select %p229, %s228, 1151
      %s231 = smul.addr %s230, 8
      %s232 = scalar_lea.vmem %s1, %s231
      %s233 = smul.u32 288, %s16
      %p234 = scmp.eq.s32.totalorder %s16, 0
      // Predicated region
      $region41: #{cnn_pathmnist_forward.7} parent=39 // pred_check
        %p235 = pneg %p234
      $region42: #{cnn_pathmnist_forward.7} parent=39 // pred_check_branch
        %237 = sbr.rel (%p235) target = $region44
      $region43: #{cnn_pathmnist_forward.7} parent=39 // pred_region
        %238 = vst [vmem:[#allocation2] sm:$0xff] 0.0
      $region44: #{cnn_pathmnist_forward.7} parent=39 // pred_fallthru
        _
      %v239 = vld [vmem:[#allocation2] sm:$0xff]
      %v240 = vld [vmem:[%s226] sm:$0xff]
      %v241 = vld [vmem:[%s226 + $0x8] sm:$0xff]
      %v242 = vld [vmem:[%s226 + $0x10] sm:$0xff]
      %v243 = vld [vmem:[%s226 + $0x18] sm:$0xff]
      %v244 = vld [vmem:[%s226 + $0x20] sm:$0xff]
      %v245 = vld [vmem:[%s226 + $0x28] sm:$0xff]
      %v246 = vld [vmem:[%s226 + $0x30] sm:$0xff]
      %v247 = vld [vmem:[%s226 + $0x38] sm:$0xff]
      %v248 = vld [vmem:[%s226 + $0x40] sm:$0xff]
      %v249 = vld [vmem:[%s226 + $0x48] sm:$0xff]
      %v250 = vld [vmem:[%s226 + $0x50] sm:$0xff]
      %v251 = vld [vmem:[%s226 + $0x58] sm:$0xff]
      %v252 = vld [vmem:[%s226 + $0x60] sm:$0xff]
      %v253 = vld [vmem:[%s226 + $0x68] sm:$0xff]
      %v254 = vld [vmem:[%s226 + $0x70] sm:$0xff]
      %v255 = vld [vmem:[%s226 + $0x78] sm:$0xff]
      %v256 = vld [vmem:[%s226 + $0x80] sm:$0xff]
      %v257 = vld [vmem:[%s226 + $0x88] sm:$0xff]
      %v258 = vld [vmem:[%s232] sm:$0xff]
      %v259 = vld [vmem:[%s232 + $0x8] sm:$0xff]
      %v260 = vld [vmem:[%s232 + $0x10] sm:$0xff]
      %v261 = vld [vmem:[%s232 + $0x18] sm:$0xff]
      %v262 = vld [vmem:[%s232 + $0x20] sm:$0xff]
      %v263 = vld [vmem:[%s232 + $0x28] sm:$0xff]
      %v264 = vld [vmem:[%s232 + $0x30] sm:$0xff]
      %v265 = vld [vmem:[%s232 + $0x38] sm:$0xff]
      %v266 = vld [vmem:[%s232 + $0x40] sm:$0xff]
      %v267 = vld [vmem:[%s232 + $0x48] sm:$0xff]
      %v268 = vld [vmem:[%s232 + $0x50] sm:$0xff]
      %v269 = vld [vmem:[%s232 + $0x58] sm:$0xff]
      %v270 = vld [vmem:[%s232 + $0x60] sm:$0xff]
      %v271 = vld [vmem:[%s232 + $0x68] sm:$0xff]
      %v272 = vld [vmem:[%s232 + $0x70] sm:$0xff]
      %v273 = vld [vmem:[%s232 + $0x78] sm:$0xff]
      %v274 = vld [vmem:[%s232 + $0x80] sm:$0xff]
      %v275 = vld [vmem:[%s232 + $0x88] sm:$0xff]
      %v276 = vld [vmem:[%s232 + $0x90] sm:$0xff]
      %v277 = vld [vmem:[%s232 + $0x98] sm:$0xff]
      %v278 = vld [vmem:[%s232 + $0xa0] sm:$0xff]
      %v279 = vld [vmem:[%s232 + $0xa8] sm:$0xff]
      %v280 = vld [vmem:[%s232 + $0xb0] sm:$0xff]
      %v281 = vld [vmem:[%s232 + $0xb8] sm:$0xff]
      %v282 = vld [vmem:[%s232 + $0xc0] sm:$0xff]
      %v283 = vld [vmem:[%s232 + $0xc8] sm:$0xff]
      %v284 = vld [vmem:[%s232 + $0xd0] sm:$0xff]
      %v285 = vld [vmem:[%s232 + $0xd8] sm:$0xff]
      %v286 = vld [vmem:[%s232 + $0xe0] sm:$0xff]
      %v287 = vld [vmem:[%s232 + $0xe8] sm:$0xff]
      %v288 = vld [vmem:[%s232 + $0xf0] sm:$0xff]
      %v289 = vld [vmem:[%s232 + $0xf8] sm:$0xff]
      %v290 = vld [vmem:[%s232 + $0x100] sm:$0xff]
      %v291 = vld [vmem:[%s232 + $0x108] sm:$0xff]
      %v292 = vld [vmem:[%s232 + $0x110] sm:$0xff]
      %v293 = vld [vmem:[%s232 + $0x118] sm:$0xff]
      %v294 = vld [vmem:[%s232 + $0x120] sm:$0xff]
      %v295 = vld [vmem:[%s232 + $0x128] sm:$0xff]
      %v296 = vld [vmem:[%s232 + $0x130] sm:$0xff]
      %v297 = vld [vmem:[%s232 + $0x138] sm:$0xff]
      %v298 = vld [vmem:[%s232 + $0x140] sm:$0xff]
      %v299 = vld [vmem:[%s232 + $0x148] sm:$0xff]
      %v300 = vld [vmem:[%s232 + $0x150] sm:$0xff]
      %v301 = vld [vmem:[%s232 + $0x158] sm:$0xff]
      %v302 = vld [vmem:[%s232 + $0x160] sm:$0xff]
      %v303 = vld [vmem:[%s232 + $0x168] sm:$0xff]
      %v304 = vld [vmem:[%s232 + $0x170] sm:$0xff]
      %v305 = vld [vmem:[%s232 + $0x178] sm:$0xff]
      %v306 = vld [vmem:[%s232 + $0x180] sm:$0xff]
      %v307 = vld [vmem:[%s232 + $0x188] sm:$0xff]
      %v308 = vld [vmem:[%s232 + $0x190] sm:$0xff]
      %v309 = vld [vmem:[%s232 + $0x198] sm:$0xff]
      %v310 = vld [vmem:[%s232 + $0x1a0] sm:$0xff]
      %v311 = vld [vmem:[%s232 + $0x1a8] sm:$0xff]
      %v312 = vld [vmem:[%s232 + $0x1b0] sm:$0xff]
      %v313 = vld [vmem:[%s232 + $0x1b8] sm:$0xff]
      %v314 = vld [vmem:[%s232 + $0x1c0] sm:$0xff]
      %v315 = vld [vmem:[%s232 + $0x1c8] sm:$0xff]
      %v316 = vld [vmem:[%s232 + $0x1d0] sm:$0xff]
      %v317 = vld [vmem:[%s232 + $0x1d8] sm:$0xff]
      %v318 = vld [vmem:[%s232 + $0x1e0] sm:$0xff]
      %v319 = vld [vmem:[%s232 + $0x1e8] sm:$0xff]
      %v320 = vld [vmem:[%s232 + $0x1f0] sm:$0xff]
      %v321 = vld [vmem:[%s232 + $0x1f8] sm:$0xff]
      %v322 = vld [vmem:[%s232 + $0x200] sm:$0xff]
      %v323 = vld [vmem:[%s232 + $0x208] sm:$0xff]
      %v324 = vld [vmem:[%s232 + $0x210] sm:$0xff]
      %v325 = vld [vmem:[%s232 + $0x218] sm:$0xff]
      %v326 = vld [vmem:[%s232 + $0x220] sm:$0xff]
      %v327 = vld [vmem:[%s232 + $0x228] sm:$0xff]
      %v328 = vld [vmem:[%s232 + $0x230] sm:$0xff]
      %v329 = vld [vmem:[%s232 + $0x238] sm:$0xff]
      %v330 = vld [vmem:[%s232 + $0x240] sm:$0xff]
      %v331 = vld [vmem:[%s232 + $0x248] sm:$0xff]
      %v332 = vld [vmem:[%s232 + $0x250] sm:$0xff]
      %v333 = vld [vmem:[%s232 + $0x258] sm:$0xff]
      %v334 = vld [vmem:[%s232 + $0x260] sm:$0xff]
      %v335 = vld [vmem:[%s232 + $0x268] sm:$0xff]
      %v336 = vld [vmem:[%s232 + $0x270] sm:$0xff]
      %v337 = vld [vmem:[%s232 + $0x278] sm:$0xff]
      %v338 = vld [vmem:[%s232 + $0x280] sm:$0xff]
      %v339 = vld [vmem:[%s232 + $0x288] sm:$0xff]
      %v340 = vld [vmem:[%s232 + $0x290] sm:$0xff]
      %v341 = vld [vmem:[%s232 + $0x298] sm:$0xff]
      %v342 = vld [vmem:[%s232 + $0x2a0] sm:$0xff]
      %v343 = vld [vmem:[%s232 + $0x2a8] sm:$0xff]
      %v344 = vld [vmem:[%s232 + $0x2b0] sm:$0xff]
      %v345 = vld [vmem:[%s232 + $0x2b8] sm:$0xff]
      %v346 = vld [vmem:[%s232 + $0x2c0] sm:$0xff]
      %v347 = vld [vmem:[%s232 + $0x2c8] sm:$0xff]
      %v348 = vld [vmem:[%s232 + $0x2d0] sm:$0xff]
      %v349 = vld [vmem:[%s232 + $0x2d8] sm:$0xff]
      %v350 = vld [vmem:[%s232 + $0x2e0] sm:$0xff]
      %v351 = vld [vmem:[%s232 + $0x2e8] sm:$0xff]
      %v352 = vld [vmem:[%s232 + $0x2f0] sm:$0xff]
      %v353 = vld [vmem:[%s232 + $0x2f8] sm:$0xff]
      %v354 = vld [vmem:[%s232 + $0x300] sm:$0xff]
      %v355 = vld [vmem:[%s232 + $0x308] sm:$0xff]
      %v356 = vld [vmem:[%s232 + $0x310] sm:$0xff]
      %v357 = vld [vmem:[%s232 + $0x318] sm:$0xff]
      %v358 = vld [vmem:[%s232 + $0x320] sm:$0xff]
      %v359 = vld [vmem:[%s232 + $0x328] sm:$0xff]
      %v360 = vld [vmem:[%s232 + $0x330] sm:$0xff]
      %v361 = vld [vmem:[%s232 + $0x338] sm:$0xff]
      %v362 = vld [vmem:[%s232 + $0x340] sm:$0xff]
      %v363 = vld [vmem:[%s232 + $0x348] sm:$0xff]
      %v364 = vld [vmem:[%s232 + $0x350] sm:$0xff]
      %v365 = vld [vmem:[%s232 + $0x358] sm:$0xff]
      %v366 = vld [vmem:[%s232 + $0x360] sm:$0xff]
      %v367 = vld [vmem:[%s232 + $0x368] sm:$0xff]
      %v368 = vld [vmem:[%s232 + $0x370] sm:$0xff]
      %v369 = vld [vmem:[%s232 + $0x378] sm:$0xff]
      %v370 = vld [vmem:[%s232 + $0x380] sm:$0xff]
      %v371 = vld [vmem:[%s232 + $0x388] sm:$0xff]
      %v372 = vld [vmem:[%s232 + $0x390] sm:$0xff]
      %v373 = vld [vmem:[%s232 + $0x398] sm:$0xff]
      %v374 = vld [vmem:[%s232 + $0x3a0] sm:$0xff]
      %v375 = vld [vmem:[%s232 + $0x3a8] sm:$0xff]
      %v376 = vld [vmem:[%s232 + $0x3b0] sm:$0xff]
      %v377 = vld [vmem:[%s232 + $0x3b8] sm:$0xff]
      %v378 = vld [vmem:[%s232 + $0x3c0] sm:$0xff]
      %v379 = vld [vmem:[%s232 + $0x3c8] sm:$0xff]
      %v380 = vld [vmem:[%s232 + $0x3d0] sm:$0xff]
      %v381 = vld [vmem:[%s232 + $0x3d8] sm:$0xff]
      %v382 = vld [vmem:[%s232 + $0x3e0] sm:$0xff]
      %v383 = vld [vmem:[%s232 + $0x3e8] sm:$0xff]
      %v384 = vld [vmem:[%s232 + $0x3f0] sm:$0xff]
      %v385 = vld [vmem:[%s232 + $0x3f8] sm:$0xff]
      %v386 = vld [vmem:[%s232 + $0x400] sm:$0xff]
      %v387 = vld [vmem:[%s232 + $0x408] sm:$0xff]
      %v388 = vld [vmem:[%s232 + $0x410] sm:$0xff]
      %v389 = vld [vmem:[%s232 + $0x418] sm:$0xff]
      %v390 = vld [vmem:[%s232 + $0x420] sm:$0xff]
      %v391 = vld [vmem:[%s232 + $0x428] sm:$0xff]
      %v392 = vld [vmem:[%s232 + $0x430] sm:$0xff]
      %v393 = vld [vmem:[%s232 + $0x438] sm:$0xff]
      %v394 = vld [vmem:[%s232 + $0x440] sm:$0xff]
      %v395 = vld [vmem:[%s232 + $0x448] sm:$0xff]
      %v396 = vld [vmem:[%s232 + $0x450] sm:$0xff]
      %v397 = vld [vmem:[%s232 + $0x458] sm:$0xff]
      %v398 = vld [vmem:[%s232 + $0x460] sm:$0xff]
      %v399 = vld [vmem:[%s232 + $0x468] sm:$0xff]
      %v400 = vld [vmem:[%s232 + $0x470] sm:$0xff]
      %v401 = vld [vmem:[%s232 + $0x478] sm:$0xff]
      %v402 = vld [vmem:[%s232 + $0x480] sm:$0xff]
      %v403 = vld [vmem:[%s232 + $0x488] sm:$0xff]
      %v404 = vld [vmem:[%s232 + $0x490] sm:$0xff]
      %v405 = vld [vmem:[%s232 + $0x498] sm:$0xff]
      %v406 = vld [vmem:[%s232 + $0x4a0] sm:$0xff]
      %v407 = vld [vmem:[%s232 + $0x4a8] sm:$0xff]
      %v408 = vld [vmem:[%s232 + $0x4b0] sm:$0xff]
      %v409 = vld [vmem:[%s232 + $0x4b8] sm:$0xff]
      %v410 = vld [vmem:[%s232 + $0x4c0] sm:$0xff]
      %v411 = vld [vmem:[%s232 + $0x4c8] sm:$0xff]
      %v412 = vld [vmem:[%s232 + $0x4d0] sm:$0xff]
      %v413 = vld [vmem:[%s232 + $0x4d8] sm:$0xff]
      %v414 = vld [vmem:[%s232 + $0x4e0] sm:$0xff]
      %v415 = vld [vmem:[%s232 + $0x4e8] sm:$0xff]
      %v416 = vld [vmem:[%s232 + $0x4f0] sm:$0xff]
      %v417 = vld [vmem:[%s232 + $0x4f8] sm:$0xff]
      %v418 = vld [vmem:[%s232 + $0x500] sm:$0xff]
      %v419 = vld [vmem:[%s232 + $0x508] sm:$0xff]
      %v420 = vld [vmem:[%s232 + $0x510] sm:$0xff]
      %v421 = vld [vmem:[%s232 + $0x518] sm:$0xff]
      %v422 = vld [vmem:[%s232 + $0x520] sm:$0xff]
      %v423 = vld [vmem:[%s232 + $0x528] sm:$0xff]
      %v424 = vld [vmem:[%s232 + $0x530] sm:$0xff]
      %v425 = vld [vmem:[%s232 + $0x538] sm:$0xff]
      %v426 = vld [vmem:[%s232 + $0x540] sm:$0xff]
      %v427 = vld [vmem:[%s232 + $0x548] sm:$0xff]
      %v428 = vld [vmem:[%s232 + $0x550] sm:$0xff]
      %v429 = vld [vmem:[%s232 + $0x558] sm:$0xff]
      %v430 = vld [vmem:[%s232 + $0x560] sm:$0xff]
      %v431 = vld [vmem:[%s232 + $0x568] sm:$0xff]
      %v432 = vld [vmem:[%s232 + $0x570] sm:$0xff]
      %v433 = vld [vmem:[%s232 + $0x578] sm:$0xff]
      %v434 = vld [vmem:[%s232 + $0x580] sm:$0xff]
      %v435 = vld [vmem:[%s232 + $0x588] sm:$0xff]
      %v436 = vld [vmem:[%s232 + $0x590] sm:$0xff]
      %v437 = vld [vmem:[%s232 + $0x598] sm:$0xff]
      %v438 = vld [vmem:[%s232 + $0x5a0] sm:$0xff]
      %v439 = vld [vmem:[%s232 + $0x5a8] sm:$0xff]
      %v440 = vld [vmem:[%s232 + $0x5b0] sm:$0xff]
      %v441 = vld [vmem:[%s232 + $0x5b8] sm:$0xff]
      %v442 = vld [vmem:[%s232 + $0x5c0] sm:$0xff]
      %v443 = vld [vmem:[%s232 + $0x5c8] sm:$0xff]
      %v444 = vld [vmem:[%s232 + $0x5d0] sm:$0xff]
      %v445 = vld [vmem:[%s232 + $0x5d8] sm:$0xff]
      %v446 = vld [vmem:[%s232 + $0x5e0] sm:$0xff]
      %v447 = vld [vmem:[%s232 + $0x5e8] sm:$0xff]
      %v448 = vld [vmem:[%s232 + $0x5f0] sm:$0xff]
      %v449 = vld [vmem:[%s232 + $0x5f8] sm:$0xff]
      %v450 = vld [vmem:[%s232 + $0x600] sm:$0xff]
      %v451 = vld [vmem:[%s232 + $0x608] sm:$0xff]
      %v452 = vld [vmem:[%s232 + $0x610] sm:$0xff]
      %v453 = vld [vmem:[%s232 + $0x618] sm:$0xff]
      %v454 = vld [vmem:[%s232 + $0x620] sm:$0xff]
      %v455 = vld [vmem:[%s232 + $0x628] sm:$0xff]
      %v456 = vld [vmem:[%s232 + $0x630] sm:$0xff]
      %v457 = vld [vmem:[%s232 + $0x638] sm:$0xff]
      %v458 = vld [vmem:[%s232 + $0x640] sm:$0xff]
      %v459 = vld [vmem:[%s232 + $0x648] sm:$0xff]
      %v460 = vld [vmem:[%s232 + $0x650] sm:$0xff]
      %v461 = vld [vmem:[%s232 + $0x658] sm:$0xff]
      %v462 = vld [vmem:[%s232 + $0x660] sm:$0xff]
      %v463 = vld [vmem:[%s232 + $0x668] sm:$0xff]
      %v464 = vld [vmem:[%s232 + $0x670] sm:$0xff]
      %v465 = vld [vmem:[%s232 + $0x678] sm:$0xff]
      %v466 = vld [vmem:[%s232 + $0x680] sm:$0xff]
      %v467 = vld [vmem:[%s232 + $0x688] sm:$0xff]
      %v468 = vld [vmem:[%s232 + $0x690] sm:$0xff]
      %v469 = vld [vmem:[%s232 + $0x698] sm:$0xff]
      %v470 = vld [vmem:[%s232 + $0x6a0] sm:$0xff]
      %v471 = vld [vmem:[%s232 + $0x6a8] sm:$0xff]
      %v472 = vld [vmem:[%s232 + $0x6b0] sm:$0xff]
      %v473 = vld [vmem:[%s232 + $0x6b8] sm:$0xff]
      %v474 = vld [vmem:[%s232 + $0x6c0] sm:$0xff]
      %v475 = vld [vmem:[%s232 + $0x6c8] sm:$0xff]
      %v476 = vld [vmem:[%s232 + $0x6d0] sm:$0xff]
      %v477 = vld [vmem:[%s232 + $0x6d8] sm:$0xff]
      %v478 = vld [vmem:[%s232 + $0x6e0] sm:$0xff]
      %v479 = vld [vmem:[%s232 + $0x6e8] sm:$0xff]
      %v480 = vld [vmem:[%s232 + $0x6f0] sm:$0xff]
      %v481 = vld [vmem:[%s232 + $0x6f8] sm:$0xff]
      %v482 = vld [vmem:[%s232 + $0x700] sm:$0xff]
      %v483 = vld [vmem:[%s232 + $0x708] sm:$0xff]
      %v484 = vld [vmem:[%s232 + $0x710] sm:$0xff]
      %v485 = vld [vmem:[%s232 + $0x718] sm:$0xff]
      %v486 = vld [vmem:[%s232 + $0x720] sm:$0xff]
      %v487 = vld [vmem:[%s232 + $0x728] sm:$0xff]
      %v488 = vld [vmem:[%s232 + $0x730] sm:$0xff]
      %v489 = vld [vmem:[%s232 + $0x738] sm:$0xff]
      %v490 = vld [vmem:[%s232 + $0x740] sm:$0xff]
      %v491 = vld [vmem:[%s232 + $0x748] sm:$0xff]
      %v492 = vld [vmem:[%s232 + $0x750] sm:$0xff]
      %v493 = vld [vmem:[%s232 + $0x758] sm:$0xff]
      %v494 = vld [vmem:[%s232 + $0x760] sm:$0xff]
      %v495 = vld [vmem:[%s232 + $0x768] sm:$0xff]
      %v496 = vld [vmem:[%s232 + $0x770] sm:$0xff]
      %v497 = vld [vmem:[%s232 + $0x778] sm:$0xff]
      %v498 = vld [vmem:[%s232 + $0x780] sm:$0xff]
      %v499 = vld [vmem:[%s232 + $0x788] sm:$0xff]
      %v500 = vld [vmem:[%s232 + $0x790] sm:$0xff]
      %v501 = vld [vmem:[%s232 + $0x798] sm:$0xff]
      %v502 = vld [vmem:[%s232 + $0x7a0] sm:$0xff]
      %v503 = vld [vmem:[%s232 + $0x7a8] sm:$0xff]
      %v504 = vld [vmem:[%s232 + $0x7b0] sm:$0xff]
      %v505 = vld [vmem:[%s232 + $0x7b8] sm:$0xff]
      %v506 = vld [vmem:[%s232 + $0x7c0] sm:$0xff]
      %v507 = vld [vmem:[%s232 + $0x7c8] sm:$0xff]
      %v508 = vld [vmem:[%s232 + $0x7d0] sm:$0xff]
      %v509 = vld [vmem:[%s232 + $0x7d8] sm:$0xff]
      %v510 = vld [vmem:[%s232 + $0x7e0] sm:$0xff]
      %v511 = vld [vmem:[%s232 + $0x7e8] sm:$0xff]
      %v512 = vld [vmem:[%s232 + $0x7f0] sm:$0xff]
      %v513 = vld [vmem:[%s232 + $0x7f8] sm:$0xff]
      %v514 = vld [vmem:[%s232 + $0x800] sm:$0xff]
      %v515 = vld [vmem:[%s232 + $0x808] sm:$0xff]
      %v516 = vld [vmem:[%s232 + $0x810] sm:$0xff]
      %v517 = vld [vmem:[%s232 + $0x818] sm:$0xff]
      %v518 = vld [vmem:[%s232 + $0x820] sm:$0xff]
      %v519 = vld [vmem:[%s232 + $0x828] sm:$0xff]
      %v520 = vld [vmem:[%s232 + $0x830] sm:$0xff]
      %v521 = vld [vmem:[%s232 + $0x838] sm:$0xff]
      %v522 = vld [vmem:[%s232 + $0x840] sm:$0xff]
      %v523 = vld [vmem:[%s232 + $0x848] sm:$0xff]
      %v524 = vld [vmem:[%s232 + $0x850] sm:$0xff]
      %v525 = vld [vmem:[%s232 + $0x858] sm:$0xff]
      %v526 = vld [vmem:[%s232 + $0x860] sm:$0xff]
      %v527 = vld [vmem:[%s232 + $0x868] sm:$0xff]
      %v528 = vld [vmem:[%s232 + $0x870] sm:$0xff]
      %v529 = vld [vmem:[%s232 + $0x878] sm:$0xff]
      %v530 = vld [vmem:[%s232 + $0x880] sm:$0xff]
      %v531 = vld [vmem:[%s232 + $0x888] sm:$0xff]
      %v532 = vld [vmem:[%s232 + $0x890] sm:$0xff]
      %v533 = vld [vmem:[%s232 + $0x898] sm:$0xff]
      %v534 = vld [vmem:[%s232 + $0x8a0] sm:$0xff]
      %v535 = vld [vmem:[%s232 + $0x8a8] sm:$0xff]
      %v536 = vld [vmem:[%s232 + $0x8b0] sm:$0xff]
      %v537 = vld [vmem:[%s232 + $0x8b8] sm:$0xff]
      %v538 = vld [vmem:[%s232 + $0x8c0] sm:$0xff]
      %v539 = vld [vmem:[%s232 + $0x8c8] sm:$0xff]
      %v540 = vld [vmem:[%s232 + $0x8d0] sm:$0xff]
      %v541 = vld [vmem:[%s232 + $0x8d8] sm:$0xff]
      %v542 = vld [vmem:[%s232 + $0x8e0] sm:$0xff]
      %v543 = vld [vmem:[%s232 + $0x8e8] sm:$0xff]
      %v544 = vld [vmem:[%s232 + $0x8f0] sm:$0xff]
      %v545 = vld [vmem:[%s232 + $0x8f8] sm:$0xff]
      %546 = vmatprep.subr.mxu0 0.0
      %547 = vmatpush1.msra.mxu0 %v258
      %548 = vmatprep.subr.mxu0 0.0
      %549 = vmatpush1.msra.mxu0 %v259
      %550 = vmatprep.subr.mxu0 0.0
      %551 = vmatpush1.msra.mxu0 %v260
      %552 = vmatprep.subr.mxu0 0.0
      %553 = vmatpush1.msra.mxu0 %v261
      %554 = vmatprep.subr.mxu0 0.0
      %555 = vmatpush1.msra.mxu0 %v262
      %556 = vmatprep.subr.mxu0 0.0
      %557 = vmatpush1.msra.mxu0 %v263
      %558 = vmatprep.subr.mxu0 0.0
      %559 = vmatpush1.msra.mxu0 %v264
      %560 = vmatprep.subr.mxu0 0.0
      %561 = vmatpush1.msra.mxu0 %v265
      %562 = vmatprep.subr.mxu0 0.0
      %563 = vmatpush1.msra.mxu0 %v266
      %564 = vmatprep.subr.mxu0 0.0
      %565 = vmatpush1.msra.mxu0 %v267
      %566 = vmatprep.subr.mxu0 0.0
      %567 = vmatpush1.msra.mxu0 %v268
      %568 = vmatprep.subr.mxu0 0.0
      %569 = vmatpush1.msra.mxu0 %v269
      %570 = vmatprep.subr.mxu0 0.0
      %571 = vmatpush1.msra.mxu0 %v270
      %572 = vmatprep.subr.mxu0 0.0
      %573 = vmatpush1.msra.mxu0 %v271
      %574 = vmatprep.subr.mxu0 0.0
      %575 = vmatpush1.msra.mxu0 %v272
      %576 = vmatprep.subr.mxu0 0.0
      %577 = vmatpush1.msra.mxu0 %v273
      %578 = vmatprep.subr.mxu0 0.0
      %579 = vmatpush1.msra.mxu0 %v274
      %580 = vmatprep.subr.mxu0 0.0
      %581 = vmatpush1.msra.mxu0 %v275
      %582 = vmatprep.subr.mxu0 0.0
      %583 = vmatpush1.msra.mxu0 %v276
      %584 = vmatprep.subr.mxu0 0.0
      %585 = vmatpush1.msra.mxu0 %v277
      %586 = vmatprep.subr.mxu0 0.0
      %587 = vmatpush1.msra.mxu0 %v278
      %588 = vmatprep.subr.mxu0 0.0
      %589 = vmatpush1.msra.mxu0 %v279
      %590 = vmatprep.subr.mxu0 0.0
      %591 = vmatpush1.msra.mxu0 %v280
      %592 = vmatprep.subr.mxu0 0.0
      %593 = vmatpush1.msra.mxu0 %v281
      %594 = vmatprep.subr.mxu0 0.0
      %595 = vmatpush1.msra.mxu0 %v282
      %596 = vmatprep.subr.mxu0 0.0
      %597 = vmatpush1.msra.mxu0 %v283
      %598 = vmatprep.subr.mxu0 0.0
      %599 = vmatpush1.msra.mxu0 %v284
      %600 = vmatprep.subr.mxu0 0.0
      %601 = vmatpush1.msra.mxu0 %v285
      %602 = vmatprep.subr.mxu0 0.0
      %603 = vmatpush1.msra.mxu0 %v286
      %604 = vmatprep.subr.mxu0 0.0
      %605 = vmatpush1.msra.mxu0 %v287
      %606 = vmatprep.subr.mxu0 0.0
      %607 = vmatpush1.msra.mxu0 %v288
      %608 = vmatprep.subr.mxu0 0.0
      %609 = vmatpush1.msra.mxu0 %v289
      %610 = vmatprep.mubr.f32.mxu0 %v241
      %611 = vmatmul.mubr.f32.gmra.mrb[0].mxu0 %v240
      %v612 = vpop.f32.mrb[0].mxu0
      %v613 = vadd.f32 0.0, %v612
      %v614 = vpop.f32.mrb[0].mxu0
      %615 = vdwg.mxu0
      %616 = vmatprep.subr.mxu0 0.0
      %617 = vmatpush1.msra.mxu0 %v290
      %618 = vmatprep.subr.mxu0 0.0
      %619 = vmatpush1.msra.mxu0 %v291
      %620 = vmatprep.subr.mxu0 0.0
      %621 = vmatpush1.msra.mxu0 %v292
      %622 = vmatprep.subr.mxu0 0.0
      %623 = vmatpush1.msra.mxu0 %v293
      %624 = vmatprep.subr.mxu0 0.0
      %625 = vmatpush1.msra.mxu0 %v294
      %626 = vmatprep.subr.mxu0 0.0
      %627 = vmatpush1.msra.mxu0 %v295
      %628 = vmatprep.subr.mxu0 0.0
      %629 = vmatpush1.msra.mxu0 %v296
      %630 = vmatprep.subr.mxu0 0.0
      %631 = vmatpush1.msra.mxu0 %v297
      %632 = vmatprep.subr.mxu0 0.0
      %633 = vmatpush1.msra.mxu0 %v298
      %634 = vmatprep.subr.mxu0 0.0
      %635 = vmatpush1.msra.mxu0 %v299
      %636 = vmatprep.subr.mxu0 0.0
      %637 = vmatpush1.msra.mxu0 %v300
      %638 = vmatprep.subr.mxu0 0.0
      %639 = vmatpush1.msra.mxu0 %v301
      %640 = vmatprep.subr.mxu0 0.0
      %641 = vmatpush1.msra.mxu0 %v302
      %642 = vmatprep.subr.mxu0 0.0
      %643 = vmatpush1.msra.mxu0 %v303
      %644 = vmatprep.subr.mxu0 0.0
      %645 = vmatpush1.msra.mxu0 %v304
      %646 = vmatprep.subr.mxu0 0.0
      %647 = vmatpush1.msra.mxu0 %v305
      %648 = vmatprep.subr.mxu0 0.0
      %649 = vmatpush1.msra.mxu0 %v306
      %650 = vmatprep.subr.mxu0 0.0
      %651 = vmatpush1.msra.mxu0 %v307
      %652 = vmatprep.subr.mxu0 0.0
      %653 = vmatpush1.msra.mxu0 %v308
      %654 = vmatprep.subr.mxu0 0.0
      %655 = vmatpush1.msra.mxu0 %v309
      %656 = vmatprep.subr.mxu0 0.0
      %657 = vmatpush1.msra.mxu0 %v310
      %658 = vmatprep.subr.mxu0 0.0
      %659 = vmatpush1.msra.mxu0 %v311
      %660 = vmatprep.subr.mxu0 0.0
      %661 = vmatpush1.msra.mxu0 %v312
      %662 = vmatprep.subr.mxu0 0.0
      %663 = vmatpush1.msra.mxu0 %v313
      %664 = vmatprep.subr.mxu0 0.0
      %665 = vmatpush1.msra.mxu0 %v314
      %666 = vmatprep.subr.mxu0 0.0
      %667 = vmatpush1.msra.mxu0 %v315
      %668 = vmatprep.subr.mxu0 0.0
      %669 = vmatpush1.msra.mxu0 %v316
      %670 = vmatprep.subr.mxu0 0.0
      %671 = vmatpush1.msra.mxu0 %v317
      %672 = vmatprep.subr.mxu0 0.0
      %673 = vmatpush1.msra.mxu0 %v318
      %674 = vmatprep.subr.mxu0 0.0
      %675 = vmatpush1.msra.mxu0 %v319
      %676 = vmatprep.subr.mxu0 0.0
      %677 = vmatpush1.msra.mxu0 %v320
      %678 = vmatprep.subr.mxu0 0.0
      %679 = vmatpush1.msra.mxu0 %v321
      %680 = vmatprep.mubr.f32.mxu0 %v243
      %681 = vmatmul.mubr.f32.gmra.mrb[0].mxu0 %v242
      %v682 = vpop.f32.mrb[0].mxu0
      %v683 = vadd.f32 %v613, %v682
      %v684 = vpop.f32.mrb[0].mxu0
      %685 = vdwg.mxu0
      %686 = vmatprep.subr.mxu0 0.0
      %687 = vmatpush1.msra.mxu0 %v322
      %688 = vmatprep.subr.mxu0 0.0
      %689 = vmatpush1.msra.mxu0 %v323
      %690 = vmatprep.subr.mxu0 0.0
      %691 = vmatpush1.msra.mxu0 %v324
      %692 = vmatprep.subr.mxu0 0.0
      %693 = vmatpush1.msra.mxu0 %v325
      %694 = vmatprep.subr.mxu0 0.0
      %695 = vmatpush1.msra.mxu0 %v326
      %696 = vmatprep.subr.mxu0 0.0
      %697 = vmatpush1.msra.mxu0 %v327
      %698 = vmatprep.subr.mxu0 0.0
      %699 = vmatpush1.msra.mxu0 %v328
      %700 = vmatprep.subr.mxu0 0.0
      %701 = vmatpush1.msra.mxu0 %v329
      %702 = vmatprep.subr.mxu0 0.0
      %703 = vmatpush1.msra.mxu0 %v330
      %704 = vmatprep.subr.mxu0 0.0
      %705 = vmatpush1.msra.mxu0 %v331
      %706 = vmatprep.subr.mxu0 0.0
      %707 = vmatpush1.msra.mxu0 %v332
      %708 = vmatprep.subr.mxu0 0.0
      %709 = vmatpush1.msra.mxu0 %v333
      %710 = vmatprep.subr.mxu0 0.0
      %711 = vmatpush1.msra.mxu0 %v334
      %712 = vmatprep.subr.mxu0 0.0
      %713 = vmatpush1.msra.mxu0 %v335
      %714 = vmatprep.subr.mxu0 0.0
      %715 = vmatpush1.msra.mxu0 %v336
      %716 = vmatprep.subr.mxu0 0.0
      %717 = vmatpush1.msra.mxu0 %v337
      %718 = vmatprep.subr.mxu0 0.0
      %719 = vmatpush1.msra.mxu0 %v338
      %720 = vmatprep.subr.mxu0 0.0
      %721 = vmatpush1.msra.mxu0 %v339
      %722 = vmatprep.subr.mxu0 0.0
      %723 = vmatpush1.msra.mxu0 %v340
      %724 = vmatprep.subr.mxu0 0.0
      %725 = vmatpush1.msra.mxu0 %v341
      %726 = vmatprep.subr.mxu0 0.0
      %727 = vmatpush1.msra.mxu0 %v342
      %728 = vmatprep.subr.mxu0 0.0
      %729 = vmatpush1.msra.mxu0 %v343
      %730 = vmatprep.subr.mxu0 0.0
      %731 = vmatpush1.msra.mxu0 %v344
      %732 = vmatprep.subr.mxu0 0.0
      %733 = vmatpush1.msra.mxu0 %v345
      %734 = vmatprep.subr.mxu0 0.0
      %735 = vmatpush1.msra.mxu0 %v346
      %736 = vmatprep.subr.mxu0 0.0
      %737 = vmatpush1.msra.mxu0 %v347
      %738 = vmatprep.subr.mxu0 0.0
      %739 = vmatpush1.msra.mxu0 %v348
      %740 = vmatprep.subr.mxu0 0.0
      %741 = vmatpush1.msra.mxu0 %v349
      %742 = vmatprep.subr.mxu0 0.0
      %743 = vmatpush1.msra.mxu0 %v350
      %744 = vmatprep.subr.mxu0 0.0
      %745 = vmatpush1.msra.mxu0 %v351
      %746 = vmatprep.subr.mxu0 0.0
      %747 = vmatpush1.msra.mxu0 %v352
      %748 = vmatprep.subr.mxu0 0.0
      %749 = vmatpush1.msra.mxu0 %v353
      %750 = vmatprep.mubr.f32.mxu0 %v245
      %751 = vmatmul.mubr.f32.gmra.mrb[0].mxu0 %v244
      %v752 = vpop.f32.mrb[0].mxu0
      %v753 = vadd.f32 %v683, %v752
      %v754 = vpop.f32.mrb[0].mxu0
      %755 = vdwg.mxu0
      %756 = vmatprep.subr.mxu0 0.0
      %757 = vmatpush1.msra.mxu0 %v354
      %758 = vmatprep.subr.mxu0 0.0
      %759 = vmatpush1.msra.mxu0 %v355
      %760 = vmatprep.subr.mxu0 0.0
      %761 = vmatpush1.msra.mxu0 %v356
      %762 = vmatprep.subr.mxu0 0.0
      %763 = vmatpush1.msra.mxu0 %v357
      %764 = vmatprep.subr.mxu0 0.0
      %765 = vmatpush1.msra.mxu0 %v358
      %766 = vmatprep.subr.mxu0 0.0
      %767 = vmatpush1.msra.mxu0 %v359
      %768 = vmatprep.subr.mxu0 0.0
      %769 = vmatpush1.msra.mxu0 %v360
      %770 = vmatprep.subr.mxu0 0.0
      %771 = vmatpush1.msra.mxu0 %v361
      %772 = vmatprep.subr.mxu0 0.0
      %773 = vmatpush1.msra.mxu0 %v362
      %774 = vmatprep.subr.mxu0 0.0
      %775 = vmatpush1.msra.mxu0 %v363
      %776 = vmatprep.subr.mxu0 0.0
      %777 = vmatpush1.msra.mxu0 %v364
      %778 = vmatprep.subr.mxu0 0.0
      %779 = vmatpush1.msra.mxu0 %v365
      %780 = vmatprep.subr.mxu0 0.0
      %781 = vmatpush1.msra.mxu0 %v366
      %782 = vmatprep.subr.mxu0 0.0
      %783 = vmatpush1.msra.mxu0 %v367
      %784 = vmatprep.subr.mxu0 0.0
      %785 = vmatpush1.msra.mxu0 %v368
      %786 = vmatprep.subr.mxu0 0.0
      %787 = vmatpush1.msra.mxu0 %v369
      %788 = vmatprep.subr.mxu0 0.0
      %789 = vmatpush1.msra.mxu0 %v370
      %790 = vmatprep.subr.mxu0 0.0
      %791 = vmatpush1.msra.mxu0 %v371
      %792 = vmatprep.subr.mxu0 0.0
      %793 = vmatpush1.msra.mxu0 %v372
      %794 = vmatprep.subr.mxu0 0.0
      %795 = vmatpush1.msra.mxu0 %v373
      %796 = vmatprep.subr.mxu0 0.0
      %797 = vmatpush1.msra.mxu0 %v374
      %798 = vmatprep.subr.mxu0 0.0
      %799 = vmatpush1.msra.mxu0 %v375
      %800 = vmatprep.subr.mxu0 0.0
      %801 = vmatpush1.msra.mxu0 %v376
      %802 = vmatprep.subr.mxu0 0.0
      %803 = vmatpush1.msra.mxu0 %v377
      %804 = vmatprep.subr.mxu0 0.0
      %805 = vmatpush1.msra.mxu0 %v378
      %806 = vmatprep.subr.mxu0 0.0
      %807 = vmatpush1.msra.mxu0 %v379
      %808 = vmatprep.subr.mxu0 0.0
      %809 = vmatpush1.msra.mxu0 %v380
      %810 = vmatprep.subr.mxu0 0.0
      %811 = vmatpush1.msra.mxu0 %v381
      %812 = vmatprep.subr.mxu0 0.0
      %813 = vmatpush1.msra.mxu0 %v382
      %814 = vmatprep.subr.mxu0 0.0
      %815 = vmatpush1.msra.mxu0 %v383
      %816 = vmatprep.subr.mxu0 0.0
      %817 = vmatpush1.msra.mxu0 %v384
      %818 = vmatprep.subr.mxu0 0.0
      %819 = vmatpush1.msra.mxu0 %v385
      %820 = vmatprep.mubr.f32.mxu0 %v247
      %821 = vmatmul.mubr.f32.gmra.mrb[0].mxu0 %v246
      %v822 = vpop.f32.mrb[0].mxu0
      %v823 = vadd.f32 %v753, %v822
      %v824 = vpop.f32.mrb[0].mxu0
      %825 = vdwg.mxu0
      %826 = vmatprep.subr.mxu0 0.0
      %827 = vmatpush1.msra.mxu0 %v386
      %828 = vmatprep.subr.mxu0 0.0
      %829 = vmatpush1.msra.mxu0 %v387
      %830 = vmatprep.subr.mxu0 0.0
      %831 = vmatpush1.msra.mxu0 %v388
      %832 = vmatprep.subr.mxu0 0.0
      %833 = vmatpush1.msra.mxu0 %v389
      %834 = vmatprep.subr.mxu0 0.0
      %835 = vmatpush1.msra.mxu0 %v390
      %836 = vmatprep.subr.mxu0 0.0
      %837 = vmatpush1.msra.mxu0 %v391
      %838 = vmatprep.subr.mxu0 0.0
      %839 = vmatpush1.msra.mxu0 %v392
      %840 = vmatprep.subr.mxu0 0.0
      %841 = vmatpush1.msra.mxu0 %v393
      %842 = vmatprep.subr.mxu0 0.0
      %843 = vmatpush1.msra.mxu0 %v394
      %844 = vmatprep.subr.mxu0 0.0
      %845 = vmatpush1.msra.mxu0 %v395
      %846 = vmatprep.subr.mxu0 0.0
      %847 = vmatpush1.msra.mxu0 %v396
      %848 = vmatprep.subr.mxu0 0.0
      %849 = vmatpush1.msra.mxu0 %v397
      %850 = vmatprep.subr.mxu0 0.0
      %851 = vmatpush1.msra.mxu0 %v398
      %852 = vmatprep.subr.mxu0 0.0
      %853 = vmatpush1.msra.mxu0 %v399
      %854 = vmatprep.subr.mxu0 0.0
      %855 = vmatpush1.msra.mxu0 %v400
      %856 = vmatprep.subr.mxu0 0.0
      %857 = vmatpush1.msra.mxu0 %v401
      %858 = vmatprep.subr.mxu0 0.0
      %859 = vmatpush1.msra.mxu0 %v402
      %860 = vmatprep.subr.mxu0 0.0
      %861 = vmatpush1.msra.mxu0 %v403
      %862 = vmatprep.subr.mxu0 0.0
      %863 = vmatpush1.msra.mxu0 %v404
      %864 = vmatprep.subr.mxu0 0.0
      %865 = vmatpush1.msra.mxu0 %v405
      %866 = vmatprep.subr.mxu0 0.0
      %867 = vmatpush1.msra.mxu0 %v406
      %868 = vmatprep.subr.mxu0 0.0
      %869 = vmatpush1.msra.mxu0 %v407
      %870 = vmatprep.subr.mxu0 0.0
      %871 = vmatpush1.msra.mxu0 %v408
      %872 = vmatprep.subr.mxu0 0.0
      %873 = vmatpush1.msra.mxu0 %v409
      %874 = vmatprep.subr.mxu0 0.0
      %875 = vmatpush1.msra.mxu0 %v410
      %876 = vmatprep.subr.mxu0 0.0
      %877 = vmatpush1.msra.mxu0 %v411
      %878 = vmatprep.subr.mxu0 0.0
      %879 = vmatpush1.msra.mxu0 %v412
      %880 = vmatprep.subr.mxu0 0.0
      %881 = vmatpush1.msra.mxu0 %v413
      %882 = vmatprep.subr.mxu0 0.0
      %883 = vmatpush1.msra.mxu0 %v414
      %884 = vmatprep.subr.mxu0 0.0
      %885 = vmatpush1.msra.mxu0 %v415
      %886 = vmatprep.subr.mxu0 0.0
      %887 = vmatpush1.msra.mxu0 %v416
      %888 = vmatprep.subr.mxu0 0.0
      %889 = vmatpush1.msra.mxu0 %v417
      %890 = vmatprep.mubr.f32.mxu0 %v249
      %891 = vmatmul.mubr.f32.gmra.mrb[0].mxu0 %v248
      %v892 = vpop.f32.mrb[0].mxu0
      %v893 = vadd.f32 %v823, %v892
      %v894 = vpop.f32.mrb[0].mxu0
      %895 = vdwg.mxu0
      %896 = vmatprep.subr.mxu0 0.0
      %897 = vmatpush1.msra.mxu0 %v418
      %898 = vmatprep.subr.mxu0 0.0
      %899 = vmatpush1.msra.mxu0 %v419
      %900 = vmatprep.subr.mxu0 0.0
      %901 = vmatpush1.msra.mxu0 %v420
      %902 = vmatprep.subr.mxu0 0.0
      %903 = vmatpush1.msra.mxu0 %v421
      %904 = vmatprep.subr.mxu0 0.0
      %905 = vmatpush1.msra.mxu0 %v422
      %906 = vmatprep.subr.mxu0 0.0
      %907 = vmatpush1.msra.mxu0 %v423
      %908 = vmatprep.subr.mxu0 0.0
      %909 = vmatpush1.msra.mxu0 %v424
      %910 = vmatprep.subr.mxu0 0.0
      %911 = vmatpush1.msra.mxu0 %v425
      %912 = vmatprep.subr.mxu0 0.0
      %913 = vmatpush1.msra.mxu0 %v426
      %914 = vmatprep.subr.mxu0 0.0
      %915 = vmatpush1.msra.mxu0 %v427
      %916 = vmatprep.subr.mxu0 0.0
      %917 = vmatpush1.msra.mxu0 %v428
      %918 = vmatprep.subr.mxu0 0.0
      %919 = vmatpush1.msra.mxu0 %v429
      %920 = vmatprep.subr.mxu0 0.0
      %921 = vmatpush1.msra.mxu0 %v430
      %922 = vmatprep.subr.mxu0 0.0
      %923 = vmatpush1.msra.mxu0 %v431
      %924 = vmatprep.subr.mxu0 0.0
      %925 = vmatpush1.msra.mxu0 %v432
      %926 = vmatprep.subr.mxu0 0.0
      %927 = vmatpush1.msra.mxu0 %v433
      %928 = vmatprep.subr.mxu0 0.0
      %929 = vmatpush1.msra.mxu0 %v434
      %930 = vmatprep.subr.mxu0 0.0
      %931 = vmatpush1.msra.mxu0 %v435
      %932 = vmatprep.subr.mxu0 0.0
      %933 = vmatpush1.msra.mxu0 %v436
      %934 = vmatprep.subr.mxu0 0.0
      %935 = vmatpush1.msra.mxu0 %v437
      %936 = vmatprep.subr.mxu0 0.0
      %937 = vmatpush1.msra.mxu0 %v438
      %938 = vmatprep.subr.mxu0 0.0
      %939 = vmatpush1.msra.mxu0 %v439
      %940 = vmatprep.subr.mxu0 0.0
      %941 = vmatpush1.msra.mxu0 %v440
      %942 = vmatprep.subr.mxu0 0.0
      %943 = vmatpush1.msra.mxu0 %v441
      %944 = vmatprep.subr.mxu0 0.0
      %945 = vmatpush1.msra.mxu0 %v442
      %946 = vmatprep.subr.mxu0 0.0
      %947 = vmatpush1.msra.mxu0 %v443
      %948 = vmatprep.subr.mxu0 0.0
      %949 = vmatpush1.msra.mxu0 %v444
      %950 = vmatprep.subr.mxu0 0.0
      %951 = vmatpush1.msra.mxu0 %v445
      %952 = vmatprep.subr.mxu0 0.0
      %953 = vmatpush1.msra.mxu0 %v446
      %954 = vmatprep.subr.mxu0 0.0
      %955 = vmatpush1.msra.mxu0 %v447
      %956 = vmatprep.subr.mxu0 0.0
      %957 = vmatpush1.msra.mxu0 %v448
      %958 = vmatprep.subr.mxu0 0.0
      %959 = vmatpush1.msra.mxu0 %v449
      %960 = vmatprep.mubr.f32.mxu0 %v251
      %961 = vmatmul.mubr.f32.gmra.mrb[0].mxu0 %v250
      %v962 = vpop.f32.mrb[0].mxu0
      %v963 = vadd.f32 %v893, %v962
      %v964 = vpop.f32.mrb[0].mxu0
      %965 = vdwg.mxu0
      %966 = vmatprep.subr.mxu0 0.0
      %967 = vmatpush1.msra.mxu0 %v450
      %968 = vmatprep.subr.mxu0 0.0
      %969 = vmatpush1.msra.mxu0 %v451
      %970 = vmatprep.subr.mxu0 0.0
      %971 = vmatpush1.msra.mxu0 %v452
      %972 = vmatprep.subr.mxu0 0.0
      %973 = vmatpush1.msra.mxu0 %v453
      %974 = vmatprep.subr.mxu0 0.0
      %975 = vmatpush1.msra.mxu0 %v454
      %976 = vmatprep.subr.mxu0 0.0
      %977 = vmatpush1.msra.mxu0 %v455
      %978 = vmatprep.subr.mxu0 0.0
      %979 = vmatpush1.msra.mxu0 %v456
      %980 = vmatprep.subr.mxu0 0.0
      %981 = vmatpush1.msra.mxu0 %v457
      %982 = vmatprep.subr.mxu0 0.0
      %983 = vmatpush1.msra.mxu0 %v458
      %984 = vmatprep.subr.mxu0 0.0
      %985 = vmatpush1.msra.mxu0 %v459
      %986 = vmatprep.subr.mxu0 0.0
      %987 = vmatpush1.msra.mxu0 %v460
      %988 = vmatprep.subr.mxu0 0.0
      %989 = vmatpush1.msra.mxu0 %v461
      %990 = vmatprep.subr.mxu0 0.0
      %991 = vmatpush1.msra.mxu0 %v462
      %992 = vmatprep.subr.mxu0 0.0
      %993 = vmatpush1.msra.mxu0 %v463
      %994 = vmatprep.subr.mxu0 0.0
      %995 = vmatpush1.msra.mxu0 %v464
      %996 = vmatprep.subr.mxu0 0.0
      %997 = vmatpush1.msra.mxu0 %v465
      %998 = vmatprep.subr.mxu0 0.0
      %999 = vmatpush1.msra.mxu0 %v466
      %1000 = vmatprep.subr.mxu0 0.0
      %1001 = vmatpush1.msra.mxu0 %v467
      %1002 = vmatprep.subr.mxu0 0.0
      %1003 = vmatpush1.msra.mxu0 %v468
      %1004 = vmatprep.subr.mxu0 0.0
      %1005 = vmatpush1.msra.mxu0 %v469
      %1006 = vmatprep.subr.mxu0 0.0
      %1007 = vmatpush1.msra.mxu0 %v470
      %1008 = vmatprep.subr.mxu0 0.0
      %1009 = vmatpush1.msra.mxu0 %v471
      %1010 = vmatprep.subr.mxu0 0.0
      %1011 = vmatpush1.msra.mxu0 %v472
      %1012 = vmatprep.subr.mxu0 0.0
      %1013 = vmatpush1.msra.mxu0 %v473
      %1014 = vmatprep.subr.mxu0 0.0
      %1015 = vmatpush1.msra.mxu0 %v474
      %1016 = vmatprep.subr.mxu0 0.0
      %1017 = vmatpush1.msra.mxu0 %v475
      %1018 = vmatprep.subr.mxu0 0.0
      %1019 = vmatpush1.msra.mxu0 %v476
      %1020 = vmatprep.subr.mxu0 0.0
      %1021 = vmatpush1.msra.mxu0 %v477
      %1022 = vmatprep.subr.mxu0 0.0
      %1023 = vmatpush1.msra.mxu0 %v478
      %1024 = vmatprep.subr.mxu0 0.0
      %1025 = vmatpush1.msra.mxu0 %v479
      %1026 = vmatprep.subr.mxu0 0.0
      %1027 = vmatpush1.msra.mxu0 %v480
      %1028 = vmatprep.subr.mxu0 0.0
      %1029 = vmatpush1.msra.mxu0 %v481
      %1030 = vmatprep.mubr.f32.mxu0 %v253
      %1031 = vmatmul.mubr.f32.gmra.mrb[0].mxu0 %v252
      %v1032 = vpop.f32.mrb[0].mxu0
      %v1033 = vadd.f32 %v963, %v1032
      %v1034 = vpop.f32.mrb[0].mxu0
      %1035 = vdwg.mxu0
      %1036 = vmatprep.subr.mxu0 0.0
      %1037 = vmatpush1.msra.mxu0 %v482
      %1038 = vmatprep.subr.mxu0 0.0
      %1039 = vmatpush1.msra.mxu0 %v483
      %1040 = vmatprep.subr.mxu0 0.0
      %1041 = vmatpush1.msra.mxu0 %v484
      %1042 = vmatprep.subr.mxu0 0.0
      %1043 = vmatpush1.msra.mxu0 %v485
      %1044 = vmatprep.subr.mxu0 0.0
      %1045 = vmatpush1.msra.mxu0 %v486
      %1046 = vmatprep.subr.mxu0 0.0
      %1047 = vmatpush1.msra.mxu0 %v487
      %1048 = vmatprep.subr.mxu0 0.0
      %1049 = vmatpush1.msra.mxu0 %v488
      %1050 = vmatprep.subr.mxu0 0.0
      %1051 = vmatpush1.msra.mxu0 %v489
      %1052 = vmatprep.subr.mxu0 0.0
      %1053 = vmatpush1.msra.mxu0 %v490
      %1054 = vmatprep.subr.mxu0 0.0
      %1055 = vmatpush1.msra.mxu0 %v491
      %1056 = vmatprep.subr.mxu0 0.0
      %1057 = vmatpush1.msra.mxu0 %v492
      %1058 = vmatprep.subr.mxu0 0.0
      %1059 = vmatpush1.msra.mxu0 %v493
      %1060 = vmatprep.subr.mxu0 0.0
      %1061 = vmatpush1.msra.mxu0 %v494
      %1062 = vmatprep.subr.mxu0 0.0
      %1063 = vmatpush1.msra.mxu0 %v495
      %1064 = vmatprep.subr.mxu0 0.0
      %1065 = vmatpush1.msra.mxu0 %v496
      %1066 = vmatprep.subr.mxu0 0.0
      %1067 = vmatpush1.msra.mxu0 %v497
      %1068 = vmatprep.subr.mxu0 0.0
      %1069 = vmatpush1.msra.mxu0 %v498
      %1070 = vmatprep.subr.mxu0 0.0
      %1071 = vmatpush1.msra.mxu0 %v499
      %1072 = vmatprep.subr.mxu0 0.0
      %1073 = vmatpush1.msra.mxu0 %v500
      %1074 = vmatprep.subr.mxu0 0.0
      %1075 = vmatpush1.msra.mxu0 %v501
      %1076 = vmatprep.subr.mxu0 0.0
      %1077 = vmatpush1.msra.mxu0 %v502
      %1078 = vmatprep.subr.mxu0 0.0
      %1079 = vmatpush1.msra.mxu0 %v503
      %1080 = vmatprep.subr.mxu0 0.0
      %1081 = vmatpush1.msra.mxu0 %v504
      %1082 = vmatprep.subr.mxu0 0.0
      %1083 = vmatpush1.msra.mxu0 %v505
      %1084 = vmatprep.subr.mxu0 0.0
      %1085 = vmatpush1.msra.mxu0 %v506
      %1086 = vmatprep.subr.mxu0 0.0
      %1087 = vmatpush1.msra.mxu0 %v507
      %1088 = vmatprep.subr.mxu0 0.0
      %1089 = vmatpush1.msra.mxu0 %v508
      %1090 = vmatprep.subr.mxu0 0.0
      %1091 = vmatpush1.msra.mxu0 %v509
      %1092 = vmatprep.subr.mxu0 0.0
      %1093 = vmatpush1.msra.mxu0 %v510
      %1094 = vmatprep.subr.mxu0 0.0
      %1095 = vmatpush1.msra.mxu0 %v511
      %1096 = vmatprep.subr.mxu0 0.0
      %1097 = vmatpush1.msra.mxu0 %v512
      %1098 = vmatprep.subr.mxu0 0.0
      %1099 = vmatpush1.msra.mxu0 %v513
      %1100 = vmatprep.mubr.f32.mxu0 %v255
      %1101 = vmatmul.mubr.f32.gmra.mrb[0].mxu0 %v254
      %v1102 = vpop.f32.mrb[0].mxu0
      %v1103 = vadd.f32 %v1033, %v1102
      %v1104 = vpop.f32.mrb[0].mxu0
      %1105 = vdwg.mxu0
      %1106 = vmatprep.subr.mxu0 0.0
      %1107 = vmatpush1.msra.mxu0 %v514
      %1108 = vmatprep.subr.mxu0 0.0
      %1109 = vmatpush1.msra.mxu0 %v515
      %1110 = vmatprep.subr.mxu0 0.0
      %1111 = vmatpush1.msra.mxu0 %v516
      %1112 = vmatprep.subr.mxu0 0.0
      %1113 = vmatpush1.msra.mxu0 %v517
      %1114 = vmatprep.subr.mxu0 0.0
      %1115 = vmatpush1.msra.mxu0 %v518
      %1116 = vmatprep.subr.mxu0 0.0
      %1117 = vmatpush1.msra.mxu0 %v519
      %1118 = vmatprep.subr.mxu0 0.0
      %1119 = vmatpush1.msra.mxu0 %v520
      %1120 = vmatprep.subr.mxu0 0.0
      %1121 = vmatpush1.msra.mxu0 %v521
      %1122 = vmatprep.subr.mxu0 0.0
      %1123 = vmatpush1.msra.mxu0 %v522
      %1124 = vmatprep.subr.mxu0 0.0
      %1125 = vmatpush1.msra.mxu0 %v523
      %1126 = vmatprep.subr.mxu0 0.0
      %1127 = vmatpush1.msra.mxu0 %v524
      %1128 = vmatprep.subr.mxu0 0.0
      %1129 = vmatpush1.msra.mxu0 %v525
      %1130 = vmatprep.subr.mxu0 0.0
      %1131 = vmatpush1.msra.mxu0 %v526
      %1132 = vmatprep.subr.mxu0 0.0
      %1133 = vmatpush1.msra.mxu0 %v527
      %1134 = vmatprep.subr.mxu0 0.0
      %1135 = vmatpush1.msra.mxu0 %v528
      %1136 = vmatprep.subr.mxu0 0.0
      %1137 = vmatpush1.msra.mxu0 %v529
      %1138 = vmatprep.subr.mxu0 0.0
      %1139 = vmatpush1.msra.mxu0 %v530
      %1140 = vmatprep.subr.mxu0 0.0
      %1141 = vmatpush1.msra.mxu0 %v531
      %1142 = vmatprep.subr.mxu0 0.0
      %1143 = vmatpush1.msra.mxu0 %v532
      %1144 = vmatprep.subr.mxu0 0.0
      %1145 = vmatpush1.msra.mxu0 %v533
      %1146 = vmatprep.subr.mxu0 0.0
      %1147 = vmatpush1.msra.mxu0 %v534
      %1148 = vmatprep.subr.mxu0 0.0
      %1149 = vmatpush1.msra.mxu0 %v535
      %1150 = vmatprep.subr.mxu0 0.0
      %1151 = vmatpush1.msra.mxu0 %v536
      %1152 = vmatprep.subr.mxu0 0.0
      %1153 = vmatpush1.msra.mxu0 %v537
      %1154 = vmatprep.subr.mxu0 0.0
      %1155 = vmatpush1.msra.mxu0 %v538
      %1156 = vmatprep.subr.mxu0 0.0
      %1157 = vmatpush1.msra.mxu0 %v539
      %1158 = vmatprep.subr.mxu0 0.0
      %1159 = vmatpush1.msra.mxu0 %v540
      %1160 = vmatprep.subr.mxu0 0.0
      %1161 = vmatpush1.msra.mxu0 %v541
      %1162 = vmatprep.subr.mxu0 0.0
      %1163 = vmatpush1.msra.mxu0 %v542
      %1164 = vmatprep.subr.mxu0 0.0
      %1165 = vmatpush1.msra.mxu0 %v543
      %1166 = vmatprep.subr.mxu0 0.0
      %1167 = vmatpush1.msra.mxu0 %v544
      %1168 = vmatprep.subr.mxu0 0.0
      %1169 = vmatpush1.msra.mxu0 %v545
      %1170 = vmatprep.mubr.f32.mxu0 %v257
      %1171 = vmatmul.mubr.f32.gmra.mrb[0].mxu0 %v256
      %v1172 = vpop.f32.mrb[0].mxu0
      %v1173 = vadd.f32 %v1103, %v1172
      %v1174 = vpop.f32.mrb[0].mxu0
      %1175 = vdwg.mxu0
      %v1176 = vadd.f32 %v239, %v1173
      %1177 = vst [vmem:[#allocation2] sm:$0xff] %v1176
      %p1178 = scmp.eq.s32.totalorder %s16, 3
      // Predicated region
      $region45: #{cnn_pathmnist_forward.7} parent=39 // pred_check
        %p1179 = pneg %p1178
      $region46: #{cnn_pathmnist_forward.7} parent=39 // pred_check_branch
        %1181 = sbr.rel (%p1179) target = $region48
      $region47: #{cnn_pathmnist_forward.7} parent=39 // pred_region
        %v1182 = vld [vmem:[#allocation2] sm:$0xff]
        %v1183 = vld [vmem:[%s2] sm:$0x1]
        %v1185 = vlaneseq
        %v1186 = vshrl.u32 %v1185, 7
        %v1187 = vsub.s32 0, %v1186
        %v1188 = vrot.slane %v1183, %v1187
        %v1190 = vadd.f32 %v1182, %v1188
        %v1191 = vmax.f32 %v1190, 0.0
        %v1192 = vld [vmem:[%s3] sm:$0xff]
        %v1193 = vld [vmem:[%s3 + $0x8] sm:$0xff]
        %v1194 = vld [vmem:[%s3 + $0x10] sm:$0xff]
        %v1195 = vld [vmem:[%s3 + $0x18] sm:$0xff]
        %v1196 = vld [vmem:[%s3 + $0x20] sm:$0xff]
        %v1197 = vld [vmem:[%s3 + $0x28] sm:$0xff]
        %v1198 = vld [vmem:[%s3 + $0x30] sm:$0xff]
        %v1199 = vld [vmem:[%s3 + $0x38] sm:$0xff]
        %v1200 = vld [vmem:[%s3 + $0x40] sm:$0xff]
        %v1201 = vld [vmem:[%s3 + $0x48] sm:$0xff]
        %v1202 = vld [vmem:[%s3 + $0x50] sm:$0xff]
        %v1203 = vld [vmem:[%s3 + $0x58] sm:$0xff]
        %v1204 = vld [vmem:[%s3 + $0x60] sm:$0xff]
        %v1205 = vld [vmem:[%s3 + $0x68] sm:$0xff]
        %v1206 = vld [vmem:[%s3 + $0x70] sm:$0xff]
        %v1207 = vld [vmem:[%s3 + $0x78] sm:$0xff]
        %v1208 = vld [vmem:[%s4] sm:$0x1]
        %v1210 = vlaneseq
        %v1211 = vshrl.u32 %v1210, 7
        %v1212 = vsub.s32 0, %v1211
        %v1213 = vrot.slane %v1208, %v1212
        %1215 = vmatprep.subr.mxu0 0.0
        %1216 = vmatpush1.msra.mxu0 %v1192
        %1217 = vmatprep.subr.mxu0 0.0
        %1218 = vmatpush1.msra.mxu0 %v1193
        %1219 = vmatprep.subr.mxu0 0.0
        %1220 = vmatpush1.msra.mxu0 %v1194
        %1221 = vmatprep.subr.mxu0 0.0
        %1222 = vmatpush1.msra.mxu0 %v1195
        %1223 = vmatprep.subr.mxu0 0.0
        %1224 = vmatpush1.msra.mxu0 %v1196
        %1225 = vmatprep.subr.mxu0 0.0
        %1226 = vmatpush1.msra.mxu0 %v1197
        %1227 = vmatprep.subr.mxu0 0.0
        %1228 = vmatpush1.msra.mxu0 %v1198
        %1229 = vmatprep.subr.mxu0 0.0
        %1230 = vmatpush1.msra.mxu0 %v1199
        %1231 = vmatprep.subr.mxu0 0.0
        %1232 = vmatpush1.msra.mxu0 %v1200
        %1233 = vmatprep.subr.mxu0 0.0
        %1234 = vmatpush1.msra.mxu0 %v1201
        %1235 = vmatprep.subr.mxu0 0.0
        %1236 = vmatpush1.msra.mxu0 %v1202
        %1237 = vmatprep.subr.mxu0 0.0
        %1238 = vmatpush1.msra.mxu0 %v1203
        %1239 = vmatprep.subr.mxu0 0.0
        %1240 = vmatpush1.msra.mxu0 %v1204
        %1241 = vmatprep.subr.mxu0 0.0
        %1242 = vmatpush1.msra.mxu0 %v1205
        %1243 = vmatprep.subr.mxu0 0.0
        %1244 = vmatpush1.msra.mxu0 %v1206
        %1245 = vmatprep.subr.mxu0 0.0
        %1246 = vmatpush1.msra.mxu0 %v1207
        %1247 = vmatprep.subr.mxu0 0.0
        %1248 = vmatpush1.msra.mxu0 0.0
        %1249 = vmatprep.subr.mxu0 0.0
        %1250 = vmatpush1.msra.mxu0 0.0
        %1251 = vmatprep.subr.mxu0 0.0
        %1252 = vmatpush1.msra.mxu0 0.0
        %1253 = vmatprep.subr.mxu0 0.0
        %1254 = vmatpush1.msra.mxu0 0.0
        %1255 = vmatprep.subr.mxu0 0.0
        %1256 = vmatpush1.msra.mxu0 0.0
        %1257 = vmatprep.subr.mxu0 0.0
        %1258 = vmatpush1.msra.mxu0 0.0
        %1259 = vmatprep.subr.mxu0 0.0
        %1260 = vmatpush1.msra.mxu0 0.0
        %1261 = vmatprep.subr.mxu0 0.0
        %1262 = vmatpush1.msra.mxu0 0.0
        %1263 = vmatprep.subr.mxu0 0.0
        %1264 = vmatpush1.msra.mxu0 0.0
        %1265 = vmatprep.subr.mxu0 0.0
        %1266 = vmatpush1.msra.mxu0 0.0
        %1267 = vmatprep.subr.mxu0 0.0
        %1268 = vmatpush1.msra.mxu0 0.0
        %1269 = vmatprep.subr.mxu0 0.0
        %1270 = vmatpush1.msra.mxu0 0.0
        %1271 = vmatprep.subr.mxu0 0.0
        %1272 = vmatpush1.msra.mxu0 0.0
        %1273 = vmatprep.subr.mxu0 0.0
        %1274 = vmatpush1.msra.mxu0 0.0
        %1275 = vmatprep.subr.mxu0 0.0
        %1276 = vmatpush1.msra.mxu0 0.0
        %1277 = vmatprep.subr.mxu0 0.0
        %1278 = vmatpush1.msra.mxu0 0.0
        %1279 = vmatprep.mubr.f32.mxu0 0.0
        %1280 = vmatmul.mubr.f32.gmra.mrb[0].mxu0 %v1191
        %v1281 = vpop.f32.mrb[0].mxu0
        %v1282 = vadd.f32 %v1213, %v1281
        %v1283 = vpop.f32.mrb[0].mxu0
        %1284 = vdwg.mxu0
        %1285 = vst [vmem:[%s5] sm:$0xff] %v1282
      $region48: #{cnn_pathmnist_forward.7} parent=39 // pred_fallthru
        _
      // Predicated region
      $region49: #{cnn_pathmnist_forward.7} parent=39 // pred_check
        %p1286 = pneg %p144
      $region50: #{cnn_pathmnist_forward.7} parent=39 // pred_check_branch
        %1288 = sbr.rel (%p1286) target = $region52
      $region51: #{cnn_pathmnist_forward.7} parent=39 // pred_region
        _
      $region52: #{cnn_pathmnist_forward.7} parent=39 // pred_fallthru
        _
      // Predicated region
      $region53: #{cnn_pathmnist_forward.7} parent=39 // pred_check
        %p1289 = pneg %p144
      $region54: #{cnn_pathmnist_forward.7} parent=39 // pred_check_branch
        %1291 = sbr.rel (%p1289) target = $region56
      $region55: #{cnn_pathmnist_forward.7} parent=39 // pred_region
        _
      $region56: #{cnn_pathmnist_forward.7} parent=39 // pred_fallthru
        _
    $region40: #{cnn_pathmnist_forward.7} parent=5 // pred_fallthru
      _
    %p1292 = scmp.le.s32.totalorder 2, %s11
    // Predicated region
    $region57: #{cnn_pathmnist_forward.7} parent=5 // pred_check
      %p1293 = pneg %p1292
    $region58: #{cnn_pathmnist_forward.7} parent=5 // pred_check_branch
      %1295 = sbr.rel (%p1293) target = $region60
    $region59: #{cnn_pathmnist_forward.7} parent=5 // pred_region
      %s1296 = ssub.s32 %s11, 2
    $region60: #{cnn_pathmnist_forward.7} parent=5 // pred_fallthru
      _
  $region6: #{cnn_pathmnist_forward.7} parent=0 // loop_footer
    %s15 = sadd.s32 1, %s11
  $region7: #{cnn_pathmnist_forward.7} parent=0 // loop_footer_branch
    %10 = sbr.rel target = $region3
  $region8: #{cnn_pathmnist_forward.7} parent=0 // loop_exit
    _

</llo_original>
